<compile_context>
chip_gen: v6e
topology: v6e:2x2x1
jax: 0.10.0
libtpu: 0.0.40
codegen_flags: <defaults>
</compile_context>

<pallas_src>
import functools

import jax
import jax.numpy as jnp
from jax import lax
from jax.experimental import pallas as pl
from jax.experimental.pallas import tpu as pltpu

C_PAD = 128  # every layer's output padded to one full lane width


# ----------------------------- fused kernel --------------------------------

def _actor_kernel(p1_ref, w1_ref, b1_ref, w2_ref, b2_ref, w3_ref, b3_ref,
                  wfc_ref, bfc_ref, wh_ref, bh_ref, o_ref, h1_scr):
    f32, bf16 = jnp.float32, jnp.bfloat16

    # conv1 (8x8, stride 4): one matmul on pre-gathered patches.
    # h1 row q = r*128 + t*64 + u*8 + v  <->  conv1 output pixel (2u+r, 2v+t).
    h1 = jnp.dot(p1_ref[0], w1_ref[...], preferred_element_type=f32)
    h1_scr[...] = jnp.maximum(h1 + b1_ref[...], 0.0)           # (256,128) f32

    # conv2 (4x4, stride 2) -> rows y*8 + x, y,x in [0,6).
    acc2 = jnp.zeros((48, C_PAD), f32)
    for di in range(4):
        for dj in range(4):
            a, r = di // 2, di % 2
            b, t = dj // 2, dj % 2
            base = r * 128 + t * 64 + a * 8 + b
            lhs = h1_scr[pl.ds(base, 48), pl.ds(0, 32)].astype(bf16)
            acc2 = acc2 + jnp.dot(lhs, w2_ref[di * 4 + dj],
                                  preferred_element_type=f32)
    h2 = jnp.maximum(acc2 + b2_ref[...], 0.0)                  # (48,128) f32

    # conv3 (3x3, stride 1) -> rows y*8 + x, y,x in [0,4).
    acc3 = jnp.zeros((28, C_PAD), f32)
    for di in range(3):
        for dj in range(3):
            off = di * 8 + dj
            lhs = h2[off:off + 28, 0:64].astype(bf16)
            acc3 = acc3 + jnp.dot(lhs, w3_ref[di * 3 + dj],
                                  preferred_element_type=f32)
    h3 = jnp.maximum(acc3 + b3_ref[...], 0.0)                  # (28,128) f32

    # fc: flatten of the 4x4x64 conv3 output (NCHW order baked into wfc).
    accf = jnp.zeros((1, C_PAD), f32)
    p = 0
    for yy in range(4):
        for xx in range(4):
            k = yy * 8 + xx
            lhs = h3[k:k + 1, 0:64].astype(bf16)
            accf = accf + jnp.dot(lhs, wfc_ref[p],
                                  preferred_element_type=f32)
            p += 1
    hf = jnp.maximum(accf + bfc_ref[...], 0.0)                 # (1,128) f32

    # actor head + softmax; padded lanes carry bias -1e30 -> probability 0.
    logits = jnp.dot(hf.astype(bf16), wh_ref[...],
                     preferred_element_type=f32) + bh_ref[...]
    m = jnp.max(logits, axis=-1, keepdims=True)
    e = jnp.exp(logits - m)
    s = jnp.sum(e, axis=-1, keepdims=True)
    o_ref[0] = (e * pl.reciprocal(s, approx=True)).astype(o_ref.dtype)


# ----------------------------- host wrappers --------------------------------

def _prep_input(x):
    """(N,64,64,3) NHWC -> conv1 im2col patches (N,256,192) bf16.

    Rows are ordered (row-parity r, col-parity t, u, v) on an 8x8 padded grid
    (output pixel = (2u+r, 2v+t)); features are ordered (a, b, r2, t2, c) with
    kernel offset (di, dj) = (4a+r2, 4b+t2), matching prep_kernel_params."""
    n, h, w, c = x.shape
    assert (h, w, c) == (64, 64, 3), "kernel specialized to 64x64x3 inputs"
    xs = x.reshape(n, 16, 4, 16, 4, 3).transpose(0, 1, 3, 2, 4, 5)
    xs = xs.reshape(n, 16, 16, 48)                       # space-to-depth by 4
    p = jnp.concatenate([xs[:, a:a + 15, b:b + 15, :]
                         for a in (0, 1) for b in (0, 1)], axis=-1)
    p = jnp.pad(p, ((0, 0), (0, 1), (0, 1), (0, 0)))     # (N,16,16,192)
    p = p.reshape(n, 8, 2, 8, 2, 192).transpose(0, 2, 4, 1, 3, 5)
    return p.reshape(n, 256, 192).astype(jnp.bfloat16)


def _pallas_forward(kp, patches):
    n = patches.shape[0]
    weight_bytes = sum(int(v.size) * v.dtype.itemsize for v in kp.values())
    cost = pl.CostEstimate(
        flops=n * 2 * (256 * 192 * 128 + 16 * 48 * 32 * 128
                       + 9 * 28 * 64 * 128 + 16 * 64 * 128 + 128 * 128),
        transcendentals=n * 129,
        bytes_accessed=int(patches.size) * 2 + weight_bytes + n * C_PAD * 4,
    )
    const2 = lambda i: (0, 0)
    const3 = lambda i: (0, 0, 0)
    out = pl.pallas_call(
        _actor_kernel,
        out_shape=jax.ShapeDtypeStruct((n, 1, C_PAD), jnp.float32),
        grid=(n,),
        in_specs=[
            pl.BlockSpec((1, 256, 192), lambda i: (i, 0, 0)),   # conv1 patches
            pl.BlockSpec((192, C_PAD), const2),                 # w1
            pl.BlockSpec((1, C_PAD), const2),                   # b1
            pl.BlockSpec((16, 32, C_PAD), const3),              # w2
            pl.BlockSpec((1, C_PAD), const2),                   # b2
            pl.BlockSpec((9, 64, C_PAD), const3),               # w3
            pl.BlockSpec((1, C_PAD), const2),                   # b3
            pl.BlockSpec((16, 64, C_PAD), const3),              # wfc
            pl.BlockSpec((1, C_PAD), const2),                   # bfc
            pl.BlockSpec((C_PAD, C_PAD), const2),               # wh
            pl.BlockSpec((1, C_PAD), const2),                   # bh
        ],
        out_specs=pl.BlockSpec((1, 1, C_PAD), lambda i: (i, 0, 0)),
        scratch_shapes=[pltpu.VMEM((256, C_PAD), jnp.float32)],
        compiler_params=pltpu.CompilerParams(
            dimension_semantics=("parallel",),
            vmem_limit_bytes=32 * 1024 * 1024,
        ),
        cost_estimate=cost,
    )(patches, kp["w1"], kp["b1"], kp["w2"], kp["b2"], kp["w3"], kp["b3"],
      kp["wfc"], kp["bfc"], kp["wh"], kp["bh"])
    return out[:, 0, :]


@functools.partial(jax.jit, static_argnames="action_dim")
def actor_forward(kparams, x, *, action_dim):
    probs_padded = _pallas_forward(kparams, _prep_input(x))
    return probs_padded[:, :action_dim]


# ------------------------- parameters & reference ---------------------------

def init_torch_params(key, action_dim):
    """Synthetic parameters in the PyTorch layouts of Actor.__init__ (OIHW
    convs, (out,in) linears); fc sized from the conv stack like _initialize_fc
    would for a 64x64 dummy input."""
    ks = jax.random.split(key, 9)

    def w(k, shape, fan_in):
        return jax.random.normal(k, shape, jnp.float32) / jnp.sqrt(fan_in)

    flat = 64 * 4 * 4     # conv stack output (C,H,W) = (64,4,4), NCHW flatten
    return {
        "conv1_w": w(ks[0], (32, 3, 8, 8), 3 * 8 * 8),
        "conv1_b": 0.01 * jax.random.normal(ks[1], (32,), jnp.float32),
        "conv2_w": w(ks[2], (64, 32, 4, 4), 32 * 4 * 4),
        "conv2_b": 0.01 * jax.random.normal(ks[3], (64,), jnp.float32),
        "conv3_w": w(ks[4], (64, 64, 3, 3), 64 * 3 * 3),
        "conv3_b": 0.01 * jax.random.normal(ks[5], (64,), jnp.float32),
        "fc_w": w(ks[6], (128, flat), flat),
        "fc_b": jnp.zeros((128,), jnp.float32),          # nn.init.zeros_
        "head_w": w(ks[7], (action_dim, 128), 128),
        "head_b": 0.01 * jax.random.normal(ks[8], (action_dim,), jnp.float32),
    }


def prep_kernel_params(tp):
    """PyTorch-layout weights -> kernel-ready matrices: bf16 matmul operands,
    f32 (1,128) bias rows, output dims zero-padded to 128 lanes (head pad
    lanes get bias -1e30 so softmax gives them probability 0)."""
    bf16 = jnp.bfloat16

    def pad_last(m):
        return jnp.pad(m, ((0, 0),) * (m.ndim - 1) + ((0, C_PAD - m.shape[-1]),))

    def bias_row(b, fill=0.0):
        return jnp.full((1, C_PAD), fill, jnp.float32).at[0, :b.shape[0]].set(b)

    # conv1: OIHW -> HWIO -> feature order (a, b, r, t, c), (di,dj)=(4a+r,4b+t)
    w1 = jnp.transpose(tp["conv1_w"], (2, 3, 1, 0))              # (8,8,3,32)
    w1 = w1.reshape(2, 4, 2, 4, 3, 32).transpose(0, 2, 1, 3, 4, 5)
    w1 = pad_last(w1.reshape(192, 32)).astype(bf16)              # (192,128)

    # conv2 / conv3: OIHW -> (kernel position, Cin, Cout_padded)
    w2 = jnp.transpose(tp["conv2_w"], (2, 3, 1, 0)).reshape(16, 32, 64)
    w3 = jnp.transpose(tp["conv3_w"], (2, 3, 1, 0)).reshape(9, 64, 64)

    # fc: torch (128, C*H*W) over the NCHW flatten -> one (64,128) block per
    # spatial position, position-major p = y*4 + x
    wfc = tp["fc_w"].reshape(128, 64, 4, 4).transpose(2, 3, 1, 0)
    wfc = wfc.reshape(16, 64, 128).astype(bf16)

    wh = pad_last(tp["head_w"].T).astype(bf16)                   # (128,128)

    return {
        "w1": w1, "b1": bias_row(tp["conv1_b"]),
        "w2": pad_last(w2).astype(bf16), "b2": bias_row(tp["conv2_b"]),
        "w3": pad_last(w3).astype(bf16), "b3": bias_row(tp["conv3_b"]),
        "wfc": wfc, "bfc": bias_row(tp["fc_b"]),
        "wh": wh, "bh": bias_row(tp["head_b"], fill=-1e30),
    }


def reference_forward(tp, x):
    """Independent pure-XLA reference implementing the PyTorch Actor.forward."""
    def conv(h, w_oihw, b, stride):
        y = lax.conv_general_dilated(
            h, jnp.transpose(w_oihw, (2, 3, 1, 0)), (stride, stride), "VALID",
            dimension_numbers=("NHWC", "HWIO", "NHWC"))
        return jnp.maximum(y + b, 0.0)

    h = conv(x, tp["conv1_w"], tp["conv1_b"], 4)
    h = conv(h, tp["conv2_w"], tp["conv2_b"], 2)
    h = conv(h, tp["conv3_w"], tp["conv3_b"], 1)
    h = jnp.transpose(h, (0, 3, 1, 2)).reshape(h.shape[0], -1)   # NCHW flatten
    h = jnp.maximum(h @ tp["fc_w"].T + tp["fc_b"], 0.0)
    logits = h @ tp["head_w"].T + tp["head_b"]
    return jax.nn.softmax(logits, axis=-1)


if __name__ == "__main__":
    batch, H, W, action_dim = 2, 64, 64, 6
    key = jax.random.PRNGKey(0)
    k_x, k_p = jax.random.split(key)
    x = jax.random.normal(k_x, (batch, H, W, 3), jnp.float32)

    torch_params = init_torch_params(k_p, action_dim)
    kparams = prep_kernel_params(torch_params)

    probs = actor_forward(kparams, x, action_dim=action_dim)
    probs = jax.block_until_ready(probs)
    assert probs.shape == (batch, action_dim), probs.shape

    ref = reference_forward(torch_params, x)
    err = float(jnp.max(jnp.abs(probs - ref)))
    assert err < 3e-2, f"max |probs - ref| = {err}"
    assert jnp.allclose(jnp.sum(probs, axis=-1), 1.0, atol=1e-2)

    print("KERNEL_OK")
</pallas_src>

<mosaic_0001>
module attributes {stable_mosaic.version = 11 : i64} {
  func.func @_actor_kernel(%arg0: i32, %arg1: memref<1x256x192xbf16, #tpu.memory_space<vmem>>, %arg2: memref<192x128xbf16, #tpu.memory_space<vmem>>, %arg3: memref<1x128xf32, #tpu.memory_space<vmem>>, %arg4: memref<16x32x128xbf16, #tpu.memory_space<vmem>>, %arg5: memref<1x128xf32, #tpu.memory_space<vmem>>, %arg6: memref<9x64x128xbf16, #tpu.memory_space<vmem>>, %arg7: memref<1x128xf32, #tpu.memory_space<vmem>>, %arg8: memref<16x64x128xbf16, #tpu.memory_space<vmem>>, %arg9: memref<1x128xf32, #tpu.memory_space<vmem>>, %arg10: memref<128x128xbf16, #tpu.memory_space<vmem>>, %arg11: memref<1x128xf32, #tpu.memory_space<vmem>>, %arg12: memref<1x1x128xf32, #tpu.memory_space<vmem>>, %arg13: memref<256x128xf32, #tpu.memory_space<vmem>>) attributes {dimension_semantics = [#tpu.dimension_semantics<parallel>], iteration_bounds = array<i64: 2>, scalar_prefetch = 0 : i64, scratch_operands = 1 : i64, tpu.core_type = #tpu.core_type<tc>, window_params = [{transform_indices = @transform_0, window_bounds = array<i64: 1, 256, 192>}, {pipeline_mode = #tpu.pipeline_mode<synchronous>, transform_indices = @transform_1, window_bounds = array<i64: 192, 128>}, {pipeline_mode = #tpu.pipeline_mode<synchronous>, transform_indices = @transform_2, window_bounds = array<i64: 1, 128>}, {pipeline_mode = #tpu.pipeline_mode<synchronous>, transform_indices = @transform_3, window_bounds = array<i64: 16, 32, 128>}, {pipeline_mode = #tpu.pipeline_mode<synchronous>, transform_indices = @transform_4, window_bounds = array<i64: 1, 128>}, {pipeline_mode = #tpu.pipeline_mode<synchronous>, transform_indices = @transform_5, window_bounds = array<i64: 9, 64, 128>}, {pipeline_mode = #tpu.pipeline_mode<synchronous>, transform_indices = @transform_6, window_bounds = array<i64: 1, 128>}, {pipeline_mode = #tpu.pipeline_mode<synchronous>, transform_indices = @transform_7, window_bounds = array<i64: 16, 64, 128>}, {pipeline_mode = #tpu.pipeline_mode<synchronous>, transform_indices = @transform_8, window_bounds = array<i64: 1, 128>}, {pipeline_mode = #tpu.pipeline_mode<synchronous>, transform_indices = @transform_9, window_bounds = array<i64: 128, 128>}, {pipeline_mode = #tpu.pipeline_mode<synchronous>, transform_indices = @transform_10, window_bounds = array<i64: 1, 128>}, {transform_indices = @transform_11, window_bounds = array<i64: 1, 1, 128>}]} {
    %c0 = arith.constant 0 : index
    %c0_0 = arith.constant 0 : index
    %c0_1 = arith.constant 0 : index
    %0 = vector.load %arg1[%c0, %c0_0, %c0_1] : memref<1x256x192xbf16, #tpu.memory_space<vmem>>, vector<1x256x192xbf16>
    %1 = vector.shape_cast %0 : vector<1x256x192xbf16> to vector<256x192xbf16>
    %c0_2 = arith.constant 0 : index
    %c0_3 = arith.constant 0 : index
    %2 = vector.load %arg2[%c0_2, %c0_3] : memref<192x128xbf16, #tpu.memory_space<vmem>>, vector<192x128xbf16>
    %cst = arith.constant dense<0.000000e+00> : vector<256x128xf32>
    %3 = tpu.matmul %1, %2, %cst {dimension_numbers = #tpu.dot_dimension_numbers<[1], [0], [0], [1], [0, 0, 1, 1], [], []>} : vector<256x192xbf16>, vector<192x128xbf16>, vector<256x128xf32> -> vector<256x128xf32>
    %c0_4 = arith.constant 0 : index
    %c0_5 = arith.constant 0 : index
    %4 = vector.load %arg3[%c0_4, %c0_5] : memref<1x128xf32, #tpu.memory_space<vmem>>, vector<1x128xf32>
    %5 = vector.broadcast %4 : vector<1x128xf32> to vector<256x128xf32>
    %6 = arith.addf %3, %5 : vector<256x128xf32>
    %cst_6 = arith.constant 0.000000e+00 : f32
    %7 = vector.broadcast %cst_6 : f32 to vector<256x128xf32>
    %8 = arith.maximumf %6, %7 : vector<256x128xf32>
    %c0_7 = arith.constant 0 : index
    %c0_8 = arith.constant 0 : index
    %9 = vector.load %arg13[%c0_7, %c0_8] : memref<256x128xf32, #tpu.memory_space<vmem>>, vector<256x128xf32>
    tpu.vector_store %arg13[%c0_7, %c0_8], %8 {strides = array<i32>} : memref<256x128xf32, #tpu.memory_space<vmem>>, vector<256x128xf32>,
    %cst_9 = arith.constant 0.000000e+00 : f32
    %10 = vector.broadcast %cst_9 : f32 to vector<48x128xf32>
    %c0_10 = arith.constant 0 : index
    %c0_11 = arith.constant 0 : index
    %11 = vector.load %arg13[%c0_10, %c0_11] : memref<256x128xf32, #tpu.memory_space<vmem>>, vector<48x32xf32>
    %12 = arith.truncf %11 : vector<48x32xf32> to vector<48x32xbf16>
    %c0_12 = arith.constant 0 : index
    %c0_13 = arith.constant 0 : index
    %c0_14 = arith.constant 0 : index
    %13 = vector.load %arg4[%c0_12, %c0_13, %c0_14] : memref<16x32x128xbf16, #tpu.memory_space<vmem>>, vector<1x32x128xbf16>
    %14 = vector.shape_cast %13 : vector<1x32x128xbf16> to vector<32x128xbf16>
    %cst_15 = arith.constant dense<0.000000e+00> : vector<48x128xf32>
    %15 = tpu.matmul %12, %14, %cst_15 {dimension_numbers = #tpu.dot_dimension_numbers<[1], [0], [0], [1], [0, 0, 1, 1], [], []>} : vector<48x32xbf16>, vector<32x128xbf16>, vector<48x128xf32> -> vector<48x128xf32>
    %16 = arith.addf %10, %15 : vector<48x128xf32>
    %c64 = arith.constant 64 : index
    %c0_16 = arith.constant 0 : index
    %17 = vector.load %arg13[%c64, %c0_16] : memref<256x128xf32, #tpu.memory_space<vmem>>, vector<48x32xf32>
    %18 = arith.truncf %17 : vector<48x32xf32> to vector<48x32xbf16>
    %c1 = arith.constant 1 : index
    %c0_17 = arith.constant 0 : index
    %c0_18 = arith.constant 0 : index
    %19 = vector.load %arg4[%c1, %c0_17, %c0_18] : memref<16x32x128xbf16, #tpu.memory_space<vmem>>, vector<1x32x128xbf16>
    %20 = vector.shape_cast %19 : vector<1x32x128xbf16> to vector<32x128xbf16>
    %cst_19 = arith.constant dense<0.000000e+00> : vector<48x128xf32>
    %21 = tpu.matmul %18, %20, %cst_19 {dimension_numbers = #tpu.dot_dimension_numbers<[1], [0], [0], [1], [0, 0, 1, 1], [], []>} : vector<48x32xbf16>, vector<32x128xbf16>, vector<48x128xf32> -> vector<48x128xf32>
    %22 = arith.addf %16, %21 : vector<48x128xf32>
    %c1_20 = arith.constant 1 : index
    %c0_21 = arith.constant 0 : index
    %23 = vector.load %arg13[%c1_20, %c0_21] : memref<256x128xf32, #tpu.memory_space<vmem>>, vector<48x32xf32>
    %24 = arith.truncf %23 : vector<48x32xf32> to vector<48x32xbf16>
    %c2 = arith.constant 2 : index
    %c0_22 = arith.constant 0 : index
    %c0_23 = arith.constant 0 : index
    %25 = vector.load %arg4[%c2, %c0_22, %c0_23] : memref<16x32x128xbf16, #tpu.memory_space<vmem>>, vector<1x32x128xbf16>
    %26 = vector.shape_cast %25 : vector<1x32x128xbf16> to vector<32x128xbf16>
    %cst_24 = arith.constant dense<0.000000e+00> : vector<48x128xf32>
    %27 = tpu.matmul %24, %26, %cst_24 {dimension_numbers = #tpu.dot_dimension_numbers<[1], [0], [0], [1], [0, 0, 1, 1], [], []>} : vector<48x32xbf16>, vector<32x128xbf16>, vector<48x128xf32> -> vector<48x128xf32>
    %28 = arith.addf %22, %27 : vector<48x128xf32>
    %c65 = arith.constant 65 : index
    %c0_25 = arith.constant 0 : index
    %29 = vector.load %arg13[%c65, %c0_25] : memref<256x128xf32, #tpu.memory_space<vmem>>, vector<48x32xf32>
    %30 = arith.truncf %29 : vector<48x32xf32> to vector<48x32xbf16>
    %c3 = arith.constant 3 : index
    %c0_26 = arith.constant 0 : index
    %c0_27 = arith.constant 0 : index
    %31 = vector.load %arg4[%c3, %c0_26, %c0_27] : memref<16x32x128xbf16, #tpu.memory_space<vmem>>, vector<1x32x128xbf16>
    %32 = vector.shape_cast %31 : vector<1x32x128xbf16> to vector<32x128xbf16>
    %cst_28 = arith.constant dense<0.000000e+00> : vector<48x128xf32>
    %33 = tpu.matmul %30, %32, %cst_28 {dimension_numbers = #tpu.dot_dimension_numbers<[1], [0], [0], [1], [0, 0, 1, 1], [], []>} : vector<48x32xbf16>, vector<32x128xbf16>, vector<48x128xf32> -> vector<48x128xf32>
    %34 = arith.addf %28, %33 : vector<48x128xf32>
    %c128 = arith.constant 128 : index
    %c0_29 = arith.constant 0 : index
    %35 = vector.load %arg13[%c128, %c0_29] : memref<256x128xf32, #tpu.memory_space<vmem>>, vector<48x32xf32>
    %36 = arith.truncf %35 : vector<48x32xf32> to vector<48x32xbf16>
    %c4 = arith.constant 4 : index
    %c0_30 = arith.constant 0 : index
    %c0_31 = arith.constant 0 : index
    %37 = vector.load %arg4[%c4, %c0_30, %c0_31] : memref<16x32x128xbf16, #tpu.memory_space<vmem>>, vector<1x32x128xbf16>
    %38 = vector.shape_cast %37 : vector<1x32x128xbf16> to vector<32x128xbf16>
    %cst_32 = arith.constant dense<0.000000e+00> : vector<48x128xf32>
    %39 = tpu.matmul %36, %38, %cst_32 {dimension_numbers = #tpu.dot_dimension_numbers<[1], [0], [0], [1], [0, 0, 1, 1], [], []>} : vector<48x32xbf16>, vector<32x128xbf16>, vector<48x128xf32> -> vector<48x128xf32>
    %40 = arith.addf %34, %39 : vector<48x128xf32>
    %c192 = arith.constant 192 : index
    %c0_33 = arith.constant 0 : index
    %41 = vector.load %arg13[%c192, %c0_33] : memref<256x128xf32, #tpu.memory_space<vmem>>, vector<48x32xf32>
    %42 = arith.truncf %41 : vector<48x32xf32> to vector<48x32xbf16>
    %c5 = arith.constant 5 : index
    %c0_34 = arith.constant 0 : index
    %c0_35 = arith.constant 0 : index
    %43 = vector.load %arg4[%c5, %c0_34, %c0_35] : memref<16x32x128xbf16, #tpu.memory_space<vmem>>, vector<1x32x128xbf16>
    %44 = vector.shape_cast %43 : vector<1x32x128xbf16> to vector<32x128xbf16>
    %cst_36 = arith.constant dense<0.000000e+00> : vector<48x128xf32>
    %45 = tpu.matmul %42, %44, %cst_36 {dimension_numbers = #tpu.dot_dimension_numbers<[1], [0], [0], [1], [0, 0, 1, 1], [], []>} : vector<48x32xbf16>, vector<32x128xbf16>, vector<48x128xf32> -> vector<48x128xf32>
    %46 = arith.addf %40, %45 : vector<48x128xf32>
    %c129 = arith.constant 129 : index
    %c0_37 = arith.constant 0 : index
    %47 = vector.load %arg13[%c129, %c0_37] : memref<256x128xf32, #tpu.memory_space<vmem>>, vector<48x32xf32>
    %48 = arith.truncf %47 : vector<48x32xf32> to vector<48x32xbf16>
    %c6 = arith.constant 6 : index
    %c0_38 = arith.constant 0 : index
    %c0_39 = arith.constant 0 : index
    %49 = vector.load %arg4[%c6, %c0_38, %c0_39] : memref<16x32x128xbf16, #tpu.memory_space<vmem>>, vector<1x32x128xbf16>
    %50 = vector.shape_cast %49 : vector<1x32x128xbf16> to vector<32x128xbf16>
    %cst_40 = arith.constant dense<0.000000e+00> : vector<48x128xf32>
    %51 = tpu.matmul %48, %50, %cst_40 {dimension_numbers = #tpu.dot_dimension_numbers<[1], [0], [0], [1], [0, 0, 1, 1], [], []>} : vector<48x32xbf16>, vector<32x128xbf16>, vector<48x128xf32> -> vector<48x128xf32>
    %52 = arith.addf %46, %51 : vector<48x128xf32>
    %c193 = arith.constant 193 : index
    %c0_41 = arith.constant 0 : index
    %53 = vector.load %arg13[%c193, %c0_41] : memref<256x128xf32, #tpu.memory_space<vmem>>, vector<48x32xf32>
    %54 = arith.truncf %53 : vector<48x32xf32> to vector<48x32xbf16>
    %c7 = arith.constant 7 : index
    %c0_42 = arith.constant 0 : index
    %c0_43 = arith.constant 0 : index
    %55 = vector.load %arg4[%c7, %c0_42, %c0_43] : memref<16x32x128xbf16, #tpu.memory_space<vmem>>, vector<1x32x128xbf16>
    %56 = vector.shape_cast %55 : vector<1x32x128xbf16> to vector<32x128xbf16>
    %cst_44 = arith.constant dense<0.000000e+00> : vector<48x128xf32>
    %57 = tpu.matmul %54, %56, %cst_44 {dimension_numbers = #tpu.dot_dimension_numbers<[1], [0], [0], [1], [0, 0, 1, 1], [], []>} : vector<48x32xbf16>, vector<32x128xbf16>, vector<48x128xf32> -> vector<48x128xf32>
    %58 = arith.addf %52, %57 : vector<48x128xf32>
    %c8 = arith.constant 8 : index
    %c0_45 = arith.constant 0 : index
    %59 = vector.load %arg13[%c8, %c0_45] : memref<256x128xf32, #tpu.memory_space<vmem>>, vector<48x32xf32>
    %60 = arith.truncf %59 : vector<48x32xf32> to vector<48x32xbf16>
    %c8_46 = arith.constant 8 : index
    %c0_47 = arith.constant 0 : index
    %c0_48 = arith.constant 0 : index
    %61 = vector.load %arg4[%c8_46, %c0_47, %c0_48] : memref<16x32x128xbf16, #tpu.memory_space<vmem>>, vector<1x32x128xbf16>
    %62 = vector.shape_cast %61 : vector<1x32x128xbf16> to vector<32x128xbf16>
    %cst_49 = arith.constant dense<0.000000e+00> : vector<48x128xf32>
    %63 = tpu.matmul %60, %62, %cst_49 {dimension_numbers = #tpu.dot_dimension_numbers<[1], [0], [0], [1], [0, 0, 1, 1], [], []>} : vector<48x32xbf16>, vector<32x128xbf16>, vector<48x128xf32> -> vector<48x128xf32>
    %64 = arith.addf %58, %63 : vector<48x128xf32>
    %c72 = arith.constant 72 : index
    %c0_50 = arith.constant 0 : index
    %65 = vector.load %arg13[%c72, %c0_50] : memref<256x128xf32, #tpu.memory_space<vmem>>, vector<48x32xf32>
    %66 = arith.truncf %65 : vector<48x32xf32> to vector<48x32xbf16>
    %c9 = arith.constant 9 : index
    %c0_51 = arith.constant 0 : index
    %c0_52 = arith.constant 0 : index
    %67 = vector.load %arg4[%c9, %c0_51, %c0_52] : memref<16x32x128xbf16, #tpu.memory_space<vmem>>, vector<1x32x128xbf16>
    %68 = vector.shape_cast %67 : vector<1x32x128xbf16> to vector<32x128xbf16>
    %cst_53 = arith.constant dense<0.000000e+00> : vector<48x128xf32>
    %69 = tpu.matmul %66, %68, %cst_53 {dimension_numbers = #tpu.dot_dimension_numbers<[1], [0], [0], [1], [0, 0, 1, 1], [], []>} : vector<48x32xbf16>, vector<32x128xbf16>, vector<48x128xf32> -> vector<48x128xf32>
    %70 = arith.addf %64, %69 : vector<48x128xf32>
    %c9_54 = arith.constant 9 : index
    %c0_55 = arith.constant 0 : index
    %71 = vector.load %arg13[%c9_54, %c0_55] : memref<256x128xf32, #tpu.memory_space<vmem>>, vector<48x32xf32>
    %72 = arith.truncf %71 : vector<48x32xf32> to vector<48x32xbf16>
    %c10 = arith.constant 10 : index
    %c0_56 = arith.constant 0 : index
    %c0_57 = arith.constant 0 : index
    %73 = vector.load %arg4[%c10, %c0_56, %c0_57] : memref<16x32x128xbf16, #tpu.memory_space<vmem>>, vector<1x32x128xbf16>
    %74 = vector.shape_cast %73 : vector<1x32x128xbf16> to vector<32x128xbf16>
    %cst_58 = arith.constant dense<0.000000e+00> : vector<48x128xf32>
    %75 = tpu.matmul %72, %74, %cst_58 {dimension_numbers = #tpu.dot_dimension_numbers<[1], [0], [0], [1], [0, 0, 1, 1], [], []>} : vector<48x32xbf16>, vector<32x128xbf16>, vector<48x128xf32> -> vector<48x128xf32>
    %76 = arith.addf %70, %75 : vector<48x128xf32>
    %c73 = arith.constant 73 : index
    %c0_59 = arith.constant 0 : index
    %77 = vector.load %arg13[%c73, %c0_59] : memref<256x128xf32, #tpu.memory_space<vmem>>, vector<48x32xf32>
    %78 = arith.truncf %77 : vector<48x32xf32> to vector<48x32xbf16>
    %c11 = arith.constant 11 : index
    %c0_60 = arith.constant 0 : index
    %c0_61 = arith.constant 0 : index
    %79 = vector.load %arg4[%c11, %c0_60, %c0_61] : memref<16x32x128xbf16, #tpu.memory_space<vmem>>, vector<1x32x128xbf16>
    %80 = vector.shape_cast %79 : vector<1x32x128xbf16> to vector<32x128xbf16>
    %cst_62 = arith.constant dense<0.000000e+00> : vector<48x128xf32>
    %81 = tpu.matmul %78, %80, %cst_62 {dimension_numbers = #tpu.dot_dimension_numbers<[1], [0], [0], [1], [0, 0, 1, 1], [], []>} : vector<48x32xbf16>, vector<32x128xbf16>, vector<48x128xf32> -> vector<48x128xf32>
    %82 = arith.addf %76, %81 : vector<48x128xf32>
    %c136 = arith.constant 136 : index
    %c0_63 = arith.constant 0 : index
    %83 = vector.load %arg13[%c136, %c0_63] : memref<256x128xf32, #tpu.memory_space<vmem>>, vector<48x32xf32>
    %84 = arith.truncf %83 : vector<48x32xf32> to vector<48x32xbf16>
    %c12 = arith.constant 12 : index
    %c0_64 = arith.constant 0 : index
    %c0_65 = arith.constant 0 : index
    %85 = vector.load %arg4[%c12, %c0_64, %c0_65] : memref<16x32x128xbf16, #tpu.memory_space<vmem>>, vector<1x32x128xbf16>
    %86 = vector.shape_cast %85 : vector<1x32x128xbf16> to vector<32x128xbf16>
    %cst_66 = arith.constant dense<0.000000e+00> : vector<48x128xf32>
    %87 = tpu.matmul %84, %86, %cst_66 {dimension_numbers = #tpu.dot_dimension_numbers<[1], [0], [0], [1], [0, 0, 1, 1], [], []>} : vector<48x32xbf16>, vector<32x128xbf16>, vector<48x128xf32> -> vector<48x128xf32>
    %88 = arith.addf %82, %87 : vector<48x128xf32>
    %c200 = arith.constant 200 : index
    %c0_67 = arith.constant 0 : index
    %89 = vector.load %arg13[%c200, %c0_67] : memref<256x128xf32, #tpu.memory_space<vmem>>, vector<48x32xf32>
    %90 = arith.truncf %89 : vector<48x32xf32> to vector<48x32xbf16>
    %c13 = arith.constant 13 : index
    %c0_68 = arith.constant 0 : index
    %c0_69 = arith.constant 0 : index
    %91 = vector.load %arg4[%c13, %c0_68, %c0_69] : memref<16x32x128xbf16, #tpu.memory_space<vmem>>, vector<1x32x128xbf16>
    %92 = vector.shape_cast %91 : vector<1x32x128xbf16> to vector<32x128xbf16>
    %cst_70 = arith.constant dense<0.000000e+00> : vector<48x128xf32>
    %93 = tpu.matmul %90, %92, %cst_70 {dimension_numbers = #tpu.dot_dimension_numbers<[1], [0], [0], [1], [0, 0, 1, 1], [], []>} : vector<48x32xbf16>, vector<32x128xbf16>, vector<48x128xf32> -> vector<48x128xf32>
    %94 = arith.addf %88, %93 : vector<48x128xf32>
    %c137 = arith.constant 137 : index
    %c0_71 = arith.constant 0 : index
    %95 = vector.load %arg13[%c137, %c0_71] : memref<256x128xf32, #tpu.memory_space<vmem>>, vector<48x32xf32>
    %96 = arith.truncf %95 : vector<48x32xf32> to vector<48x32xbf16>
    %c14 = arith.constant 14 : index
    %c0_72 = arith.constant 0 : index
    %c0_73 = arith.constant 0 : index
    %97 = vector.load %arg4[%c14, %c0_72, %c0_73] : memref<16x32x128xbf16, #tpu.memory_space<vmem>>, vector<1x32x128xbf16>
    %98 = vector.shape_cast %97 : vector<1x32x128xbf16> to vector<32x128xbf16>
    %cst_74 = arith.constant dense<0.000000e+00> : vector<48x128xf32>
    %99 = tpu.matmul %96, %98, %cst_74 {dimension_numbers = #tpu.dot_dimension_numbers<[1], [0], [0], [1], [0, 0, 1, 1], [], []>} : vector<48x32xbf16>, vector<32x128xbf16>, vector<48x128xf32> -> vector<48x128xf32>
    %100 = arith.addf %94, %99 : vector<48x128xf32>
    %c201 = arith.constant 201 : index
    %c0_75 = arith.constant 0 : index
    %101 = vector.load %arg13[%c201, %c0_75] : memref<256x128xf32, #tpu.memory_space<vmem>>, vector<48x32xf32>
    %102 = arith.truncf %101 : vector<48x32xf32> to vector<48x32xbf16>
    %c15 = arith.constant 15 : index
    %c0_76 = arith.constant 0 : index
    %c0_77 = arith.constant 0 : index
    %103 = vector.load %arg4[%c15, %c0_76, %c0_77] : memref<16x32x128xbf16, #tpu.memory_space<vmem>>, vector<1x32x128xbf16>
    %104 = vector.shape_cast %103 : vector<1x32x128xbf16> to vector<32x128xbf16>
    %cst_78 = arith.constant dense<0.000000e+00> : vector<48x128xf32>
    %105 = tpu.matmul %102, %104, %cst_78 {dimension_numbers = #tpu.dot_dimension_numbers<[1], [0], [0], [1], [0, 0, 1, 1], [], []>} : vector<48x32xbf16>, vector<32x128xbf16>, vector<48x128xf32> -> vector<48x128xf32>
    %106 = arith.addf %100, %105 : vector<48x128xf32>
    %c0_79 = arith.constant 0 : index
    %c0_80 = arith.constant 0 : index
    %107 = vector.load %arg5[%c0_79, %c0_80] : memref<1x128xf32, #tpu.memory_space<vmem>>, vector<1x128xf32>
    %108 = vector.broadcast %107 : vector<1x128xf32> to vector<48x128xf32>
    %109 = arith.addf %106, %108 : vector<48x128xf32>
    %cst_81 = arith.constant 0.000000e+00 : f32
    %110 = vector.broadcast %cst_81 : f32 to vector<48x128xf32>
    %111 = arith.maximumf %109, %110 : vector<48x128xf32>
    %cst_82 = arith.constant 0.000000e+00 : f32
    %112 = vector.broadcast %cst_82 : f32 to vector<28x128xf32>
    %113 = vector.extract_strided_slice %111 {offsets = [0, 0], sizes = [28, 64], strides = [1, 1]} : vector<48x128xf32> to vector<28x64xf32>
    %114 = arith.truncf %113 : vector<28x64xf32> to vector<28x64xbf16>
    %c0_83 = arith.constant 0 : index
    %c0_84 = arith.constant 0 : index
    %c0_85 = arith.constant 0 : index
    %115 = vector.load %arg6[%c0_83, %c0_84, %c0_85] : memref<9x64x128xbf16, #tpu.memory_space<vmem>>, vector<1x64x128xbf16>
    %116 = vector.shape_cast %115 : vector<1x64x128xbf16> to vector<64x128xbf16>
    %cst_86 = arith.constant dense<0.000000e+00> : vector<28x128xf32>
    %117 = tpu.matmul %114, %116, %cst_86 {dimension_numbers = #tpu.dot_dimension_numbers<[1], [0], [0], [1], [0, 0, 1, 1], [], []>} : vector<28x64xbf16>, vector<64x128xbf16>, vector<28x128xf32> -> vector<28x128xf32>
    %118 = arith.addf %112, %117 : vector<28x128xf32>
    %119 = vector.extract_strided_slice %111 {offsets = [1, 0], sizes = [28, 64], strides = [1, 1]} : vector<48x128xf32> to vector<28x64xf32>
    %120 = arith.truncf %119 : vector<28x64xf32> to vector<28x64xbf16>
    %c1_87 = arith.constant 1 : index
    %c0_88 = arith.constant 0 : index
    %c0_89 = arith.constant 0 : index
    %121 = vector.load %arg6[%c1_87, %c0_88, %c0_89] : memref<9x64x128xbf16, #tpu.memory_space<vmem>>, vector<1x64x128xbf16>
    %122 = vector.shape_cast %121 : vector<1x64x128xbf16> to vector<64x128xbf16>
    %cst_90 = arith.constant dense<0.000000e+00> : vector<28x128xf32>
    %123 = tpu.matmul %120, %122, %cst_90 {dimension_numbers = #tpu.dot_dimension_numbers<[1], [0], [0], [1], [0, 0, 1, 1], [], []>} : vector<28x64xbf16>, vector<64x128xbf16>, vector<28x128xf32> -> vector<28x128xf32>
    %124 = arith.addf %118, %123 : vector<28x128xf32>
    %125 = vector.extract_strided_slice %111 {offsets = [2, 0], sizes = [28, 64], strides = [1, 1]} : vector<48x128xf32> to vector<28x64xf32>
    %126 = arith.truncf %125 : vector<28x64xf32> to vector<28x64xbf16>
    %c2_91 = arith.constant 2 : index
    %c0_92 = arith.constant 0 : index
    %c0_93 = arith.constant 0 : index
    %127 = vector.load %arg6[%c2_91, %c0_92, %c0_93] : memref<9x64x128xbf16, #tpu.memory_space<vmem>>, vector<1x64x128xbf16>
    %128 = vector.shape_cast %127 : vector<1x64x128xbf16> to vector<64x128xbf16>
    %cst_94 = arith.constant dense<0.000000e+00> : vector<28x128xf32>
    %129 = tpu.matmul %126, %128, %cst_94 {dimension_numbers = #tpu.dot_dimension_numbers<[1], [0], [0], [1], [0, 0, 1, 1], [], []>} : vector<28x64xbf16>, vector<64x128xbf16>, vector<28x128xf32> -> vector<28x128xf32>
    %130 = arith.addf %124, %129 : vector<28x128xf32>
    %131 = vector.extract_strided_slice %111 {offsets = [8, 0], sizes = [28, 64], strides = [1, 1]} : vector<48x128xf32> to vector<28x64xf32>
    %132 = arith.truncf %131 : vector<28x64xf32> to vector<28x64xbf16>
    %c3_95 = arith.constant 3 : index
    %c0_96 = arith.constant 0 : index
    %c0_97 = arith.constant 0 : index
    %133 = vector.load %arg6[%c3_95, %c0_96, %c0_97] : memref<9x64x128xbf16, #tpu.memory_space<vmem>>, vector<1x64x128xbf16>
    %134 = vector.shape_cast %133 : vector<1x64x128xbf16> to vector<64x128xbf16>
    %cst_98 = arith.constant dense<0.000000e+00> : vector<28x128xf32>
    %135 = tpu.matmul %132, %134, %cst_98 {dimension_numbers = #tpu.dot_dimension_numbers<[1], [0], [0], [1], [0, 0, 1, 1], [], []>} : vector<28x64xbf16>, vector<64x128xbf16>, vector<28x128xf32> -> vector<28x128xf32>
    %136 = arith.addf %130, %135 : vector<28x128xf32>
    %137 = vector.extract_strided_slice %111 {offsets = [9, 0], sizes = [28, 64], strides = [1, 1]} : vector<48x128xf32> to vector<28x64xf32>
    %138 = arith.truncf %137 : vector<28x64xf32> to vector<28x64xbf16>
    %c4_99 = arith.constant 4 : index
    %c0_100 = arith.constant 0 : index
    %c0_101 = arith.constant 0 : index
    %139 = vector.load %arg6[%c4_99, %c0_100, %c0_101] : memref<9x64x128xbf16, #tpu.memory_space<vmem>>, vector<1x64x128xbf16>
    %140 = vector.shape_cast %139 : vector<1x64x128xbf16> to vector<64x128xbf16>
    %cst_102 = arith.constant dense<0.000000e+00> : vector<28x128xf32>
    %141 = tpu.matmul %138, %140, %cst_102 {dimension_numbers = #tpu.dot_dimension_numbers<[1], [0], [0], [1], [0, 0, 1, 1], [], []>} : vector<28x64xbf16>, vector<64x128xbf16>, vector<28x128xf32> -> vector<28x128xf32>
    %142 = arith.addf %136, %141 : vector<28x128xf32>
    %143 = vector.extract_strided_slice %111 {offsets = [10, 0], sizes = [28, 64], strides = [1, 1]} : vector<48x128xf32> to vector<28x64xf32>
    %144 = arith.truncf %143 : vector<28x64xf32> to vector<28x64xbf16>
    %c5_103 = arith.constant 5 : index
    %c0_104 = arith.constant 0 : index
    %c0_105 = arith.constant 0 : index
    %145 = vector.load %arg6[%c5_103, %c0_104, %c0_105] : memref<9x64x128xbf16, #tpu.memory_space<vmem>>, vector<1x64x128xbf16>
    %146 = vector.shape_cast %145 : vector<1x64x128xbf16> to vector<64x128xbf16>
    %cst_106 = arith.constant dense<0.000000e+00> : vector<28x128xf32>
    %147 = tpu.matmul %144, %146, %cst_106 {dimension_numbers = #tpu.dot_dimension_numbers<[1], [0], [0], [1], [0, 0, 1, 1], [], []>} : vector<28x64xbf16>, vector<64x128xbf16>, vector<28x128xf32> -> vector<28x128xf32>
    %148 = arith.addf %142, %147 : vector<28x128xf32>
    %149 = vector.extract_strided_slice %111 {offsets = [16, 0], sizes = [28, 64], strides = [1, 1]} : vector<48x128xf32> to vector<28x64xf32>
    %150 = arith.truncf %149 : vector<28x64xf32> to vector<28x64xbf16>
    %c6_107 = arith.constant 6 : index
    %c0_108 = arith.constant 0 : index
    %c0_109 = arith.constant 0 : index
    %151 = vector.load %arg6[%c6_107, %c0_108, %c0_109] : memref<9x64x128xbf16, #tpu.memory_space<vmem>>, vector<1x64x128xbf16>
    %152 = vector.shape_cast %151 : vector<1x64x128xbf16> to vector<64x128xbf16>
    %cst_110 = arith.constant dense<0.000000e+00> : vector<28x128xf32>
    %153 = tpu.matmul %150, %152, %cst_110 {dimension_numbers = #tpu.dot_dimension_numbers<[1], [0], [0], [1], [0, 0, 1, 1], [], []>} : vector<28x64xbf16>, vector<64x128xbf16>, vector<28x128xf32> -> vector<28x128xf32>
    %154 = arith.addf %148, %153 : vector<28x128xf32>
    %155 = vector.extract_strided_slice %111 {offsets = [17, 0], sizes = [28, 64], strides = [1, 1]} : vector<48x128xf32> to vector<28x64xf32>
    %156 = arith.truncf %155 : vector<28x64xf32> to vector<28x64xbf16>
    %c7_111 = arith.constant 7 : index
    %c0_112 = arith.constant 0 : index
    %c0_113 = arith.constant 0 : index
    %157 = vector.load %arg6[%c7_111, %c0_112, %c0_113] : memref<9x64x128xbf16, #tpu.memory_space<vmem>>, vector<1x64x128xbf16>
    %158 = vector.shape_cast %157 : vector<1x64x128xbf16> to vector<64x128xbf16>
    %cst_114 = arith.constant dense<0.000000e+00> : vector<28x128xf32>
    %159 = tpu.matmul %156, %158, %cst_114 {dimension_numbers = #tpu.dot_dimension_numbers<[1], [0], [0], [1], [0, 0, 1, 1], [], []>} : vector<28x64xbf16>, vector<64x128xbf16>, vector<28x128xf32> -> vector<28x128xf32>
    %160 = arith.addf %154, %159 : vector<28x128xf32>
    %161 = vector.extract_strided_slice %111 {offsets = [18, 0], sizes = [28, 64], strides = [1, 1]} : vector<48x128xf32> to vector<28x64xf32>
    %162 = arith.truncf %161 : vector<28x64xf32> to vector<28x64xbf16>
    %c8_115 = arith.constant 8 : index
    %c0_116 = arith.constant 0 : index
    %c0_117 = arith.constant 0 : index
    %163 = vector.load %arg6[%c8_115, %c0_116, %c0_117] : memref<9x64x128xbf16, #tpu.memory_space<vmem>>, vector<1x64x128xbf16>
    %164 = vector.shape_cast %163 : vector<1x64x128xbf16> to vector<64x128xbf16>
    %cst_118 = arith.constant dense<0.000000e+00> : vector<28x128xf32>
    %165 = tpu.matmul %162, %164, %cst_118 {dimension_numbers = #tpu.dot_dimension_numbers<[1], [0], [0], [1], [0, 0, 1, 1], [], []>} : vector<28x64xbf16>, vector<64x128xbf16>, vector<28x128xf32> -> vector<28x128xf32>
    %166 = arith.addf %160, %165 : vector<28x128xf32>
    %c0_119 = arith.constant 0 : index
    %c0_120 = arith.constant 0 : index
    %167 = vector.load %arg7[%c0_119, %c0_120] : memref<1x128xf32, #tpu.memory_space<vmem>>, vector<1x128xf32>
    %168 = vector.broadcast %167 : vector<1x128xf32> to vector<28x128xf32>
    %169 = arith.addf %166, %168 : vector<28x128xf32>
    %cst_121 = arith.constant 0.000000e+00 : f32
    %170 = vector.broadcast %cst_121 : f32 to vector<28x128xf32>
    %171 = arith.maximumf %169, %170 : vector<28x128xf32>
    %cst_122 = arith.constant 0.000000e+00 : f32
    %172 = vector.broadcast %cst_122 : f32 to vector<1x128xf32>
    %173 = vector.extract_strided_slice %171 {offsets = [0, 0], sizes = [1, 64], strides = [1, 1]} : vector<28x128xf32> to vector<1x64xf32>
    %174 = arith.truncf %173 : vector<1x64xf32> to vector<1x64xbf16>
    %c0_123 = arith.constant 0 : index
    %c0_124 = arith.constant 0 : index
    %c0_125 = arith.constant 0 : index
    %175 = vector.load %arg8[%c0_123, %c0_124, %c0_125] : memref<16x64x128xbf16, #tpu.memory_space<vmem>>, vector<1x64x128xbf16>
    %176 = vector.shape_cast %175 : vector<1x64x128xbf16> to vector<64x128xbf16>
    %cst_126 = arith.constant dense<0.000000e+00> : vector<1x128xf32>
    %177 = tpu.matmul %174, %176, %cst_126 {dimension_numbers = #tpu.dot_dimension_numbers<[1], [0], [0], [1], [0, 0, 1, 1], [], []>} : vector<1x64xbf16>, vector<64x128xbf16>, vector<1x128xf32> -> vector<1x128xf32>
    %178 = arith.addf %172, %177 : vector<1x128xf32>
    %179 = vector.extract_strided_slice %171 {offsets = [1, 0], sizes = [1, 64], strides = [1, 1]} : vector<28x128xf32> to vector<1x64xf32>
    %180 = arith.truncf %179 : vector<1x64xf32> to vector<1x64xbf16>
    %c1_127 = arith.constant 1 : index
    %c0_128 = arith.constant 0 : index
    %c0_129 = arith.constant 0 : index
    %181 = vector.load %arg8[%c1_127, %c0_128, %c0_129] : memref<16x64x128xbf16, #tpu.memory_space<vmem>>, vector<1x64x128xbf16>
    %182 = vector.shape_cast %181 : vector<1x64x128xbf16> to vector<64x128xbf16>
    %cst_130 = arith.constant dense<0.000000e+00> : vector<1x128xf32>
    %183 = tpu.matmul %180, %182, %cst_130 {dimension_numbers = #tpu.dot_dimension_numbers<[1], [0], [0], [1], [0, 0, 1, 1], [], []>} : vector<1x64xbf16>, vector<64x128xbf16>, vector<1x128xf32> -> vector<1x128xf32>
    %184 = arith.addf %178, %183 : vector<1x128xf32>
    %185 = vector.extract_strided_slice %171 {offsets = [2, 0], sizes = [1, 64], strides = [1, 1]} : vector<28x128xf32> to vector<1x64xf32>
    %186 = arith.truncf %185 : vector<1x64xf32> to vector<1x64xbf16>
    %c2_131 = arith.constant 2 : index
    %c0_132 = arith.constant 0 : index
    %c0_133 = arith.constant 0 : index
    %187 = vector.load %arg8[%c2_131, %c0_132, %c0_133] : memref<16x64x128xbf16, #tpu.memory_space<vmem>>, vector<1x64x128xbf16>
    %188 = vector.shape_cast %187 : vector<1x64x128xbf16> to vector<64x128xbf16>
    %cst_134 = arith.constant dense<0.000000e+00> : vector<1x128xf32>
    %189 = tpu.matmul %186, %188, %cst_134 {dimension_numbers = #tpu.dot_dimension_numbers<[1], [0], [0], [1], [0, 0, 1, 1], [], []>} : vector<1x64xbf16>, vector<64x128xbf16>, vector<1x128xf32> -> vector<1x128xf32>
    %190 = arith.addf %184, %189 : vector<1x128xf32>
    %191 = vector.extract_strided_slice %171 {offsets = [3, 0], sizes = [1, 64], strides = [1, 1]} : vector<28x128xf32> to vector<1x64xf32>
    %192 = arith.truncf %191 : vector<1x64xf32> to vector<1x64xbf16>
    %c3_135 = arith.constant 3 : index
    %c0_136 = arith.constant 0 : index
    %c0_137 = arith.constant 0 : index
    %193 = vector.load %arg8[%c3_135, %c0_136, %c0_137] : memref<16x64x128xbf16, #tpu.memory_space<vmem>>, vector<1x64x128xbf16>
    %194 = vector.shape_cast %193 : vector<1x64x128xbf16> to vector<64x128xbf16>
    %cst_138 = arith.constant dense<0.000000e+00> : vector<1x128xf32>
    %195 = tpu.matmul %192, %194, %cst_138 {dimension_numbers = #tpu.dot_dimension_numbers<[1], [0], [0], [1], [0, 0, 1, 1], [], []>} : vector<1x64xbf16>, vector<64x128xbf16>, vector<1x128xf32> -> vector<1x128xf32>
    %196 = arith.addf %190, %195 : vector<1x128xf32>
    %197 = vector.extract_strided_slice %171 {offsets = [8, 0], sizes = [1, 64], strides = [1, 1]} : vector<28x128xf32> to vector<1x64xf32>
    %198 = arith.truncf %197 : vector<1x64xf32> to vector<1x64xbf16>
    %c4_139 = arith.constant 4 : index
    %c0_140 = arith.constant 0 : index
    %c0_141 = arith.constant 0 : index
    %199 = vector.load %arg8[%c4_139, %c0_140, %c0_141] : memref<16x64x128xbf16, #tpu.memory_space<vmem>>, vector<1x64x128xbf16>
    %200 = vector.shape_cast %199 : vector<1x64x128xbf16> to vector<64x128xbf16>
    %cst_142 = arith.constant dense<0.000000e+00> : vector<1x128xf32>
    %201 = tpu.matmul %198, %200, %cst_142 {dimension_numbers = #tpu.dot_dimension_numbers<[1], [0], [0], [1], [0, 0, 1, 1], [], []>} : vector<1x64xbf16>, vector<64x128xbf16>, vector<1x128xf32> -> vector<1x128xf32>
    %202 = arith.addf %196, %201 : vector<1x128xf32>
    %203 = vector.extract_strided_slice %171 {offsets = [9, 0], sizes = [1, 64], strides = [1, 1]} : vector<28x128xf32> to vector<1x64xf32>
    %204 = arith.truncf %203 : vector<1x64xf32> to vector<1x64xbf16>
    %c5_143 = arith.constant 5 : index
    %c0_144 = arith.constant 0 : index
    %c0_145 = arith.constant 0 : index
    %205 = vector.load %arg8[%c5_143, %c0_144, %c0_145] : memref<16x64x128xbf16, #tpu.memory_space<vmem>>, vector<1x64x128xbf16>
    %206 = vector.shape_cast %205 : vector<1x64x128xbf16> to vector<64x128xbf16>
    %cst_146 = arith.constant dense<0.000000e+00> : vector<1x128xf32>
    %207 = tpu.matmul %204, %206, %cst_146 {dimension_numbers = #tpu.dot_dimension_numbers<[1], [0], [0], [1], [0, 0, 1, 1], [], []>} : vector<1x64xbf16>, vector<64x128xbf16>, vector<1x128xf32> -> vector<1x128xf32>
    %208 = arith.addf %202, %207 : vector<1x128xf32>
    %209 = vector.extract_strided_slice %171 {offsets = [10, 0], sizes = [1, 64], strides = [1, 1]} : vector<28x128xf32> to vector<1x64xf32>
    %210 = arith.truncf %209 : vector<1x64xf32> to vector<1x64xbf16>
    %c6_147 = arith.constant 6 : index
    %c0_148 = arith.constant 0 : index
    %c0_149 = arith.constant 0 : index
    %211 = vector.load %arg8[%c6_147, %c0_148, %c0_149] : memref<16x64x128xbf16, #tpu.memory_space<vmem>>, vector<1x64x128xbf16>
    %212 = vector.shape_cast %211 : vector<1x64x128xbf16> to vector<64x128xbf16>
    %cst_150 = arith.constant dense<0.000000e+00> : vector<1x128xf32>
    %213 = tpu.matmul %210, %212, %cst_150 {dimension_numbers = #tpu.dot_dimension_numbers<[1], [0], [0], [1], [0, 0, 1, 1], [], []>} : vector<1x64xbf16>, vector<64x128xbf16>, vector<1x128xf32> -> vector<1x128xf32>
    %214 = arith.addf %208, %213 : vector<1x128xf32>
    %215 = vector.extract_strided_slice %171 {offsets = [11, 0], sizes = [1, 64], strides = [1, 1]} : vector<28x128xf32> to vector<1x64xf32>
    %216 = arith.truncf %215 : vector<1x64xf32> to vector<1x64xbf16>
    %c7_151 = arith.constant 7 : index
    %c0_152 = arith.constant 0 : index
    %c0_153 = arith.constant 0 : index
    %217 = vector.load %arg8[%c7_151, %c0_152, %c0_153] : memref<16x64x128xbf16, #tpu.memory_space<vmem>>, vector<1x64x128xbf16>
    %218 = vector.shape_cast %217 : vector<1x64x128xbf16> to vector<64x128xbf16>
    %cst_154 = arith.constant dense<0.000000e+00> : vector<1x128xf32>
    %219 = tpu.matmul %216, %218, %cst_154 {dimension_numbers = #tpu.dot_dimension_numbers<[1], [0], [0], [1], [0, 0, 1, 1], [], []>} : vector<1x64xbf16>, vector<64x128xbf16>, vector<1x128xf32> -> vector<1x128xf32>
    %220 = arith.addf %214, %219 : vector<1x128xf32>
    %221 = vector.extract_strided_slice %171 {offsets = [16, 0], sizes = [1, 64], strides = [1, 1]} : vector<28x128xf32> to vector<1x64xf32>
    %222 = arith.truncf %221 : vector<1x64xf32> to vector<1x64xbf16>
    %c8_155 = arith.constant 8 : index
    %c0_156 = arith.constant 0 : index
    %c0_157 = arith.constant 0 : index
    %223 = vector.load %arg8[%c8_155, %c0_156, %c0_157] : memref<16x64x128xbf16, #tpu.memory_space<vmem>>, vector<1x64x128xbf16>
    %224 = vector.shape_cast %223 : vector<1x64x128xbf16> to vector<64x128xbf16>
    %cst_158 = arith.constant dense<0.000000e+00> : vector<1x128xf32>
    %225 = tpu.matmul %222, %224, %cst_158 {dimension_numbers = #tpu.dot_dimension_numbers<[1], [0], [0], [1], [0, 0, 1, 1], [], []>} : vector<1x64xbf16>, vector<64x128xbf16>, vector<1x128xf32> -> vector<1x128xf32>
    %226 = arith.addf %220, %225 : vector<1x128xf32>
    %227 = vector.extract_strided_slice %171 {offsets = [17, 0], sizes = [1, 64], strides = [1, 1]} : vector<28x128xf32> to vector<1x64xf32>
    %228 = arith.truncf %227 : vector<1x64xf32> to vector<1x64xbf16>
    %c9_159 = arith.constant 9 : index
    %c0_160 = arith.constant 0 : index
    %c0_161 = arith.constant 0 : index
    %229 = vector.load %arg8[%c9_159, %c0_160, %c0_161] : memref<16x64x128xbf16, #tpu.memory_space<vmem>>, vector<1x64x128xbf16>
    %230 = vector.shape_cast %229 : vector<1x64x128xbf16> to vector<64x128xbf16>
    %cst_162 = arith.constant dense<0.000000e+00> : vector<1x128xf32>
    %231 = tpu.matmul %228, %230, %cst_162 {dimension_numbers = #tpu.dot_dimension_numbers<[1], [0], [0], [1], [0, 0, 1, 1], [], []>} : vector<1x64xbf16>, vector<64x128xbf16>, vector<1x128xf32> -> vector<1x128xf32>
    %232 = arith.addf %226, %231 : vector<1x128xf32>
    %233 = vector.extract_strided_slice %171 {offsets = [18, 0], sizes = [1, 64], strides = [1, 1]} : vector<28x128xf32> to vector<1x64xf32>
    %234 = arith.truncf %233 : vector<1x64xf32> to vector<1x64xbf16>
    %c10_163 = arith.constant 10 : index
    %c0_164 = arith.constant 0 : index
    %c0_165 = arith.constant 0 : index
    %235 = vector.load %arg8[%c10_163, %c0_164, %c0_165] : memref<16x64x128xbf16, #tpu.memory_space<vmem>>, vector<1x64x128xbf16>
    %236 = vector.shape_cast %235 : vector<1x64x128xbf16> to vector<64x128xbf16>
    %cst_166 = arith.constant dense<0.000000e+00> : vector<1x128xf32>
    %237 = tpu.matmul %234, %236, %cst_166 {dimension_numbers = #tpu.dot_dimension_numbers<[1], [0], [0], [1], [0, 0, 1, 1], [], []>} : vector<1x64xbf16>, vector<64x128xbf16>, vector<1x128xf32> -> vector<1x128xf32>
    %238 = arith.addf %232, %237 : vector<1x128xf32>
    %239 = vector.extract_strided_slice %171 {offsets = [19, 0], sizes = [1, 64], strides = [1, 1]} : vector<28x128xf32> to vector<1x64xf32>
    %240 = arith.truncf %239 : vector<1x64xf32> to vector<1x64xbf16>
    %c11_167 = arith.constant 11 : index
    %c0_168 = arith.constant 0 : index
    %c0_169 = arith.constant 0 : index
    %241 = vector.load %arg8[%c11_167, %c0_168, %c0_169] : memref<16x64x128xbf16, #tpu.memory_space<vmem>>, vector<1x64x128xbf16>
    %242 = vector.shape_cast %241 : vector<1x64x128xbf16> to vector<64x128xbf16>
    %cst_170 = arith.constant dense<0.000000e+00> : vector<1x128xf32>
    %243 = tpu.matmul %240, %242, %cst_170 {dimension_numbers = #tpu.dot_dimension_numbers<[1], [0], [0], [1], [0, 0, 1, 1], [], []>} : vector<1x64xbf16>, vector<64x128xbf16>, vector<1x128xf32> -> vector<1x128xf32>
    %244 = arith.addf %238, %243 : vector<1x128xf32>
    %245 = vector.extract_strided_slice %171 {offsets = [24, 0], sizes = [1, 64], strides = [1, 1]} : vector<28x128xf32> to vector<1x64xf32>
    %246 = arith.truncf %245 : vector<1x64xf32> to vector<1x64xbf16>
    %c12_171 = arith.constant 12 : index
    %c0_172 = arith.constant 0 : index
    %c0_173 = arith.constant 0 : index
    %247 = vector.load %arg8[%c12_171, %c0_172, %c0_173] : memref<16x64x128xbf16, #tpu.memory_space<vmem>>, vector<1x64x128xbf16>
    %248 = vector.shape_cast %247 : vector<1x64x128xbf16> to vector<64x128xbf16>
    %cst_174 = arith.constant dense<0.000000e+00> : vector<1x128xf32>
    %249 = tpu.matmul %246, %248, %cst_174 {dimension_numbers = #tpu.dot_dimension_numbers<[1], [0], [0], [1], [0, 0, 1, 1], [], []>} : vector<1x64xbf16>, vector<64x128xbf16>, vector<1x128xf32> -> vector<1x128xf32>
    %250 = arith.addf %244, %249 : vector<1x128xf32>
    %251 = vector.extract_strided_slice %171 {offsets = [25, 0], sizes = [1, 64], strides = [1, 1]} : vector<28x128xf32> to vector<1x64xf32>
    %252 = arith.truncf %251 : vector<1x64xf32> to vector<1x64xbf16>
    %c13_175 = arith.constant 13 : index
    %c0_176 = arith.constant 0 : index
    %c0_177 = arith.constant 0 : index
    %253 = vector.load %arg8[%c13_175, %c0_176, %c0_177] : memref<16x64x128xbf16, #tpu.memory_space<vmem>>, vector<1x64x128xbf16>
    %254 = vector.shape_cast %253 : vector<1x64x128xbf16> to vector<64x128xbf16>
    %cst_178 = arith.constant dense<0.000000e+00> : vector<1x128xf32>
    %255 = tpu.matmul %252, %254, %cst_178 {dimension_numbers = #tpu.dot_dimension_numbers<[1], [0], [0], [1], [0, 0, 1, 1], [], []>} : vector<1x64xbf16>, vector<64x128xbf16>, vector<1x128xf32> -> vector<1x128xf32>
    %256 = arith.addf %250, %255 : vector<1x128xf32>
    %257 = vector.extract_strided_slice %171 {offsets = [26, 0], sizes = [1, 64], strides = [1, 1]} : vector<28x128xf32> to vector<1x64xf32>
    %258 = arith.truncf %257 : vector<1x64xf32> to vector<1x64xbf16>
    %c14_179 = arith.constant 14 : index
    %c0_180 = arith.constant 0 : index
    %c0_181 = arith.constant 0 : index
    %259 = vector.load %arg8[%c14_179, %c0_180, %c0_181] : memref<16x64x128xbf16, #tpu.memory_space<vmem>>, vector<1x64x128xbf16>
    %260 = vector.shape_cast %259 : vector<1x64x128xbf16> to vector<64x128xbf16>
    %cst_182 = arith.constant dense<0.000000e+00> : vector<1x128xf32>
    %261 = tpu.matmul %258, %260, %cst_182 {dimension_numbers = #tpu.dot_dimension_numbers<[1], [0], [0], [1], [0, 0, 1, 1], [], []>} : vector<1x64xbf16>, vector<64x128xbf16>, vector<1x128xf32> -> vector<1x128xf32>
    %262 = arith.addf %256, %261 : vector<1x128xf32>
    %263 = vector.extract_strided_slice %171 {offsets = [27, 0], sizes = [1, 64], strides = [1, 1]} : vector<28x128xf32> to vector<1x64xf32>
    %264 = arith.truncf %263 : vector<1x64xf32> to vector<1x64xbf16>
    %c15_183 = arith.constant 15 : index
    %c0_184 = arith.constant 0 : index
    %c0_185 = arith.constant 0 : index
    %265 = vector.load %arg8[%c15_183, %c0_184, %c0_185] : memref<16x64x128xbf16, #tpu.memory_space<vmem>>, vector<1x64x128xbf16>
    %266 = vector.shape_cast %265 : vector<1x64x128xbf16> to vector<64x128xbf16>
    %cst_186 = arith.constant dense<0.000000e+00> : vector<1x128xf32>
    %267 = tpu.matmul %264, %266, %cst_186 {dimension_numbers = #tpu.dot_dimension_numbers<[1], [0], [0], [1], [0, 0, 1, 1], [], []>} : vector<1x64xbf16>, vector<64x128xbf16>, vector<1x128xf32> -> vector<1x128xf32>
    %268 = arith.addf %262, %267 : vector<1x128xf32>
    %c0_187 = arith.constant 0 : index
    %c0_188 = arith.constant 0 : index
    %269 = vector.load %arg9[%c0_187, %c0_188] : memref<1x128xf32, #tpu.memory_space<vmem>>, vector<1x128xf32>
    %270 = arith.addf %268, %269 : vector<1x128xf32>
    %cst_189 = arith.constant 0.000000e+00 : f32
    %271 = vector.broadcast %cst_189 : f32 to vector<1x128xf32>
    %272 = arith.maximumf %270, %271 : vector<1x128xf32>
    %273 = arith.truncf %272 : vector<1x128xf32> to vector<1x128xbf16>
    %c0_190 = arith.constant 0 : index
    %c0_191 = arith.constant 0 : index
    %274 = vector.load %arg10[%c0_190, %c0_191] : memref<128x128xbf16, #tpu.memory_space<vmem>>, vector<128x128xbf16>
    %cst_192 = arith.constant dense<0.000000e+00> : vector<1x128xf32>
    %275 = tpu.matmul %273, %274, %cst_192 {dimension_numbers = #tpu.dot_dimension_numbers<[1], [0], [0], [1], [0, 0, 1, 1], [], []>} : vector<1x128xbf16>, vector<128x128xbf16>, vector<1x128xf32> -> vector<1x128xf32>
    %c0_193 = arith.constant 0 : index
    %c0_194 = arith.constant 0 : index
    %276 = vector.load %arg11[%c0_193, %c0_194] : memref<1x128xf32, #tpu.memory_space<vmem>>, vector<1x128xf32>
    %277 = arith.addf %275, %276 : vector<1x128xf32>
    %cst_195 = arith.constant dense<0xFF800000> : vector<1xf32>
    %278 = vector.multi_reduction <maximumf>, %277, %cst_195 [1] : vector<1x128xf32> to vector<1xf32>
    %279 = vector.shape_cast %278 : vector<1xf32> to vector<1x1xf32>
    %280 = vector.broadcast %279 : vector<1x1xf32> to vector<1x128xf32>
    %281 = arith.subf %277, %280 : vector<1x128xf32>
    %282 = math.exp %281 : vector<1x128xf32>
    %cst_196 = arith.constant dense<0.000000e+00> : vector<1xf32>
    %283 = vector.multi_reduction <add>, %282, %cst_196 [1] : vector<1x128xf32> to vector<1xf32>
    %284 = vector.shape_cast %283 : vector<1xf32> to vector<1x1xf32>
    %285 = tpu.reciprocal %284 {approx = true} : vector<1x1xf32> -> vector<1x1xf32>
    %286 = vector.broadcast %285 : vector<1x1xf32> to vector<1x128xf32>
    %287 = arith.mulf %282, %286 : vector<1x128xf32>
    %c0_197 = arith.constant 0 : index
    %c0_198 = arith.constant 0 : index
    %c0_199 = arith.constant 0 : index
    %288 = vector.load %arg12[%c0_197, %c0_198, %c0_199] : memref<1x1x128xf32, #tpu.memory_space<vmem>>, vector<1x1x128xf32>
    %289 = vector.shape_cast %288 : vector<1x1x128xf32> to vector<1x128xf32>
    %290 = vector.shape_cast %287 : vector<1x128xf32> to vector<1x1x128xf32>
    tpu.vector_store %arg12[%c0_197, %c0_198, %c0_199], %290 {strides = array<i32>} : memref<1x1x128xf32, #tpu.memory_space<vmem>>, vector<1x1x128xf32>,
    return
  }
  func.func @transform_0(%arg0: i32) -> (i32, i32, i32) {
    %c0_i32 = arith.constant 0 : i32
    %c0_i32_0 = arith.constant 0 : i32
    %c0_i32_1 = arith.constant 0 : i32
    return %arg0, %c0_i32, %c0_i32_0 : i32, i32, i32
  }
  func.func @transform_1(%arg0: i32) -> (i32, i32) {
    %c0_i32 = arith.constant 0 : i32
    %c0_i32_0 = arith.constant 0 : i32
    %c0_i32_1 = arith.constant 0 : i32
    return %c0_i32, %c0_i32_0 : i32, i32
  }
  func.func @transform_2(%arg0: i32) -> (i32, i32) {
    %c0_i32 = arith.constant 0 : i32
    %c0_i32_0 = arith.constant 0 : i32
    %c0_i32_1 = arith.constant 0 : i32
    return %c0_i32, %c0_i32_0 : i32, i32
  }
  func.func @transform_3(%arg0: i32) -> (i32, i32, i32) {
    %c0_i32 = arith.constant 0 : i32
    %c0_i32_0 = arith.constant 0 : i32
    %c0_i32_1 = arith.constant 0 : i32
    %c0_i32_2 = arith.constant 0 : i32
    return %c0_i32, %c0_i32_0, %c0_i32_1 : i32, i32, i32
  }
  func.func @transform_4(%arg0: i32) -> (i32, i32) {
    %c0_i32 = arith.constant 0 : i32
    %c0_i32_0 = arith.constant 0 : i32
    %c0_i32_1 = arith.constant 0 : i32
    return %c0_i32, %c0_i32_0 : i32, i32
  }
  func.func @transform_5(%arg0: i32) -> (i32, i32, i32) {
    %c0_i32 = arith.constant 0 : i32
    %c0_i32_0 = arith.constant 0 : i32
    %c0_i32_1 = arith.constant 0 : i32
    %c0_i32_2 = arith.constant 0 : i32
    return %c0_i32, %c0_i32_0, %c0_i32_1 : i32, i32, i32
  }
  func.func @transform_6(%arg0: i32) -> (i32, i32) {
    %c0_i32 = arith.constant 0 : i32
    %c0_i32_0 = arith.constant 0 : i32
    %c0_i32_1 = arith.constant 0 : i32
    return %c0_i32, %c0_i32_0 : i32, i32
  }
  func.func @transform_7(%arg0: i32) -> (i32, i32, i32) {
    %c0_i32 = arith.constant 0 : i32
    %c0_i32_0 = arith.constant 0 : i32
    %c0_i32_1 = arith.constant 0 : i32
    %c0_i32_2 = arith.constant 0 : i32
    return %c0_i32, %c0_i32_0, %c0_i32_1 : i32, i32, i32
  }
  func.func @transform_8(%arg0: i32) -> (i32, i32) {
    %c0_i32 = arith.constant 0 : i32
    %c0_i32_0 = arith.constant 0 : i32
    %c0_i32_1 = arith.constant 0 : i32
    return %c0_i32, %c0_i32_0 : i32, i32
  }
  func.func @transform_9(%arg0: i32) -> (i32, i32) {
    %c0_i32 = arith.constant 0 : i32
    %c0_i32_0 = arith.constant 0 : i32
    %c0_i32_1 = arith.constant 0 : i32
    return %c0_i32, %c0_i32_0 : i32, i32
  }
  func.func @transform_10(%arg0: i32) -> (i32, i32) {
    %c0_i32 = arith.constant 0 : i32
    %c0_i32_0 = arith.constant 0 : i32
    %c0_i32_1 = arith.constant 0 : i32
    return %c0_i32, %c0_i32_0 : i32, i32
  }
  func.func @transform_11(%arg0: i32) -> (i32, i32, i32) {
    %c0_i32 = arith.constant 0 : i32
    %c0_i32_0 = arith.constant 0 : i32
    %c0_i32_1 = arith.constant 0 : i32
    return %arg0, %c0_i32, %c0_i32_0 : i32, i32, i32
  }
}

</mosaic_0001>

<llo_original>
// kernel: actor_forward.1
$region0: #{actor_forward.1}
  #allocation0 [shape = 'u32[]', space=smem, size = 0x4, offset = 0x4, fixed_abs, tag = 'smem constant byte address 0x4 - core index']
  #allocation1 [shape = 'u32[144,128]{1,0:T(1,128)}', space=vmem, size = 0x12000, scoped, tag = 'internal scratch']
  #allocation2 [shape = 'f32[256,128]{1,0:T(8,128)}', space=vmem, size = 0x20000, scoped, tag = 'scratch operand']
  %s0 = inlined_call_operand.vmem [shape: bf16[2,256,192], index: 0, kind: input, shape index: {}]
  %s1 = inlined_call_operand.vmem [shape: bf16[192,128], index: 1, kind: input, shape index: {}]
  %s2 = inlined_call_operand.vmem [shape: f32[1,128], index: 2, kind: input, shape index: {}]
  %s3 = inlined_call_operand.vmem [shape: bf16[16,32,128], index: 3, kind: input, shape index: {}]
  %s4 = inlined_call_operand.vmem [shape: f32[1,128], index: 4, kind: input, shape index: {}]
  %s5 = inlined_call_operand.vmem [shape: bf16[9,64,128], index: 5, kind: input, shape index: {}]
  %s6 = inlined_call_operand.vmem [shape: f32[1,128], index: 6, kind: input, shape index: {}]
  %s7 = inlined_call_operand.vmem [shape: bf16[16,64,128], index: 7, kind: input, shape index: {}]
  %s8 = inlined_call_operand.vmem [shape: f32[1,128], index: 8, kind: input, shape index: {}]
  %s9 = inlined_call_operand.vmem [shape: bf16[128,128], index: 9, kind: input, shape index: {}]
  %s10 = inlined_call_operand.vmem [shape: f32[1,128], index: 10, kind: input, shape index: {}]
  %s11 = inlined_call_operand.hbm [shape: f32[2,1,128], index: 11, kind: output, shape index: {}]
  %s12 = sld [smem:[#allocation0]]
  $region77: #{actor_forward.1} parent=0
    _
  %s14 = ssub.s32 1, %s12
  %s15 = scalar_select 0, %s14, %s12
  $region1: #{actor_forward.1} parent=0
    #allocation3 [shape = 'u8[1024]{0}', space=vmem, size = 0x400, scoped, tag = 'output window, operand 0']
    #allocation4 [shape = 's32[2]{0}', space=sflag, size = 0x8, scoped, tag = 'scoped memory for actor_forward.1']
    %16 = vsyncpa [#allocation4], 0
    %s17 = scalar_lea.sflag [#allocation4], 1
    %18 = vsyncpa %s17, 0
    loop: start=0, step=1, limit=4
    $region2: #{actor_forward.1} parent=1 // loop_pre_header
      _
    $region3: #{actor_forward.1} parent=1 // loop_header
      %s20 = sphi 0, %s24
      %p21 = scmp.ge.s32.totalorder %s20, 4
      %s30 = sphi 0, %s32
      %s33 = sphi 0, %s30
      %s34 = sphi 0, %s33
      %s50 = sphi 0, %s34
      %s54 = sphi 0, %s54
      %s56 = sphi 0, %s54
      %s57 = sphi 0, %s56
      %s71 = sphi 0, %s57
      %s75 = sphi 0, %s75
      %s77 = sphi 0, %s75
      %s78 = sphi 0, %s77
      %s92 = sphi 0, %s78
      %s96 = sphi 0, %s96
      %s98 = sphi 0, %s96
      %s99 = sphi 0, %s98
      %s113 = sphi 0, %s99
      %s117 = sphi 0, %s117
      %s119 = sphi 0, %s117
      %s120 = sphi 0, %s119
      %s134 = sphi 0, %s120
      %s138 = sphi 0, %s138
      %s140 = sphi 0, %s138
      %s141 = sphi 0, %s140
      %s155 = sphi 0, %s141
      %s159 = sphi 0, %s159
      %s161 = sphi 0, %s159
      %s162 = sphi 0, %s161
      %s176 = sphi 0, %s162
      %s180 = sphi 0, %s180
      %s182 = sphi 0, %s180
      %s183 = sphi 0, %s182
      %s197 = sphi 0, %s183
      %s201 = sphi 0, %s201
      %s203 = sphi 0, %s201
      %s204 = sphi 0, %s203
      %s218 = sphi 0, %s204
      %s222 = sphi 0, %s222
      %s224 = sphi 0, %s222
      %s225 = sphi 0, %s224
      %s239 = sphi 0, %s225
      %s243 = sphi 0, %s243
      %s245 = sphi 0, %s243
      %s246 = sphi 0, %s245
      %s260 = sphi 0, %s246
      %s266 = sphi 0, %s268
      %s269 = sphi 0, %s266
      %s270 = sphi 0, %s269
      %s286 = sphi 0, %s270
    $region4: #{actor_forward.1} parent=1 // loop_header_branch
      %23 = sbr.rel (%p21) target = $region8
    $region5: #{actor_forward.1} parent=1 // loop_body
      %s25 = ssub.s32 %s20, 1
      %s26 = ssub.s32 %s20, 2
      %s27 = sadd.s32 %s20, 1
      %s28 = ssub.s32 %s20, %s27
      %p29 = scmp.eq.s32.totalorder %s28, 0
      %s31 = sadd.s32 %s30, 1
      %s32 = scalar_select %p29, %s30, %s31
      %p35 = pneg %p29
      %p36 = scmp.eq.s32.totalorder %s20, 1
      %p37 = por %p35, %p36
      %p38 = scmp.ne.s32.totalorder %s30, %s33
      %p39 = scmp.eq.s32.totalorder %s20, 0
      %p40 = por %p38, %p39
      %p41 = scmp.ne.s32.totalorder %s30, %s33
      %p42 = scmp.eq.s32.totalorder %s25, 1
      %p43 = por %p41, %p42
      %p44 = scmp.ne.s32.totalorder %s33, %s34
      %p45 = scmp.eq.s32.totalorder %s25, 0
      %p46 = por %p44, %p45
      %p47 = scmp.ne.s32.totalorder %s33, %s34
      %p48 = scmp.eq.s32.totalorder %s26, 1
      %p49 = por %p47, %p48
      %p51 = scmp.ne.s32.totalorder %s34, %s50
      %p52 = scmp.eq.s32.totalorder %s26, 0
      %p53 = por %p51, %p52
      %s55 = sadd.s32 %s54, 1
      %p58 = scmp.eq.s32.totalorder %s20, 1
      %p59 = scmp.ne.s32.totalorder %s54, %s56
      %p60 = scmp.eq.s32.totalorder %s20, 0
      %p61 = por %p59, %p60
      %p62 = scmp.ne.s32.totalorder %s54, %s56
      %p63 = scmp.eq.s32.totalorder %s25, 1
      %p64 = por %p62, %p63
      %p65 = scmp.ne.s32.totalorder %s56, %s57
      %p66 = scmp.eq.s32.totalorder %s25, 0
      %p67 = por %p65, %p66
      %p68 = scmp.ne.s32.totalorder %s56, %s57
      %p69 = scmp.eq.s32.totalorder %s26, 1
      %p70 = por %p68, %p69
      %p72 = scmp.ne.s32.totalorder %s57, %s71
      %p73 = scmp.eq.s32.totalorder %s26, 0
      %p74 = por %p72, %p73
      %s76 = sadd.s32 %s75, 1
      %p79 = scmp.eq.s32.totalorder %s20, 1
      %p80 = scmp.ne.s32.totalorder %s75, %s77
      %p81 = scmp.eq.s32.totalorder %s20, 0
      %p82 = por %p80, %p81
      %p83 = scmp.ne.s32.totalorder %s75, %s77
      %p84 = scmp.eq.s32.totalorder %s25, 1
      %p85 = por %p83, %p84
      %p86 = scmp.ne.s32.totalorder %s77, %s78
      %p87 = scmp.eq.s32.totalorder %s25, 0
      %p88 = por %p86, %p87
      %p89 = scmp.ne.s32.totalorder %s77, %s78
      %p90 = scmp.eq.s32.totalorder %s26, 1
      %p91 = por %p89, %p90
      %p93 = scmp.ne.s32.totalorder %s78, %s92
      %p94 = scmp.eq.s32.totalorder %s26, 0
      %p95 = por %p93, %p94
      %s97 = sadd.s32 %s96, 1
      %p100 = scmp.eq.s32.totalorder %s20, 1
      %p101 = scmp.ne.s32.totalorder %s96, %s98
      %p102 = scmp.eq.s32.totalorder %s20, 0
      %p103 = por %p101, %p102
      %p104 = scmp.ne.s32.totalorder %s96, %s98
      %p105 = scmp.eq.s32.totalorder %s25, 1
      %p106 = por %p104, %p105
      %p107 = scmp.ne.s32.totalorder %s98, %s99
      %p108 = scmp.eq.s32.totalorder %s25, 0
      %p109 = por %p107, %p108
      %p110 = scmp.ne.s32.totalorder %s98, %s99
      %p111 = scmp.eq.s32.totalorder %s26, 1
      %p112 = por %p110, %p111
      %p114 = scmp.ne.s32.totalorder %s99, %s113
      %p115 = scmp.eq.s32.totalorder %s26, 0
      %p116 = por %p114, %p115
      %s118 = sadd.s32 %s117, 1
      %p121 = scmp.eq.s32.totalorder %s20, 1
      %p122 = scmp.ne.s32.totalorder %s117, %s119
      %p123 = scmp.eq.s32.totalorder %s20, 0
      %p124 = por %p122, %p123
      %p125 = scmp.ne.s32.totalorder %s117, %s119
      %p126 = scmp.eq.s32.totalorder %s25, 1
      %p127 = por %p125, %p126
      %p128 = scmp.ne.s32.totalorder %s119, %s120
      %p129 = scmp.eq.s32.totalorder %s25, 0
      %p130 = por %p128, %p129
      %p131 = scmp.ne.s32.totalorder %s119, %s120
      %p132 = scmp.eq.s32.totalorder %s26, 1
      %p133 = por %p131, %p132
      %p135 = scmp.ne.s32.totalorder %s120, %s134
      %p136 = scmp.eq.s32.totalorder %s26, 0
      %p137 = por %p135, %p136
      %s139 = sadd.s32 %s138, 1
      %p142 = scmp.eq.s32.totalorder %s20, 1
      %p143 = scmp.ne.s32.totalorder %s138, %s140
      %p144 = scmp.eq.s32.totalorder %s20, 0
      %p145 = por %p143, %p144
      %p146 = scmp.ne.s32.totalorder %s138, %s140
      %p147 = scmp.eq.s32.totalorder %s25, 1
      %p148 = por %p146, %p147
      %p149 = scmp.ne.s32.totalorder %s140, %s141
      %p150 = scmp.eq.s32.totalorder %s25, 0
      %p151 = por %p149, %p150
      %p152 = scmp.ne.s32.totalorder %s140, %s141
      %p153 = scmp.eq.s32.totalorder %s26, 1
      %p154 = por %p152, %p153
      %p156 = scmp.ne.s32.totalorder %s141, %s155
      %p157 = scmp.eq.s32.totalorder %s26, 0
      %p158 = por %p156, %p157
      %s160 = sadd.s32 %s159, 1
      %p163 = scmp.eq.s32.totalorder %s20, 1
      %p164 = scmp.ne.s32.totalorder %s159, %s161
      %p165 = scmp.eq.s32.totalorder %s20, 0
      %p166 = por %p164, %p165
      %p167 = scmp.ne.s32.totalorder %s159, %s161
      %p168 = scmp.eq.s32.totalorder %s25, 1
      %p169 = por %p167, %p168
      %p170 = scmp.ne.s32.totalorder %s161, %s162
      %p171 = scmp.eq.s32.totalorder %s25, 0
      %p172 = por %p170, %p171
      %p173 = scmp.ne.s32.totalorder %s161, %s162
      %p174 = scmp.eq.s32.totalorder %s26, 1
      %p175 = por %p173, %p174
      %p177 = scmp.ne.s32.totalorder %s162, %s176
      %p178 = scmp.eq.s32.totalorder %s26, 0
      %p179 = por %p177, %p178
      %s181 = sadd.s32 %s180, 1
      %p184 = scmp.eq.s32.totalorder %s20, 1
      %p185 = scmp.ne.s32.totalorder %s180, %s182
      %p186 = scmp.eq.s32.totalorder %s20, 0
      %p187 = por %p185, %p186
      %p188 = scmp.ne.s32.totalorder %s180, %s182
      %p189 = scmp.eq.s32.totalorder %s25, 1
      %p190 = por %p188, %p189
      %p191 = scmp.ne.s32.totalorder %s182, %s183
      %p192 = scmp.eq.s32.totalorder %s25, 0
      %p193 = por %p191, %p192
      %p194 = scmp.ne.s32.totalorder %s182, %s183
      %p195 = scmp.eq.s32.totalorder %s26, 1
      %p196 = por %p194, %p195
      %p198 = scmp.ne.s32.totalorder %s183, %s197
      %p199 = scmp.eq.s32.totalorder %s26, 0
      %p200 = por %p198, %p199
      %s202 = sadd.s32 %s201, 1
      %p205 = scmp.eq.s32.totalorder %s20, 1
      %p206 = scmp.ne.s32.totalorder %s201, %s203
      %p207 = scmp.eq.s32.totalorder %s20, 0
      %p208 = por %p206, %p207
      %p209 = scmp.ne.s32.totalorder %s201, %s203
      %p210 = scmp.eq.s32.totalorder %s25, 1
      %p211 = por %p209, %p210
      %p212 = scmp.ne.s32.totalorder %s203, %s204
      %p213 = scmp.eq.s32.totalorder %s25, 0
      %p214 = por %p212, %p213
      %p215 = scmp.ne.s32.totalorder %s203, %s204
      %p216 = scmp.eq.s32.totalorder %s26, 1
      %p217 = por %p215, %p216
      %p219 = scmp.ne.s32.totalorder %s204, %s218
      %p220 = scmp.eq.s32.totalorder %s26, 0
      %p221 = por %p219, %p220
      %s223 = sadd.s32 %s222, 1
      %p226 = scmp.eq.s32.totalorder %s20, 1
      %p227 = scmp.ne.s32.totalorder %s222, %s224
      %p228 = scmp.eq.s32.totalorder %s20, 0
      %p229 = por %p227, %p228
      %p230 = scmp.ne.s32.totalorder %s222, %s224
      %p231 = scmp.eq.s32.totalorder %s25, 1
      %p232 = por %p230, %p231
      %p233 = scmp.ne.s32.totalorder %s224, %s225
      %p234 = scmp.eq.s32.totalorder %s25, 0
      %p235 = por %p233, %p234
      %p236 = scmp.ne.s32.totalorder %s224, %s225
      %p237 = scmp.eq.s32.totalorder %s26, 1
      %p238 = por %p236, %p237
      %p240 = scmp.ne.s32.totalorder %s225, %s239
      %p241 = scmp.eq.s32.totalorder %s26, 0
      %p242 = por %p240, %p241
      %s244 = sadd.s32 %s243, 1
      %p247 = scmp.eq.s32.totalorder %s20, 1
      %p248 = scmp.ne.s32.totalorder %s243, %s245
      %p249 = scmp.eq.s32.totalorder %s20, 0
      %p250 = por %p248, %p249
      %p251 = scmp.ne.s32.totalorder %s243, %s245
      %p252 = scmp.eq.s32.totalorder %s25, 1
      %p253 = por %p251, %p252
      %p254 = scmp.ne.s32.totalorder %s245, %s246
      %p255 = scmp.eq.s32.totalorder %s25, 0
      %p256 = por %p254, %p255
      %p257 = scmp.ne.s32.totalorder %s245, %s246
      %p258 = scmp.eq.s32.totalorder %s26, 1
      %p259 = por %p257, %p258
      %p261 = scmp.ne.s32.totalorder %s246, %s260
      %p262 = scmp.eq.s32.totalorder %s26, 0
      %p263 = por %p261, %p262
      %s264 = ssub.s32 %s20, %s27
      %p265 = scmp.eq.s32.totalorder %s264, 0
      %s267 = sadd.s32 %s266, 1
      %s268 = scalar_select %p265, %s266, %s267
      %p271 = pneg %p265
      %p272 = scmp.eq.s32.totalorder %s20, 1
      %p273 = por %p271, %p272
      %p274 = scmp.ne.s32.totalorder %s266, %s269
      %p275 = scmp.eq.s32.totalorder %s20, 0
      %p276 = por %p274, %p275
      %p277 = scmp.ne.s32.totalorder %s266, %s269
      %p278 = scmp.eq.s32.totalorder %s25, 1
      %p279 = por %p277, %p278
      %p280 = scmp.ne.s32.totalorder %s269, %s270
      %p281 = scmp.eq.s32.totalorder %s25, 0
      %p282 = por %p280, %p281
      %p283 = scmp.ne.s32.totalorder %s269, %s270
      %p284 = scmp.eq.s32.totalorder %s26, 1
      %p285 = por %p283, %p284
      %p287 = scmp.ne.s32.totalorder %s270, %s286
      %p288 = scmp.eq.s32.totalorder %s26, 0
      %p289 = por %p287, %p288
      %p290 = scmp.le.s32.totalorder 1, %s20
      %p291 = scmp.lt.s32.totalorder %s20, 3
      %p292 = pnand %p290, %p291
      %p293 = pneg %p292
      // Predicated region
      $region9: #{actor_forward.1} parent=5 // pred_check
        _
      $region10: #{actor_forward.1} parent=5 // pred_check_branch
        %295 = sbr.rel (%p292) target = $region12
      $region11: #{actor_forward.1} parent=5 // pred_region
        %s296 = ssub.s32 %s20, 1
        // Predicated region
        $region13: #{actor_forward.1} parent=11 // pred_check
          %p297 = pneg %p67
        $region14: #{actor_forward.1} parent=11 // pred_check_branch
          %299 = sbr.rel (%p297) target = $region16
        $region15: #{actor_forward.1} parent=11 // pred_region
          _
        $region16: #{actor_forward.1} parent=11 // pred_fallthru
          _
        // Predicated region
        $region17: #{actor_forward.1} parent=11 // pred_check
          %p300 = pneg %p88
        $region18: #{actor_forward.1} parent=11 // pred_check_branch
          %302 = sbr.rel (%p300) target = $region20
        $region19: #{actor_forward.1} parent=11 // pred_region
          _
        $region20: #{actor_forward.1} parent=11 // pred_fallthru
          _
        // Predicated region
        $region21: #{actor_forward.1} parent=11 // pred_check
          %p303 = pneg %p109
        $region22: #{actor_forward.1} parent=11 // pred_check_branch
          %305 = sbr.rel (%p303) target = $region24
        $region23: #{actor_forward.1} parent=11 // pred_region
          _
        $region24: #{actor_forward.1} parent=11 // pred_fallthru
          _
        // Predicated region
        $region25: #{actor_forward.1} parent=11 // pred_check
          %p306 = pneg %p130
        $region26: #{actor_forward.1} parent=11 // pred_check_branch
          %308 = sbr.rel (%p306) target = $region28
        $region27: #{actor_forward.1} parent=11 // pred_region
          _
        $region28: #{actor_forward.1} parent=11 // pred_fallthru
          _
        // Predicated region
        $region29: #{actor_forward.1} parent=11 // pred_check
          %p309 = pneg %p151
        $region30: #{actor_forward.1} parent=11 // pred_check_branch
          %311 = sbr.rel (%p309) target = $region32
        $region31: #{actor_forward.1} parent=11 // pred_region
          _
        $region32: #{actor_forward.1} parent=11 // pred_fallthru
          _
        // Predicated region
        $region33: #{actor_forward.1} parent=11 // pred_check
          %p312 = pneg %p172
        $region34: #{actor_forward.1} parent=11 // pred_check_branch
          %314 = sbr.rel (%p312) target = $region36
        $region35: #{actor_forward.1} parent=11 // pred_region
          _
        $region36: #{actor_forward.1} parent=11 // pred_fallthru
          _
        // Predicated region
        $region37: #{actor_forward.1} parent=11 // pred_check
          %p315 = pneg %p193
        $region38: #{actor_forward.1} parent=11 // pred_check_branch
          %317 = sbr.rel (%p315) target = $region40
        $region39: #{actor_forward.1} parent=11 // pred_region
          _
        $region40: #{actor_forward.1} parent=11 // pred_fallthru
          _
        // Predicated region
        $region41: #{actor_forward.1} parent=11 // pred_check
          %p318 = pneg %p214
        $region42: #{actor_forward.1} parent=11 // pred_check_branch
          %320 = sbr.rel (%p318) target = $region44
        $region43: #{actor_forward.1} parent=11 // pred_region
          _
        $region44: #{actor_forward.1} parent=11 // pred_fallthru
          _
        // Predicated region
        $region45: #{actor_forward.1} parent=11 // pred_check
          %p321 = pneg %p235
        $region46: #{actor_forward.1} parent=11 // pred_check_branch
          %323 = sbr.rel (%p321) target = $region48
        $region47: #{actor_forward.1} parent=11 // pred_region
          _
        $region48: #{actor_forward.1} parent=11 // pred_fallthru
          _
        // Predicated region
        $region49: #{actor_forward.1} parent=11 // pred_check
          %p324 = pneg %p256
        $region50: #{actor_forward.1} parent=11 // pred_check_branch
          %326 = sbr.rel (%p324) target = $region52
        $region51: #{actor_forward.1} parent=11 // pred_region
          _
        $region52: #{actor_forward.1} parent=11 // pred_fallthru
          _
      $region12: #{actor_forward.1} parent=5 // pred_fallthru
        _
      %p327 = scmp.lt.s32.totalorder %s20, 2
      // Predicated region
      $region53: #{actor_forward.1} parent=5 // pred_check
        %p328 = pneg %p327
      $region54: #{actor_forward.1} parent=5 // pred_check_branch
        %330 = sbr.rel (%p328) target = $region56
      $region55: #{actor_forward.1} parent=5 // pred_region
        // Predicated region
        $region57: #{actor_forward.1} parent=55 // pred_check
          %p331 = pneg %p40
        $region58: #{actor_forward.1} parent=55 // pred_check_branch
          %333 = sbr.rel (%p331) target = $region60
        $region59: #{actor_forward.1} parent=55 // pred_region
          %p334 = scmp.lt.s32.totalorder %s20, 1
          %s335 = scalar_select %p334, %s20, 1
          %s336 = smul.addr %s335, 64
          %s337 = smul.addr %s336, 4
          %s338 = scalar_lea.vmem %s0, %s337
        $region60: #{actor_forward.1} parent=55 // pred_fallthru
          _
      $region56: #{actor_forward.1} parent=5 // pred_fallthru
        _
      %p339 = scmp.le.s32.totalorder 1, %s20
      %p340 = scmp.lt.s32.totalorder %s20, 3
      %p341 = pnand %p339, %p340
      %p342 = pneg %p341
      // Predicated region
      $region61: #{actor_forward.1} parent=5 // pred_check
        _
      $region62: #{actor_forward.1} parent=5 // pred_check_branch
        %344 = sbr.rel (%p341) target = $region64
      $region63: #{actor_forward.1} parent=5 // pred_region
        %s345 = ssub.s32 %s20, 1
        %p346 = scmp.lt.s32.totalorder %s25, 1
        %s347 = scalar_select %p346, %s25, 1
        %s348 = smul.addr %s347, 64
        %s349 = smul.addr %s348, 4
        %s350 = scalar_lea.vmem %s0, %s349
        %p351 = pneg %p46
        %p352 = pneg %p43
        %p353 = pneg %p67
        %p354 = pneg %p64
        %p355 = pneg %p88
        %p356 = pneg %p85
        %p357 = pneg %p109
        %p358 = pneg %p106
        %p359 = pneg %p130
        %p360 = pneg %p127
        %p361 = pneg %p151
        %p362 = pneg %p148
        %p363 = pneg %p172
        %p364 = pneg %p169
        %p365 = pneg %p193
        %p366 = pneg %p190
        %p367 = pneg %p214
        %p368 = pneg %p211
        %p369 = pneg %p235
        %p370 = pneg %p232
        %p371 = pneg %p256
        %p372 = pneg %p253
        %p373 = pneg %p282
        %p374 = pneg %p279
        %s375 = sand.u32 %s269, 1
        %s376 = scalar_lea.sflag [#allocation4], %s375
        %s377 = sand.u32 %s269, 1
        %s378 = scalar_lea.vmem [#allocation3], %s377
        %p379 = scmp.lt.s32.totalorder %s25, 1
        %s380 = scalar_select %p379, %s25, 1
        %s381 = smul.addr %s380, 64
        %s382 = smul.addr %s381, 4
        %s383 = scalar_lea.vmem %s0, %s382
        %v385 = vld [vmem:[%s383] sm:$0xff]
        %v386 = vld [vmem:[%s383 + $0x8] sm:$0xff]
        %v387 = vld [vmem:[%s383 + $0x10] sm:$0xff]
        %v388 = vld [vmem:[%s383 + $0x18] sm:$0xff]
        %v389 = vld [vmem:[%s383 + $0x20] sm:$0xff]
        %v390 = vld [vmem:[%s383 + $0x28] sm:$0xff]
        %v391 = vld [vmem:[%s383 + $0x30] sm:$0xff]
        %v392 = vld [vmem:[%s383 + $0x38] sm:$0xff]
        %v393 = vld [vmem:[%s383 + $0x40] sm:$0xff]
        %v394 = vld [vmem:[%s383 + $0x48] sm:$0xff]
        %v395 = vld [vmem:[%s383 + $0x50] sm:$0xff]
        %v396 = vld [vmem:[%s383 + $0x58] sm:$0xff]
        %v397 = vld [vmem:[%s383 + $0x60] sm:$0xff]
        %v398 = vld [vmem:[%s383 + $0x68] sm:$0xff]
        %v399 = vld [vmem:[%s383 + $0x70] sm:$0xff]
        %v400 = vld [vmem:[%s383 + $0x78] sm:$0xff]
        %v401 = vld [vmem:[%s383 + $0x80] sm:$0xff]
        %v402 = vld [vmem:[%s383 + $0x88] sm:$0xff]
        %v403 = vld [vmem:[%s383 + $0x90] sm:$0xff]
        %v404 = vld [vmem:[%s383 + $0x98] sm:$0xff]
        %v405 = vld [vmem:[%s383 + $0xa0] sm:$0xff]
        %v406 = vld [vmem:[%s383 + $0xa8] sm:$0xff]
        %v407 = vld [vmem:[%s383 + $0xb0] sm:$0xff]
        %v408 = vld [vmem:[%s383 + $0xb8] sm:$0xff]
        %v409 = vld [vmem:[%s383 + $0xc0] sm:$0xff]
        %v410 = vld [vmem:[%s383 + $0xc8] sm:$0xff]
        %v411 = vld [vmem:[%s383 + $0xd0] sm:$0xff]
        %v412 = vld [vmem:[%s383 + $0xd8] sm:$0xff]
        %v413 = vld [vmem:[%s383 + $0xe0] sm:$0xff]
        %v414 = vld [vmem:[%s383 + $0xe8] sm:$0xff]
        %v415 = vld [vmem:[%s383 + $0xf0] sm:$0xff]
        %v416 = vld [vmem:[%s383 + $0xf8] sm:$0xff]
        %v417 = vld [vmem:[%s1] sm:$0xf]
        %v418 = vld [vmem:[%s1 + $0x4] sm:$0xf]
        %v419 = vld [vmem:[%s1 + $0x8] sm:$0xf]
        %v420 = vld [vmem:[%s1 + $0xc] sm:$0xf]
        %v421 = vld [vmem:[%s1 + $0x10] sm:$0xf]
        %v422 = vld [vmem:[%s1 + $0x14] sm:$0xf]
        %v423 = vld [vmem:[%s1 + $0x18] sm:$0xf]
        %v424 = vld [vmem:[%s1 + $0x1c] sm:$0xf]
        %v425 = vld [vmem:[%s1 + $0x20] sm:$0xf]
        %v426 = vld [vmem:[%s1 + $0x24] sm:$0xf]
        %v427 = vld [vmem:[%s1 + $0x28] sm:$0xf]
        %v428 = vld [vmem:[%s1 + $0x2c] sm:$0xf]
        %v429 = vld [vmem:[%s1 + $0x30] sm:$0xf]
        %v430 = vld [vmem:[%s1 + $0x34] sm:$0xf]
        %v431 = vld [vmem:[%s1 + $0x38] sm:$0xf]
        %v432 = vld [vmem:[%s1 + $0x3c] sm:$0xf]
        %v433 = vld [vmem:[%s1 + $0x40] sm:$0xf]
        %v434 = vld [vmem:[%s1 + $0x44] sm:$0xf]
        %v435 = vld [vmem:[%s1 + $0x48] sm:$0xf]
        %v436 = vld [vmem:[%s1 + $0x4c] sm:$0xf]
        %v437 = vld [vmem:[%s1 + $0x50] sm:$0xf]
        %v438 = vld [vmem:[%s1 + $0x54] sm:$0xf]
        %v439 = vld [vmem:[%s1 + $0x58] sm:$0xf]
        %v440 = vld [vmem:[%s1 + $0x5c] sm:$0xf]
        %v441 = vld [vmem:[%s2] sm:$0x1]
        %v443 = vlaneseq
        %v444 = vshrl.u32 %v443, 7
        %v445 = vsub.s32 0, %v444
        %v446 = vrot.slane %v441, %v445
        %v480 = vunpack.c.l.b16 %v385
        %v481 = vunpack.c.h.b16 %v385
        %v482 = vunpack.c.l.b16 %v386
        %v483 = vunpack.c.h.b16 %v386
        %v484 = vunpack.c.l.b16 %v387
        %v485 = vunpack.c.h.b16 %v387
        %v486 = vunpack.c.l.b16 %v388
        %v487 = vunpack.c.h.b16 %v388
        %v488 = vunpack.c.l.b16 %v389
        %v489 = vunpack.c.h.b16 %v389
        %v490 = vunpack.c.l.b16 %v390
        %v491 = vunpack.c.h.b16 %v390
        %v492 = vunpack.c.l.b16 %v391
        %v493 = vunpack.c.h.b16 %v391
        %v494 = vunpack.c.l.b16 %v392
        %v495 = vunpack.c.h.b16 %v392
        %v496 = vunpack.c.l.b16 %v393
        %v497 = vunpack.c.h.b16 %v393
        %v498 = vunpack.c.l.b16 %v394
        %v499 = vunpack.c.h.b16 %v394
        %v500 = vunpack.c.l.b16 %v395
        %v501 = vunpack.c.h.b16 %v395
        %v502 = vunpack.c.l.b16 %v396
        %v503 = vunpack.c.h.b16 %v396
        %v504 = vunpack.c.l.b16 %v397
        %v505 = vunpack.c.h.b16 %v397
        %v506 = vunpack.c.l.b16 %v398
        %v507 = vunpack.c.h.b16 %v398
        %v508 = vunpack.c.l.b16 %v399
        %v509 = vunpack.c.h.b16 %v399
        %v510 = vunpack.c.l.b16 %v400
        %v511 = vunpack.c.h.b16 %v400
        %v512 = vunpack.c.l.b16 %v401
        %v513 = vunpack.c.h.b16 %v401
        %v514 = vunpack.c.l.b16 %v402
        %v515 = vunpack.c.h.b16 %v402
        %v516 = vunpack.c.l.b16 %v403
        %v517 = vunpack.c.h.b16 %v403
        %v518 = vunpack.c.l.b16 %v404
        %v519 = vunpack.c.h.b16 %v404
        %v520 = vunpack.c.l.b16 %v405
        %v521 = vunpack.c.h.b16 %v405
        %v522 = vunpack.c.l.b16 %v406
        %v523 = vunpack.c.h.b16 %v406
        %v524 = vunpack.c.l.b16 %v407
        %v525 = vunpack.c.h.b16 %v407
        %v526 = vunpack.c.l.b16 %v408
        %v527 = vunpack.c.h.b16 %v408
        %v528 = vunpack.c.l.b16 %v409
        %v529 = vunpack.c.h.b16 %v409
        %v530 = vunpack.c.l.b16 %v410
        %v531 = vunpack.c.h.b16 %v410
        %v532 = vunpack.c.l.b16 %v411
        %v533 = vunpack.c.h.b16 %v411
        %v534 = vunpack.c.l.b16 %v412
        %v535 = vunpack.c.h.b16 %v412
        %v536 = vunpack.c.l.b16 %v413
        %v537 = vunpack.c.h.b16 %v413
        %v538 = vunpack.c.l.b16 %v414
        %v539 = vunpack.c.h.b16 %v414
        %v540 = vunpack.c.l.b16 %v415
        %v541 = vunpack.c.h.b16 %v415
        %v542 = vunpack.c.l.b16 %v416
        %v543 = vunpack.c.h.b16 %v416
        %v544 = vpack.c.b16 %v482, %v480
        %v545 = vpack.c.b16 %v483, %v481
        %v546 = vpack.c.b16 %v486, %v484
        %v547 = vpack.c.b16 %v487, %v485
        %v548 = vpack.c.b16 %v490, %v488
        %v549 = vpack.c.b16 %v491, %v489
        %v550 = vpack.c.b16 %v494, %v492
        %v551 = vpack.c.b16 %v495, %v493
        %v552 = vpack.c.b16 %v498, %v496
        %v553 = vpack.c.b16 %v499, %v497
        %v554 = vpack.c.b16 %v502, %v500
        %v555 = vpack.c.b16 %v503, %v501
        %v556 = vpack.c.b16 %v506, %v504
        %v557 = vpack.c.b16 %v507, %v505
        %v558 = vpack.c.b16 %v510, %v508
        %v559 = vpack.c.b16 %v511, %v509
        %v560 = vpack.c.b16 %v514, %v512
        %v561 = vpack.c.b16 %v515, %v513
        %v562 = vpack.c.b16 %v518, %v516
        %v563 = vpack.c.b16 %v519, %v517
        %v564 = vpack.c.b16 %v522, %v520
        %v565 = vpack.c.b16 %v523, %v521
        %v566 = vpack.c.b16 %v526, %v524
        %v567 = vpack.c.b16 %v527, %v525
        %v568 = vpack.c.b16 %v530, %v528
        %v569 = vpack.c.b16 %v531, %v529
        %v570 = vpack.c.b16 %v534, %v532
        %v571 = vpack.c.b16 %v535, %v533
        %v572 = vpack.c.b16 %v538, %v536
        %v573 = vpack.c.b16 %v539, %v537
        %v574 = vpack.c.b16 %v542, %v540
        %v575 = vpack.c.b16 %v543, %v541
        %v616 = vunpack.c.l.b16 %v417
        %v617 = vunpack.c.l.b16 %v418
        %v618 = vunpack.c.l.b16 %v419
        %v619 = vunpack.c.l.b16 %v420
        %v620 = vunpack.c.l.b16 %v421
        %v621 = vunpack.c.l.b16 %v422
        %v622 = vunpack.c.l.b16 %v423
        %v623 = vunpack.c.l.b16 %v424
        %v624 = vunpack.c.l.b16 %v425
        %v625 = vunpack.c.l.b16 %v426
        %v626 = vunpack.c.l.b16 %v427
        %v627 = vunpack.c.l.b16 %v428
        %v628 = vunpack.c.l.b16 %v429
        %v629 = vunpack.c.l.b16 %v430
        %v630 = vunpack.c.l.b16 %v431
        %v631 = vunpack.c.l.b16 %v432
        %v632 = vunpack.c.l.b16 %v433
        %v633 = vunpack.c.l.b16 %v434
        %v634 = vunpack.c.l.b16 %v435
        %v635 = vunpack.c.l.b16 %v436
        %v636 = vunpack.c.l.b16 %v437
        %v637 = vunpack.c.l.b16 %v438
        %v638 = vunpack.c.l.b16 %v439
        %v639 = vunpack.c.l.b16 %v440
        %v640 = vpack.c.b16 %v617, %v616
        %v641 = vpack.c.b16 %v619, %v618
        %v642 = vpack.c.b16 %v621, %v620
        %v643 = vpack.c.b16 %v623, %v622
        %v644 = vpack.c.b16 %v625, %v624
        %v645 = vpack.c.b16 %v627, %v626
        %v646 = vpack.c.b16 %v629, %v628
        %v647 = vpack.c.b16 %v631, %v630
        %v648 = vpack.c.b16 %v633, %v632
        %v649 = vpack.c.b16 %v635, %v634
        %v650 = vpack.c.b16 %v637, %v636
        %v651 = vpack.c.b16 %v639, %v638
        %vm664 = vcmask 523264
        %v666 = vsel %vm664, %v545, 0
        %v669 = vsel %vm664, %v547, 0
        %v672 = vsel %vm664, %v549, 0
        %v675 = vsel %vm664, %v551, 0
        %v678 = vsel %vm664, %v553, 0
        %v681 = vsel %vm664, %v555, 0
        %v684 = vsel %vm664, %v557, 0
        %v687 = vsel %vm664, %v559, 0
        %v690 = vsel %vm664, %v561, 0
        %v693 = vsel %vm664, %v563, 0
        %v696 = vsel %vm664, %v565, 0
        %v699 = vsel %vm664, %v567, 0
        %v702 = vsel %vm664, %v569, 0
        %v705 = vsel %vm664, %v571, 0
        %v708 = vsel %vm664, %v573, 0
        %v711 = vsel %vm664, %v575, 0
        %713 = vmatprep.subr.bf16.mxu0 0
        %714 = vmatpush1.bf16.msra.mxu0 %v647
        %715 = vmatprep.subr.bf16.mxu0 0
        %716 = vmatpush1.bf16.msra.mxu0 %v646
        %717 = vmatprep.subr.bf16.mxu0 0
        %718 = vmatpush1.bf16.msra.mxu0 %v645
        %719 = vmatprep.subr.bf16.mxu0 0
        %720 = vmatpush1.bf16.msra.mxu0 %v644
        %721 = vmatprep.subr.bf16.mxu0 0
        %722 = vmatpush1.bf16.msra.mxu0 %v643
        %723 = vmatprep.subr.bf16.mxu0 0
        %724 = vmatpush1.bf16.msra.mxu0 %v642
        %725 = vmatprep.subr.bf16.mxu0 0
        %726 = vmatpush1.bf16.msra.mxu0 %v641
        %727 = vmatprep.subr.bf16.mxu0 0
        %728 = vmatpush1.bf16.msra.mxu0 %v640
        %729 = vmatprep.subr.bf16.mxu0 0
        %730 = vmatpush2.bf16.msra.mxu0 0
        %731 = vmatprep.subr.bf16.mxu0 0
        %732 = vmatpush2.bf16.msra.mxu0 0
        %733 = vmatprep.subr.bf16.mxu0 0
        %734 = vmatpush2.bf16.msra.mxu0 0
        %735 = vmatprep.subr.bf16.mxu0 0
        %736 = vmatpush2.bf16.msra.mxu0 0
        %737 = vmatprep.subr.bf16.mxu0 0
        %738 = vmatpush2.bf16.msra.mxu0 %v651
        %739 = vmatprep.subr.bf16.mxu0 0
        %740 = vmatpush2.bf16.msra.mxu0 %v650
        %741 = vmatprep.subr.bf16.mxu0 0
        %742 = vmatpush2.bf16.msra.mxu0 %v649
        %743 = vmatprep.subr.bf16.mxu0 0
        %744 = vmatpush2.bf16.msra.mxu0 %v648
        %745 = vmatprep.mubr.bf16.mxu0 %v666
        %746 = vmatmul.mubr.bf16.gmra.mxu0 %v544
        %v747 = vpop.f32.mrf.mxu0
        %v748 = vadd.f32 %v446, %v747
        %v749 = vpop.f32.mrf.mxu0
        %v750 = vpop.f32.mrf.mxu0
        %v751 = vadd.f32 %v446, %v750
        %v752 = vpop.f32.mrf.mxu0
        %753 = vmatprep.mubr.bf16.mxu0 %v669
        %754 = vmatmul.mubr.bf16.gmra.mxu0 %v546
        %v755 = vpop.f32.mrf.mxu0
        %v756 = vadd.f32 %v446, %v755
        %v757 = vpop.f32.mrf.mxu0
        %v758 = vpop.f32.mrf.mxu0
        %v759 = vadd.f32 %v446, %v758
        %v760 = vpop.f32.mrf.mxu0
        %761 = vmatprep.mubr.bf16.mxu0 %v672
        %762 = vmatmul.mubr.bf16.gmra.mxu0 %v548
        %v763 = vpop.f32.mrf.mxu0
        %v764 = vadd.f32 %v446, %v763
        %v765 = vpop.f32.mrf.mxu0
        %v766 = vpop.f32.mrf.mxu0
        %v767 = vadd.f32 %v446, %v766
        %v768 = vpop.f32.mrf.mxu0
        %769 = vmatprep.mubr.bf16.mxu0 %v675
        %770 = vmatmul.mubr.bf16.gmra.mxu0 %v550
        %v771 = vpop.f32.mrf.mxu0
        %v772 = vadd.f32 %v446, %v771
        %v773 = vpop.f32.mrf.mxu0
        %v774 = vpop.f32.mrf.mxu0
        %v775 = vadd.f32 %v446, %v774
        %v776 = vpop.f32.mrf.mxu0
        %777 = vmatprep.mubr.bf16.mxu0 %v678
        %778 = vmatmul.mubr.bf16.gmra.mxu0 %v552
        %v779 = vpop.f32.mrf.mxu0
        %v780 = vadd.f32 %v446, %v779
        %v781 = vpop.f32.mrf.mxu0
        %v782 = vpop.f32.mrf.mxu0
        %v783 = vadd.f32 %v446, %v782
        %v784 = vpop.f32.mrf.mxu0
        %785 = vmatprep.mubr.bf16.mxu0 %v681
        %786 = vmatmul.mubr.bf16.gmra.mxu0 %v554
        %v787 = vpop.f32.mrf.mxu0
        %v788 = vadd.f32 %v446, %v787
        %v789 = vpop.f32.mrf.mxu0
        %v790 = vpop.f32.mrf.mxu0
        %v791 = vadd.f32 %v446, %v790
        %v792 = vpop.f32.mrf.mxu0
        %793 = vmatprep.mubr.bf16.mxu0 %v684
        %794 = vmatmul.mubr.bf16.gmra.mxu0 %v556
        %v795 = vpop.f32.mrf.mxu0
        %v796 = vadd.f32 %v446, %v795
        %v797 = vpop.f32.mrf.mxu0
        %v798 = vpop.f32.mrf.mxu0
        %v799 = vadd.f32 %v446, %v798
        %v800 = vpop.f32.mrf.mxu0
        %801 = vmatprep.mubr.bf16.mxu0 %v687
        %802 = vmatmul.mubr.bf16.gmra.mxu0 %v558
        %v803 = vpop.f32.mrf.mxu0
        %v804 = vadd.f32 %v446, %v803
        %v805 = vpop.f32.mrf.mxu0
        %v806 = vpop.f32.mrf.mxu0
        %v807 = vadd.f32 %v446, %v806
        %v808 = vpop.f32.mrf.mxu0
        %809 = vmatprep.mubr.bf16.mxu0 %v690
        %810 = vmatmul.mubr.bf16.gmra.mxu0 %v560
        %v811 = vpop.f32.mrf.mxu0
        %v812 = vadd.f32 %v446, %v811
        %v813 = vpop.f32.mrf.mxu0
        %v814 = vpop.f32.mrf.mxu0
        %v815 = vadd.f32 %v446, %v814
        %v816 = vpop.f32.mrf.mxu0
        %817 = vmatprep.mubr.bf16.mxu0 %v693
        %818 = vmatmul.mubr.bf16.gmra.mxu0 %v562
        %v819 = vpop.f32.mrf.mxu0
        %v820 = vadd.f32 %v446, %v819
        %v821 = vpop.f32.mrf.mxu0
        %v822 = vpop.f32.mrf.mxu0
        %v823 = vadd.f32 %v446, %v822
        %v824 = vpop.f32.mrf.mxu0
        %825 = vmatprep.mubr.bf16.mxu0 %v696
        %826 = vmatmul.mubr.bf16.gmra.mxu0 %v564
        %v827 = vpop.f32.mrf.mxu0
        %v828 = vadd.f32 %v446, %v827
        %v829 = vpop.f32.mrf.mxu0
        %v830 = vpop.f32.mrf.mxu0
        %v831 = vadd.f32 %v446, %v830
        %v832 = vpop.f32.mrf.mxu0
        %833 = vmatprep.mubr.bf16.mxu0 %v699
        %834 = vmatmul.mubr.bf16.gmra.mxu0 %v566
        %v835 = vpop.f32.mrf.mxu0
        %v836 = vadd.f32 %v446, %v835
        %v837 = vpop.f32.mrf.mxu0
        %v838 = vpop.f32.mrf.mxu0
        %v839 = vadd.f32 %v446, %v838
        %v840 = vpop.f32.mrf.mxu0
        %841 = vmatprep.mubr.bf16.mxu0 %v702
        %842 = vmatmul.mubr.bf16.gmra.mxu0 %v568
        %v843 = vpop.f32.mrf.mxu0
        %v844 = vadd.f32 %v446, %v843
        %v845 = vpop.f32.mrf.mxu0
        %v846 = vpop.f32.mrf.mxu0
        %v847 = vadd.f32 %v446, %v846
        %v848 = vpop.f32.mrf.mxu0
        %849 = vmatprep.mubr.bf16.mxu0 %v705
        %850 = vmatmul.mubr.bf16.gmra.mxu0 %v570
        %v851 = vpop.f32.mrf.mxu0
        %v852 = vadd.f32 %v446, %v851
        %v853 = vpop.f32.mrf.mxu0
        %v854 = vpop.f32.mrf.mxu0
        %v855 = vadd.f32 %v446, %v854
        %v856 = vpop.f32.mrf.mxu0
        %857 = vmatprep.mubr.bf16.mxu0 %v708
        %858 = vmatmul.mubr.bf16.gmra.mxu0 %v572
        %v859 = vpop.f32.mrf.mxu0
        %v860 = vadd.f32 %v446, %v859
        %v861 = vpop.f32.mrf.mxu0
        %v862 = vpop.f32.mrf.mxu0
        %v863 = vadd.f32 %v446, %v862
        %v864 = vpop.f32.mrf.mxu0
        %865 = vmatprep.mubr.bf16.mxu0 %v711
        %866 = vmatmul.mubr.bf16.gmra.mxu0 %v574
        %v867 = vpop.f32.mrf.mxu0
        %v868 = vadd.f32 %v446, %v867
        %v869 = vpop.f32.mrf.mxu0
        %v870 = vpop.f32.mrf.mxu0
        %v871 = vadd.f32 %v446, %v870
        %v872 = vpop.f32.mrf.mxu0
        %873 = vdwg.mxu0
        %v874 = vmax.f32 %v748, 0.0
        %v875 = vmax.f32 %v751, 0.0
        %v876 = vmax.f32 %v756, 0.0
        %v877 = vmax.f32 %v759, 0.0
        %v878 = vmax.f32 %v764, 0.0
        %v879 = vmax.f32 %v767, 0.0
        %v880 = vmax.f32 %v772, 0.0
        %v881 = vmax.f32 %v775, 0.0
        %v882 = vmax.f32 %v780, 0.0
        %v883 = vmax.f32 %v783, 0.0
        %v884 = vmax.f32 %v788, 0.0
        %v885 = vmax.f32 %v791, 0.0
        %v886 = vmax.f32 %v796, 0.0
        %v887 = vmax.f32 %v799, 0.0
        %v888 = vmax.f32 %v804, 0.0
        %v889 = vmax.f32 %v807, 0.0
        %v890 = vmax.f32 %v812, 0.0
        %v891 = vmax.f32 %v815, 0.0
        %v892 = vmax.f32 %v820, 0.0
        %v893 = vmax.f32 %v823, 0.0
        %v894 = vmax.f32 %v828, 0.0
        %v895 = vmax.f32 %v831, 0.0
        %v896 = vmax.f32 %v836, 0.0
        %v897 = vmax.f32 %v839, 0.0
        %v898 = vmax.f32 %v844, 0.0
        %v899 = vmax.f32 %v847, 0.0
        %v900 = vmax.f32 %v852, 0.0
        %v901 = vmax.f32 %v855, 0.0
        %v902 = vmax.f32 %v860, 0.0
        %v903 = vmax.f32 %v863, 0.0
        %v904 = vmax.f32 %v868, 0.0
        %v905 = vmax.f32 %v871, 0.0
        %906 = vst [vmem:[#allocation2] sm:$0xff] %v874
        %907 = vst [vmem:[#allocation2 + $0x8] sm:$0xff] %v875
        %908 = vst [vmem:[#allocation2 + $0x10] sm:$0xff] %v876
        %909 = vst [vmem:[#allocation2 + $0x18] sm:$0xff] %v877
        %910 = vst [vmem:[#allocation2 + $0x20] sm:$0xff] %v878
        %911 = vst [vmem:[#allocation2 + $0x28] sm:$0xff] %v879
        %912 = vst [vmem:[#allocation2 + $0x30] sm:$0xff] %v880
        %913 = vst [vmem:[#allocation2 + $0x38] sm:$0xff] %v881
        %914 = vst [vmem:[#allocation2 + $0x40] sm:$0xff] %v882
        %915 = vst [vmem:[#allocation2 + $0x48] sm:$0xff] %v883
        %916 = vst [vmem:[#allocation2 + $0x50] sm:$0xff] %v884
        %917 = vst [vmem:[#allocation2 + $0x58] sm:$0xff] %v885
        %918 = vst [vmem:[#allocation2 + $0x60] sm:$0xff] %v886
        %919 = vst [vmem:[#allocation2 + $0x68] sm:$0xff] %v887
        %920 = vst [vmem:[#allocation2 + $0x70] sm:$0xff] %v888
        %921 = vst [vmem:[#allocation2 + $0x78] sm:$0xff] %v889
        %922 = vst [vmem:[#allocation2 + $0x80] sm:$0xff] %v890
        %923 = vst [vmem:[#allocation2 + $0x88] sm:$0xff] %v891
        %924 = vst [vmem:[#allocation2 + $0x90] sm:$0xff] %v892
        %925 = vst [vmem:[#allocation2 + $0x98] sm:$0xff] %v893
        %926 = vst [vmem:[#allocation2 + $0xa0] sm:$0xff] %v894
        %927 = vst [vmem:[#allocation2 + $0xa8] sm:$0xff] %v895
        %928 = vst [vmem:[#allocation2 + $0xb0] sm:$0xff] %v896
        %929 = vst [vmem:[#allocation2 + $0xb8] sm:$0xff] %v897
        %930 = vst [vmem:[#allocation2 + $0xc0] sm:$0xff] %v898
        %931 = vst [vmem:[#allocation2 + $0xc8] sm:$0xff] %v899
        %932 = vst [vmem:[#allocation2 + $0xd0] sm:$0xff] %v900
        %933 = vst [vmem:[#allocation2 + $0xd8] sm:$0xff] %v901
        %934 = vst [vmem:[#allocation2 + $0xe0] sm:$0xff] %v902
        %935 = vst [vmem:[#allocation2 + $0xe8] sm:$0xff] %v903
        %936 = vst [vmem:[#allocation2 + $0xf0] sm:$0xff] %v904
        %937 = vst [vmem:[#allocation2 + $0xf8] sm:$0xff] %v905
        %v938 = vld [vmem:[#allocation2] sm:$0xff]
        %v939 = vld [vmem:[#allocation2 + $0x8] sm:$0xff]
        %v940 = vld [vmem:[#allocation2 + $0x10] sm:$0xff]
        %v941 = vld [vmem:[#allocation2 + $0x18] sm:$0xff]
        %v942 = vld [vmem:[#allocation2 + $0x20] sm:$0xff]
        %v943 = vld [vmem:[#allocation2 + $0x28] sm:$0xff]
        %v944 = vpack.c.bf16 %v939, %v938
        %v945 = vpack.c.bf16 %v941, %v940
        %v946 = vpack.c.bf16 %v943, %v942
        %v947 = vld [vmem:[%s3] sm:$0xf]
        %v948 = vld [vmem:[%s3 + $0x4] sm:$0xf]
        %v949 = vld [vmem:[%s3 + $0x8] sm:$0xf]
        %v950 = vld [vmem:[%s3 + $0xc] sm:$0xf]
        %v951 = vld [vmem:[#allocation2 + $0x40] sm:$0xff]
        %v952 = vld [vmem:[#allocation2 + $0x48] sm:$0xff]
        %v953 = vld [vmem:[#allocation2 + $0x50] sm:$0xff]
        %v954 = vld [vmem:[#allocation2 + $0x58] sm:$0xff]
        %v955 = vld [vmem:[#allocation2 + $0x60] sm:$0xff]
        %v956 = vld [vmem:[#allocation2 + $0x68] sm:$0xff]
        %v957 = vpack.c.bf16 %v952, %v951
        %v958 = vpack.c.bf16 %v954, %v953
        %v959 = vpack.c.bf16 %v956, %v955
        %s960 = scalar_lea.vmem %s3, 16
        %v961 = vld [vmem:[%s960] sm:$0xf]
        %v962 = vld [vmem:[%s960 + $0x4] sm:$0xf]
        %v963 = vld [vmem:[%s960 + $0x8] sm:$0xf]
        %v964 = vld [vmem:[%s960 + $0xc] sm:$0xf]
        %v969 = vunpack.c.l.b16 %v961
        %v970 = vunpack.c.l.b16 %v962
        %v971 = vunpack.c.l.b16 %v963
        %v972 = vunpack.c.l.b16 %v964
        %v973 = vpack.c.b16 %v970, %v969
        %v974 = vpack.c.b16 %v972, %v971
        %vm977 = vcmask 261120
        %v979 = vsel %vm977, %v957, 0
        %v982 = vsel %vm977, %v958, 0
        %v985 = vsel %vm977, %v959, 0
        %987 = vmatprep.subr.bf16.mxu0 0
        %988 = vmatpush1.bf16.msra.mxu0 0
        %989 = vmatprep.subr.bf16.mxu0 0
        %990 = vmatpush1.bf16.msra.mxu0 0
        %991 = vmatprep.subr.bf16.mxu0 0
        %992 = vmatpush1.bf16.msra.mxu0 0
        %993 = vmatprep.subr.bf16.mxu0 0
        %994 = vmatpush1.bf16.msra.mxu0 0
        %995 = vmatprep.subr.bf16.mxu0 0
        %996 = vmatpush1.bf16.msra.mxu0 0
        %997 = vmatprep.subr.bf16.mxu0 0
        %998 = vmatpush1.bf16.msra.mxu0 0
        %999 = vmatprep.subr.bf16.mxu0 0
        %1000 = vmatpush1.bf16.msra.mxu0 %v974
        %1001 = vmatprep.subr.bf16.mxu0 0
        %1002 = vmatpush1.bf16.msra.mxu0 %v973
        %1003 = vmatprep.subr.bf16.mxu0 0
        %1004 = vmatpush2.bf16.msra.mxu0 0
        %1005 = vmatprep.subr.bf16.mxu0 0
        %1006 = vmatpush2.bf16.msra.mxu0 0
        %1007 = vmatprep.subr.bf16.mxu0 0
        %1008 = vmatpush2.bf16.msra.mxu0 0
        %1009 = vmatprep.subr.bf16.mxu0 0
        %1010 = vmatpush2.bf16.msra.mxu0 0
        %1011 = vmatprep.subr.bf16.mxu0 0
        %1012 = vmatpush2.bf16.msra.mxu0 0
        %1013 = vmatprep.subr.bf16.mxu0 0
        %1014 = vmatpush2.bf16.msra.mxu0 0
        %1015 = vmatprep.subr.bf16.mxu0 0
        %1016 = vmatpush2.bf16.msra.mxu0 0
        %1017 = vmatprep.subr.bf16.mxu0 0
        %1018 = vmatpush2.bf16.msra.mxu0 0
        %1019 = vmatprep.mubr.bf16.mxu0 0
        %1020 = vmatmul.mubr.bf16.gmra.mxu0 %v979
        %v1021 = vpop.f32.mrf.mxu0
        %v1022 = vadd.f32 0.0, %v1021
        %v1023 = vpop.f32.mrf.mxu0
        %v1024 = vpop.f32.mrf.mxu0
        %v1025 = vadd.f32 0.0, %v1024
        %v1026 = vpop.f32.mrf.mxu0
        %1027 = vmatprep.mubr.bf16.mxu0 0
        %1028 = vmatmul.mubr.bf16.gmra.mxu0 %v982
        %v1029 = vpop.f32.mrf.mxu0
        %v1030 = vadd.f32 0.0, %v1029
        %v1031 = vpop.f32.mrf.mxu0
        %v1032 = vpop.f32.mrf.mxu0
        %v1033 = vadd.f32 0.0, %v1032
        %v1034 = vpop.f32.mrf.mxu0
        %1035 = vmatprep.mubr.bf16.mxu0 0
        %1036 = vmatmul.mubr.bf16.gmra.mxu0 %v985
        %v1037 = vpop.f32.mrf.mxu0
        %v1038 = vadd.f32 0.0, %v1037
        %v1039 = vpop.f32.mrf.mxu0
        %v1040 = vpop.f32.mrf.mxu0
        %v1041 = vadd.f32 0.0, %v1040
        %v1042 = vpop.f32.mrf.mxu0
        %1043 = vdwg.mxu0
        %v1048 = vunpack.c.l.b16 %v947
        %v1049 = vunpack.c.l.b16 %v948
        %v1050 = vunpack.c.l.b16 %v949
        %v1051 = vunpack.c.l.b16 %v950
        %v1052 = vpack.c.b16 %v1049, %v1048
        %v1053 = vpack.c.b16 %v1051, %v1050
        %v1057 = vsel %vm977, %v944, 0
        %v1060 = vsel %vm977, %v945, 0
        %v1063 = vsel %vm977, %v946, 0
        %1065 = vmatprep.subr.bf16.mxu0 0
        %1066 = vmatpush1.bf16.msra.mxu0 0
        %1067 = vmatprep.subr.bf16.mxu0 0
        %1068 = vmatpush1.bf16.msra.mxu0 0
        %1069 = vmatprep.subr.bf16.mxu0 0
        %1070 = vmatpush1.bf16.msra.mxu0 0
        %1071 = vmatprep.subr.bf16.mxu0 0
        %1072 = vmatpush1.bf16.msra.mxu0 0
        %1073 = vmatprep.subr.bf16.mxu0 0
        %1074 = vmatpush1.bf16.msra.mxu0 0
        %1075 = vmatprep.subr.bf16.mxu0 0
        %1076 = vmatpush1.bf16.msra.mxu0 0
        %1077 = vmatprep.subr.bf16.mxu0 0
        %1078 = vmatpush1.bf16.msra.mxu0 %v1053
        %1079 = vmatprep.subr.bf16.mxu0 0
        %1080 = vmatpush1.bf16.msra.mxu0 %v1052
        %1081 = vmatprep.subr.bf16.mxu0 0
        %1082 = vmatpush2.bf16.msra.mxu0 0
        %1083 = vmatprep.subr.bf16.mxu0 0
        %1084 = vmatpush2.bf16.msra.mxu0 0
        %1085 = vmatprep.subr.bf16.mxu0 0
        %1086 = vmatpush2.bf16.msra.mxu0 0
        %1087 = vmatprep.subr.bf16.mxu0 0
        %1088 = vmatpush2.bf16.msra.mxu0 0
        %1089 = vmatprep.subr.bf16.mxu0 0
        %1090 = vmatpush2.bf16.msra.mxu0 0
        %1091 = vmatprep.subr.bf16.mxu0 0
        %1092 = vmatpush2.bf16.msra.mxu0 0
        %1093 = vmatprep.subr.bf16.mxu0 0
        %1094 = vmatpush2.bf16.msra.mxu0 0
        %1095 = vmatprep.subr.bf16.mxu0 0
        %1096 = vmatpush2.bf16.msra.mxu0 0
        %1097 = vmatprep.mubr.bf16.mxu0 0
        %1098 = vmatmul.mubr.bf16.gmra.mxu0 %v1057
        %v1099 = vpop.f32.mrf.mxu0
        %v1100 = vadd.f32 %v1022, %v1099
        %v1101 = vpop.f32.mrf.mxu0
        %v1102 = vpop.f32.mrf.mxu0
        %v1103 = vadd.f32 %v1025, %v1102
        %v1104 = vpop.f32.mrf.mxu0
        %1105 = vmatprep.mubr.bf16.mxu0 0
        %1106 = vmatmul.mubr.bf16.gmra.mxu0 %v1060
        %v1107 = vpop.f32.mrf.mxu0
        %v1108 = vadd.f32 %v1030, %v1107
        %v1109 = vpop.f32.mrf.mxu0
        %v1110 = vpop.f32.mrf.mxu0
        %v1111 = vadd.f32 %v1033, %v1110
        %v1112 = vpop.f32.mrf.mxu0
        %1113 = vmatprep.mubr.bf16.mxu0 0
        %1114 = vmatmul.mubr.bf16.gmra.mxu0 %v1063
        %v1115 = vpop.f32.mrf.mxu0
        %v1116 = vadd.f32 %v1038, %v1115
        %v1117 = vpop.f32.mrf.mxu0
        %v1118 = vpop.f32.mrf.mxu0
        %v1119 = vadd.f32 %v1041, %v1118
        %v1120 = vpop.f32.mrf.mxu0
        %1121 = vdwg.mxu0
        %v1122 = vld [vmem:[#allocation2 + $0x1] sm:$0xff]
        %v1123 = vld [vmem:[#allocation2 + $0x9] sm:$0xff]
        %v1124 = vld [vmem:[#allocation2 + $0x11] sm:$0xff]
        %v1125 = vld [vmem:[#allocation2 + $0x19] sm:$0xff]
        %v1126 = vld [vmem:[#allocation2 + $0x21] sm:$0xff]
        %v1127 = vld [vmem:[#allocation2 + $0x29] sm:$0xff]
        %v1128 = vpack.c.bf16 %v1123, %v1122
        %v1129 = vpack.c.bf16 %v1125, %v1124
        %v1130 = vpack.c.bf16 %v1127, %v1126
        %s1131 = scalar_lea.vmem %s3, 32
        %v1132 = vld [vmem:[%s1131] sm:$0xf]
        %v1133 = vld [vmem:[%s1131 + $0x4] sm:$0xf]
        %v1134 = vld [vmem:[%s1131 + $0x8] sm:$0xf]
        %v1135 = vld [vmem:[%s1131 + $0xc] sm:$0xf]
        %v1140 = vunpack.c.l.b16 %v1132
        %v1141 = vunpack.c.l.b16 %v1133
        %v1142 = vunpack.c.l.b16 %v1134
        %v1143 = vunpack.c.l.b16 %v1135
        %v1144 = vpack.c.b16 %v1141, %v1140
        %v1145 = vpack.c.b16 %v1143, %v1142
        %v1149 = vsel %vm977, %v1128, 0
        %v1152 = vsel %vm977, %v1129, 0
        %v1155 = vsel %vm977, %v1130, 0
        %1157 = vmatprep.subr.bf16.mxu0 0
        %1158 = vmatpush1.bf16.msra.mxu0 0
        %1159 = vmatprep.subr.bf16.mxu0 0
        %1160 = vmatpush1.bf16.msra.mxu0 0
        %1161 = vmatprep.subr.bf16.mxu0 0
        %1162 = vmatpush1.bf16.msra.mxu0 0
        %1163 = vmatprep.subr.bf16.mxu0 0
        %1164 = vmatpush1.bf16.msra.mxu0 0
        %1165 = vmatprep.subr.bf16.mxu0 0
        %1166 = vmatpush1.bf16.msra.mxu0 0
        %1167 = vmatprep.subr.bf16.mxu0 0
        %1168 = vmatpush1.bf16.msra.mxu0 0
        %1169 = vmatprep.subr.bf16.mxu0 0
        %1170 = vmatpush1.bf16.msra.mxu0 %v1145
        %1171 = vmatprep.subr.bf16.mxu0 0
        %1172 = vmatpush1.bf16.msra.mxu0 %v1144
        %1173 = vmatprep.subr.bf16.mxu0 0
        %1174 = vmatpush2.bf16.msra.mxu0 0
        %1175 = vmatprep.subr.bf16.mxu0 0
        %1176 = vmatpush2.bf16.msra.mxu0 0
        %1177 = vmatprep.subr.bf16.mxu0 0
        %1178 = vmatpush2.bf16.msra.mxu0 0
        %1179 = vmatprep.subr.bf16.mxu0 0
        %1180 = vmatpush2.bf16.msra.mxu0 0
        %1181 = vmatprep.subr.bf16.mxu0 0
        %1182 = vmatpush2.bf16.msra.mxu0 0
        %1183 = vmatprep.subr.bf16.mxu0 0
        %1184 = vmatpush2.bf16.msra.mxu0 0
        %1185 = vmatprep.subr.bf16.mxu0 0
        %1186 = vmatpush2.bf16.msra.mxu0 0
        %1187 = vmatprep.subr.bf16.mxu0 0
        %1188 = vmatpush2.bf16.msra.mxu0 0
        %1189 = vmatprep.mubr.bf16.mxu0 0
        %1190 = vmatmul.mubr.bf16.gmra.mxu0 %v1149
        %v1191 = vpop.f32.mrf.mxu0
        %v1192 = vadd.f32 0.0, %v1191
        %v1193 = vpop.f32.mrf.mxu0
        %v1194 = vpop.f32.mrf.mxu0
        %v1195 = vadd.f32 0.0, %v1194
        %v1196 = vpop.f32.mrf.mxu0
        %1197 = vmatprep.mubr.bf16.mxu0 0
        %1198 = vmatmul.mubr.bf16.gmra.mxu0 %v1152
        %v1199 = vpop.f32.mrf.mxu0
        %v1200 = vadd.f32 0.0, %v1199
        %v1201 = vpop.f32.mrf.mxu0
        %v1202 = vpop.f32.mrf.mxu0
        %v1203 = vadd.f32 0.0, %v1202
        %v1204 = vpop.f32.mrf.mxu0
        %1205 = vmatprep.mubr.bf16.mxu0 0
        %1206 = vmatmul.mubr.bf16.gmra.mxu0 %v1155
        %v1207 = vpop.f32.mrf.mxu0
        %v1208 = vadd.f32 0.0, %v1207
        %v1209 = vpop.f32.mrf.mxu0
        %v1210 = vpop.f32.mrf.mxu0
        %v1211 = vadd.f32 0.0, %v1210
        %v1212 = vpop.f32.mrf.mxu0
        %1213 = vdwg.mxu0
        %v1214 = vadd.f32 %v1100, %v1192
        %v1215 = vadd.f32 %v1103, %v1195
        %v1216 = vadd.f32 %v1108, %v1200
        %v1217 = vadd.f32 %v1111, %v1203
        %v1218 = vadd.f32 %v1116, %v1208
        %v1219 = vadd.f32 %v1119, %v1211
        %v1220 = vld [vmem:[#allocation2 + $0x41] sm:$0xff]
        %v1221 = vld [vmem:[#allocation2 + $0x49] sm:$0xff]
        %v1222 = vld [vmem:[#allocation2 + $0x51] sm:$0xff]
        %v1223 = vld [vmem:[#allocation2 + $0x59] sm:$0xff]
        %v1224 = vld [vmem:[#allocation2 + $0x61] sm:$0xff]
        %v1225 = vld [vmem:[#allocation2 + $0x69] sm:$0xff]
        %v1226 = vpack.c.bf16 %v1221, %v1220
        %v1227 = vpack.c.bf16 %v1223, %v1222
        %v1228 = vpack.c.bf16 %v1225, %v1224
        %s1229 = scalar_lea.vmem %s3, 48
        %v1230 = vld [vmem:[%s1229] sm:$0xf]
        %v1231 = vld [vmem:[%s1229 + $0x4] sm:$0xf]
        %v1232 = vld [vmem:[%s1229 + $0x8] sm:$0xf]
        %v1233 = vld [vmem:[%s1229 + $0xc] sm:$0xf]
        %v1238 = vunpack.c.l.b16 %v1230
        %v1239 = vunpack.c.l.b16 %v1231
        %v1240 = vunpack.c.l.b16 %v1232
        %v1241 = vunpack.c.l.b16 %v1233
        %v1242 = vpack.c.b16 %v1239, %v1238
        %v1243 = vpack.c.b16 %v1241, %v1240
        %v1247 = vsel %vm977, %v1226, 0
        %v1250 = vsel %vm977, %v1227, 0
        %v1253 = vsel %vm977, %v1228, 0
        %1255 = vmatprep.subr.bf16.mxu0 0
        %1256 = vmatpush1.bf16.msra.mxu0 0
        %1257 = vmatprep.subr.bf16.mxu0 0
        %1258 = vmatpush1.bf16.msra.mxu0 0
        %1259 = vmatprep.subr.bf16.mxu0 0
        %1260 = vmatpush1.bf16.msra.mxu0 0
        %1261 = vmatprep.subr.bf16.mxu0 0
        %1262 = vmatpush1.bf16.msra.mxu0 0
        %1263 = vmatprep.subr.bf16.mxu0 0
        %1264 = vmatpush1.bf16.msra.mxu0 0
        %1265 = vmatprep.subr.bf16.mxu0 0
        %1266 = vmatpush1.bf16.msra.mxu0 0
        %1267 = vmatprep.subr.bf16.mxu0 0
        %1268 = vmatpush1.bf16.msra.mxu0 %v1243
        %1269 = vmatprep.subr.bf16.mxu0 0
        %1270 = vmatpush1.bf16.msra.mxu0 %v1242
        %1271 = vmatprep.subr.bf16.mxu0 0
        %1272 = vmatpush2.bf16.msra.mxu0 0
        %1273 = vmatprep.subr.bf16.mxu0 0
        %1274 = vmatpush2.bf16.msra.mxu0 0
        %1275 = vmatprep.subr.bf16.mxu0 0
        %1276 = vmatpush2.bf16.msra.mxu0 0
        %1277 = vmatprep.subr.bf16.mxu0 0
        %1278 = vmatpush2.bf16.msra.mxu0 0
        %1279 = vmatprep.subr.bf16.mxu0 0
        %1280 = vmatpush2.bf16.msra.mxu0 0
        %1281 = vmatprep.subr.bf16.mxu0 0
        %1282 = vmatpush2.bf16.msra.mxu0 0
        %1283 = vmatprep.subr.bf16.mxu0 0
        %1284 = vmatpush2.bf16.msra.mxu0 0
        %1285 = vmatprep.subr.bf16.mxu0 0
        %1286 = vmatpush2.bf16.msra.mxu0 0
        %1287 = vmatprep.mubr.bf16.mxu0 0
        %1288 = vmatmul.mubr.bf16.gmra.mxu0 %v1247
        %v1289 = vpop.f32.mrf.mxu0
        %v1290 = vadd.f32 0.0, %v1289
        %v1291 = vpop.f32.mrf.mxu0
        %v1292 = vpop.f32.mrf.mxu0
        %v1293 = vadd.f32 0.0, %v1292
        %v1294 = vpop.f32.mrf.mxu0
        %1295 = vmatprep.mubr.bf16.mxu0 0
        %1296 = vmatmul.mubr.bf16.gmra.mxu0 %v1250
        %v1297 = vpop.f32.mrf.mxu0
        %v1298 = vadd.f32 0.0, %v1297
        %v1299 = vpop.f32.mrf.mxu0
        %v1300 = vpop.f32.mrf.mxu0
        %v1301 = vadd.f32 0.0, %v1300
        %v1302 = vpop.f32.mrf.mxu0
        %1303 = vmatprep.mubr.bf16.mxu0 0
        %1304 = vmatmul.mubr.bf16.gmra.mxu0 %v1253
        %v1305 = vpop.f32.mrf.mxu0
        %v1306 = vadd.f32 0.0, %v1305
        %v1307 = vpop.f32.mrf.mxu0
        %v1308 = vpop.f32.mrf.mxu0
        %v1309 = vadd.f32 0.0, %v1308
        %v1310 = vpop.f32.mrf.mxu0
        %1311 = vdwg.mxu0
        %v1312 = vadd.f32 %v1214, %v1290
        %v1313 = vadd.f32 %v1215, %v1293
        %v1314 = vadd.f32 %v1216, %v1298
        %v1315 = vadd.f32 %v1217, %v1301
        %v1316 = vadd.f32 %v1218, %v1306
        %v1317 = vadd.f32 %v1219, %v1309
        %v1318 = vld [vmem:[#allocation2 + $0x80] sm:$0xff]
        %v1319 = vld [vmem:[#allocation2 + $0x88] sm:$0xff]
        %v1320 = vld [vmem:[#allocation2 + $0x90] sm:$0xff]
        %v1321 = vld [vmem:[#allocation2 + $0x98] sm:$0xff]
        %v1322 = vld [vmem:[#allocation2 + $0xa0] sm:$0xff]
        %v1323 = vld [vmem:[#allocation2 + $0xa8] sm:$0xff]
        %v1324 = vpack.c.bf16 %v1319, %v1318
        %v1325 = vpack.c.bf16 %v1321, %v1320
        %v1326 = vpack.c.bf16 %v1323, %v1322
        %s1327 = scalar_lea.vmem %s3, 64
        %v1328 = vld [vmem:[%s1327] sm:$0xf]
        %v1329 = vld [vmem:[%s1327 + $0x4] sm:$0xf]
        %v1330 = vld [vmem:[%s1327 + $0x8] sm:$0xf]
        %v1331 = vld [vmem:[%s1327 + $0xc] sm:$0xf]
        %v1336 = vunpack.c.l.b16 %v1328
        %v1337 = vunpack.c.l.b16 %v1329
        %v1338 = vunpack.c.l.b16 %v1330
        %v1339 = vunpack.c.l.b16 %v1331
        %v1340 = vpack.c.b16 %v1337, %v1336
        %v1341 = vpack.c.b16 %v1339, %v1338
        %v1345 = vsel %vm977, %v1324, 0
        %v1348 = vsel %vm977, %v1325, 0
        %v1351 = vsel %vm977, %v1326, 0
        %1353 = vmatprep.subr.bf16.mxu0 0
        %1354 = vmatpush1.bf16.msra.mxu0 0
        %1355 = vmatprep.subr.bf16.mxu0 0
        %1356 = vmatpush1.bf16.msra.mxu0 0
        %1357 = vmatprep.subr.bf16.mxu0 0
        %1358 = vmatpush1.bf16.msra.mxu0 0
        %1359 = vmatprep.subr.bf16.mxu0 0
        %1360 = vmatpush1.bf16.msra.mxu0 0
        %1361 = vmatprep.subr.bf16.mxu0 0
        %1362 = vmatpush1.bf16.msra.mxu0 0
        %1363 = vmatprep.subr.bf16.mxu0 0
        %1364 = vmatpush1.bf16.msra.mxu0 0
        %1365 = vmatprep.subr.bf16.mxu0 0
        %1366 = vmatpush1.bf16.msra.mxu0 %v1341
        %1367 = vmatprep.subr.bf16.mxu0 0
        %1368 = vmatpush1.bf16.msra.mxu0 %v1340
        %1369 = vmatprep.subr.bf16.mxu0 0
        %1370 = vmatpush2.bf16.msra.mxu0 0
        %1371 = vmatprep.subr.bf16.mxu0 0
        %1372 = vmatpush2.bf16.msra.mxu0 0
        %1373 = vmatprep.subr.bf16.mxu0 0
        %1374 = vmatpush2.bf16.msra.mxu0 0
        %1375 = vmatprep.subr.bf16.mxu0 0
        %1376 = vmatpush2.bf16.msra.mxu0 0
        %1377 = vmatprep.subr.bf16.mxu0 0
        %1378 = vmatpush2.bf16.msra.mxu0 0
        %1379 = vmatprep.subr.bf16.mxu0 0
        %1380 = vmatpush2.bf16.msra.mxu0 0
        %1381 = vmatprep.subr.bf16.mxu0 0
        %1382 = vmatpush2.bf16.msra.mxu0 0
        %1383 = vmatprep.subr.bf16.mxu0 0
        %1384 = vmatpush2.bf16.msra.mxu0 0
        %1385 = vmatprep.mubr.bf16.mxu0 0
        %1386 = vmatmul.mubr.bf16.gmra.mxu0 %v1345
        %v1387 = vpop.f32.mrf.mxu0
        %v1388 = vadd.f32 0.0, %v1387
        %v1389 = vpop.f32.mrf.mxu0
        %v1390 = vpop.f32.mrf.mxu0
        %v1391 = vadd.f32 0.0, %v1390
        %v1392 = vpop.f32.mrf.mxu0
        %1393 = vmatprep.mubr.bf16.mxu0 0
        %1394 = vmatmul.mubr.bf16.gmra.mxu0 %v1348
        %v1395 = vpop.f32.mrf.mxu0
        %v1396 = vadd.f32 0.0, %v1395
        %v1397 = vpop.f32.mrf.mxu0
        %v1398 = vpop.f32.mrf.mxu0
        %v1399 = vadd.f32 0.0, %v1398
        %v1400 = vpop.f32.mrf.mxu0
        %1401 = vmatprep.mubr.bf16.mxu0 0
        %1402 = vmatmul.mubr.bf16.gmra.mxu0 %v1351
        %v1403 = vpop.f32.mrf.mxu0
        %v1404 = vadd.f32 0.0, %v1403
        %v1405 = vpop.f32.mrf.mxu0
        %v1406 = vpop.f32.mrf.mxu0
        %v1407 = vadd.f32 0.0, %v1406
        %v1408 = vpop.f32.mrf.mxu0
        %1409 = vdwg.mxu0
        %v1410 = vadd.f32 %v1312, %v1388
        %v1411 = vadd.f32 %v1313, %v1391
        %v1412 = vadd.f32 %v1314, %v1396
        %v1413 = vadd.f32 %v1315, %v1399
        %v1414 = vadd.f32 %v1316, %v1404
        %v1415 = vadd.f32 %v1317, %v1407
        %v1416 = vld [vmem:[#allocation2 + $0xc0] sm:$0xff]
        %v1417 = vld [vmem:[#allocation2 + $0xc8] sm:$0xff]
        %v1418 = vld [vmem:[#allocation2 + $0xd0] sm:$0xff]
        %v1419 = vld [vmem:[#allocation2 + $0xd8] sm:$0xff]
        %v1420 = vld [vmem:[#allocation2 + $0xe0] sm:$0xff]
        %v1421 = vld [vmem:[#allocation2 + $0xe8] sm:$0xff]
        %v1422 = vpack.c.bf16 %v1417, %v1416
        %v1423 = vpack.c.bf16 %v1419, %v1418
        %v1424 = vpack.c.bf16 %v1421, %v1420
        %s1425 = scalar_lea.vmem %s3, 80
        %v1426 = vld [vmem:[%s1425] sm:$0xf]
        %v1427 = vld [vmem:[%s1425 + $0x4] sm:$0xf]
        %v1428 = vld [vmem:[%s1425 + $0x8] sm:$0xf]
        %v1429 = vld [vmem:[%s1425 + $0xc] sm:$0xf]
        %v1434 = vunpack.c.l.b16 %v1426
        %v1435 = vunpack.c.l.b16 %v1427
        %v1436 = vunpack.c.l.b16 %v1428
        %v1437 = vunpack.c.l.b16 %v1429
        %v1438 = vpack.c.b16 %v1435, %v1434
        %v1439 = vpack.c.b16 %v1437, %v1436
        %v1443 = vsel %vm977, %v1422, 0
        %v1446 = vsel %vm977, %v1423, 0
        %v1449 = vsel %vm977, %v1424, 0
        %1451 = vmatprep.subr.bf16.mxu0 0
        %1452 = vmatpush1.bf16.msra.mxu0 0
        %1453 = vmatprep.subr.bf16.mxu0 0
        %1454 = vmatpush1.bf16.msra.mxu0 0
        %1455 = vmatprep.subr.bf16.mxu0 0
        %1456 = vmatpush1.bf16.msra.mxu0 0
        %1457 = vmatprep.subr.bf16.mxu0 0
        %1458 = vmatpush1.bf16.msra.mxu0 0
        %1459 = vmatprep.subr.bf16.mxu0 0
        %1460 = vmatpush1.bf16.msra.mxu0 0
        %1461 = vmatprep.subr.bf16.mxu0 0
        %1462 = vmatpush1.bf16.msra.mxu0 0
        %1463 = vmatprep.subr.bf16.mxu0 0
        %1464 = vmatpush1.bf16.msra.mxu0 %v1439
        %1465 = vmatprep.subr.bf16.mxu0 0
        %1466 = vmatpush1.bf16.msra.mxu0 %v1438
        %1467 = vmatprep.subr.bf16.mxu0 0
        %1468 = vmatpush2.bf16.msra.mxu0 0
        %1469 = vmatprep.subr.bf16.mxu0 0
        %1470 = vmatpush2.bf16.msra.mxu0 0
        %1471 = vmatprep.subr.bf16.mxu0 0
        %1472 = vmatpush2.bf16.msra.mxu0 0
        %1473 = vmatprep.subr.bf16.mxu0 0
        %1474 = vmatpush2.bf16.msra.mxu0 0
        %1475 = vmatprep.subr.bf16.mxu0 0
        %1476 = vmatpush2.bf16.msra.mxu0 0
        %1477 = vmatprep.subr.bf16.mxu0 0
        %1478 = vmatpush2.bf16.msra.mxu0 0
        %1479 = vmatprep.subr.bf16.mxu0 0
        %1480 = vmatpush2.bf16.msra.mxu0 0
        %1481 = vmatprep.subr.bf16.mxu0 0
        %1482 = vmatpush2.bf16.msra.mxu0 0
        %1483 = vmatprep.mubr.bf16.mxu0 0
        %1484 = vmatmul.mubr.bf16.gmra.mxu0 %v1443
        %v1485 = vpop.f32.mrf.mxu0
        %v1486 = vadd.f32 0.0, %v1485
        %v1487 = vpop.f32.mrf.mxu0
        %v1488 = vpop.f32.mrf.mxu0
        %v1489 = vadd.f32 0.0, %v1488
        %v1490 = vpop.f32.mrf.mxu0
        %1491 = vmatprep.mubr.bf16.mxu0 0
        %1492 = vmatmul.mubr.bf16.gmra.mxu0 %v1446
        %v1493 = vpop.f32.mrf.mxu0
        %v1494 = vadd.f32 0.0, %v1493
        %v1495 = vpop.f32.mrf.mxu0
        %v1496 = vpop.f32.mrf.mxu0
        %v1497 = vadd.f32 0.0, %v1496
        %v1498 = vpop.f32.mrf.mxu0
        %1499 = vmatprep.mubr.bf16.mxu0 0
        %1500 = vmatmul.mubr.bf16.gmra.mxu0 %v1449
        %v1501 = vpop.f32.mrf.mxu0
        %v1502 = vadd.f32 0.0, %v1501
        %v1503 = vpop.f32.mrf.mxu0
        %v1504 = vpop.f32.mrf.mxu0
        %v1505 = vadd.f32 0.0, %v1504
        %v1506 = vpop.f32.mrf.mxu0
        %1507 = vdwg.mxu0
        %v1508 = vadd.f32 %v1410, %v1486
        %v1509 = vadd.f32 %v1411, %v1489
        %v1510 = vadd.f32 %v1412, %v1494
        %v1511 = vadd.f32 %v1413, %v1497
        %v1512 = vadd.f32 %v1414, %v1502
        %v1513 = vadd.f32 %v1415, %v1505
        %v1514 = vld [vmem:[#allocation2 + $0x81] sm:$0xff]
        %v1515 = vld [vmem:[#allocation2 + $0x89] sm:$0xff]
        %v1516 = vld [vmem:[#allocation2 + $0x91] sm:$0xff]
        %v1517 = vld [vmem:[#allocation2 + $0x99] sm:$0xff]
        %v1518 = vld [vmem:[#allocation2 + $0xa1] sm:$0xff]
        %v1519 = vld [vmem:[#allocation2 + $0xa9] sm:$0xff]
        %v1520 = vpack.c.bf16 %v1515, %v1514
        %v1521 = vpack.c.bf16 %v1517, %v1516
        %v1522 = vpack.c.bf16 %v1519, %v1518
        %s1523 = scalar_lea.vmem %s3, 96
        %v1524 = vld [vmem:[%s1523] sm:$0xf]
        %v1525 = vld [vmem:[%s1523 + $0x4] sm:$0xf]
        %v1526 = vld [vmem:[%s1523 + $0x8] sm:$0xf]
        %v1527 = vld [vmem:[%s1523 + $0xc] sm:$0xf]
        %v1532 = vunpack.c.l.b16 %v1524
        %v1533 = vunpack.c.l.b16 %v1525
        %v1534 = vunpack.c.l.b16 %v1526
        %v1535 = vunpack.c.l.b16 %v1527
        %v1536 = vpack.c.b16 %v1533, %v1532
        %v1537 = vpack.c.b16 %v1535, %v1534
        %v1541 = vsel %vm977, %v1520, 0
        %v1544 = vsel %vm977, %v1521, 0
        %v1547 = vsel %vm977, %v1522, 0
        %1549 = vmatprep.subr.bf16.mxu0 0
        %1550 = vmatpush1.bf16.msra.mxu0 0
        %1551 = vmatprep.subr.bf16.mxu0 0
        %1552 = vmatpush1.bf16.msra.mxu0 0
        %1553 = vmatprep.subr.bf16.mxu0 0
        %1554 = vmatpush1.bf16.msra.mxu0 0
        %1555 = vmatprep.subr.bf16.mxu0 0
        %1556 = vmatpush1.bf16.msra.mxu0 0
        %1557 = vmatprep.subr.bf16.mxu0 0
        %1558 = vmatpush1.bf16.msra.mxu0 0
        %1559 = vmatprep.subr.bf16.mxu0 0
        %1560 = vmatpush1.bf16.msra.mxu0 0
        %1561 = vmatprep.subr.bf16.mxu0 0
        %1562 = vmatpush1.bf16.msra.mxu0 %v1537
        %1563 = vmatprep.subr.bf16.mxu0 0
        %1564 = vmatpush1.bf16.msra.mxu0 %v1536
        %1565 = vmatprep.subr.bf16.mxu0 0
        %1566 = vmatpush2.bf16.msra.mxu0 0
        %1567 = vmatprep.subr.bf16.mxu0 0
        %1568 = vmatpush2.bf16.msra.mxu0 0
        %1569 = vmatprep.subr.bf16.mxu0 0
        %1570 = vmatpush2.bf16.msra.mxu0 0
        %1571 = vmatprep.subr.bf16.mxu0 0
        %1572 = vmatpush2.bf16.msra.mxu0 0
        %1573 = vmatprep.subr.bf16.mxu0 0
        %1574 = vmatpush2.bf16.msra.mxu0 0
        %1575 = vmatprep.subr.bf16.mxu0 0
        %1576 = vmatpush2.bf16.msra.mxu0 0
        %1577 = vmatprep.subr.bf16.mxu0 0
        %1578 = vmatpush2.bf16.msra.mxu0 0
        %1579 = vmatprep.subr.bf16.mxu0 0
        %1580 = vmatpush2.bf16.msra.mxu0 0
        %1581 = vmatprep.mubr.bf16.mxu0 0
        %1582 = vmatmul.mubr.bf16.gmra.mxu0 %v1541
        %v1583 = vpop.f32.mrf.mxu0
        %v1584 = vadd.f32 0.0, %v1583
        %v1585 = vpop.f32.mrf.mxu0
        %v1586 = vpop.f32.mrf.mxu0
        %v1587 = vadd.f32 0.0, %v1586
        %v1588 = vpop.f32.mrf.mxu0
        %1589 = vmatprep.mubr.bf16.mxu0 0
        %1590 = vmatmul.mubr.bf16.gmra.mxu0 %v1544
        %v1591 = vpop.f32.mrf.mxu0
        %v1592 = vadd.f32 0.0, %v1591
        %v1593 = vpop.f32.mrf.mxu0
        %v1594 = vpop.f32.mrf.mxu0
        %v1595 = vadd.f32 0.0, %v1594
        %v1596 = vpop.f32.mrf.mxu0
        %1597 = vmatprep.mubr.bf16.mxu0 0
        %1598 = vmatmul.mubr.bf16.gmra.mxu0 %v1547
        %v1599 = vpop.f32.mrf.mxu0
        %v1600 = vadd.f32 0.0, %v1599
        %v1601 = vpop.f32.mrf.mxu0
        %v1602 = vpop.f32.mrf.mxu0
        %v1603 = vadd.f32 0.0, %v1602
        %v1604 = vpop.f32.mrf.mxu0
        %1605 = vdwg.mxu0
        %v1606 = vadd.f32 %v1508, %v1584
        %v1607 = vadd.f32 %v1509, %v1587
        %v1608 = vadd.f32 %v1510, %v1592
        %v1609 = vadd.f32 %v1511, %v1595
        %v1610 = vadd.f32 %v1512, %v1600
        %v1611 = vadd.f32 %v1513, %v1603
        %v1612 = vld [vmem:[#allocation2 + $0xc1] sm:$0xff]
        %v1613 = vld [vmem:[#allocation2 + $0xc9] sm:$0xff]
        %v1614 = vld [vmem:[#allocation2 + $0xd1] sm:$0xff]
        %v1615 = vld [vmem:[#allocation2 + $0xd9] sm:$0xff]
        %v1616 = vld [vmem:[#allocation2 + $0xe1] sm:$0xff]
        %v1617 = vld [vmem:[#allocation2 + $0xe9] sm:$0xff]
        %v1618 = vpack.c.bf16 %v1613, %v1612
        %v1619 = vpack.c.bf16 %v1615, %v1614
        %v1620 = vpack.c.bf16 %v1617, %v1616
        %s1621 = scalar_lea.vmem %s3, 112
        %v1622 = vld [vmem:[%s1621] sm:$0xf]
        %v1623 = vld [vmem:[%s1621 + $0x4] sm:$0xf]
        %v1624 = vld [vmem:[%s1621 + $0x8] sm:$0xf]
        %v1625 = vld [vmem:[%s1621 + $0xc] sm:$0xf]
        %v1630 = vunpack.c.l.b16 %v1622
        %v1631 = vunpack.c.l.b16 %v1623
        %v1632 = vunpack.c.l.b16 %v1624
        %v1633 = vunpack.c.l.b16 %v1625
        %v1634 = vpack.c.b16 %v1631, %v1630
        %v1635 = vpack.c.b16 %v1633, %v1632
        %v1639 = vsel %vm977, %v1618, 0
        %v1642 = vsel %vm977, %v1619, 0
        %v1645 = vsel %vm977, %v1620, 0
        %1647 = vmatprep.subr.bf16.mxu0 0
        %1648 = vmatpush1.bf16.msra.mxu0 0
        %1649 = vmatprep.subr.bf16.mxu0 0
        %1650 = vmatpush1.bf16.msra.mxu0 0
        %1651 = vmatprep.subr.bf16.mxu0 0
        %1652 = vmatpush1.bf16.msra.mxu0 0
        %1653 = vmatprep.subr.bf16.mxu0 0
        %1654 = vmatpush1.bf16.msra.mxu0 0
        %1655 = vmatprep.subr.bf16.mxu0 0
        %1656 = vmatpush1.bf16.msra.mxu0 0
        %1657 = vmatprep.subr.bf16.mxu0 0
        %1658 = vmatpush1.bf16.msra.mxu0 0
        %1659 = vmatprep.subr.bf16.mxu0 0
        %1660 = vmatpush1.bf16.msra.mxu0 %v1635
        %1661 = vmatprep.subr.bf16.mxu0 0
        %1662 = vmatpush1.bf16.msra.mxu0 %v1634
        %1663 = vmatprep.subr.bf16.mxu0 0
        %1664 = vmatpush2.bf16.msra.mxu0 0
        %1665 = vmatprep.subr.bf16.mxu0 0
        %1666 = vmatpush2.bf16.msra.mxu0 0
        %1667 = vmatprep.subr.bf16.mxu0 0
        %1668 = vmatpush2.bf16.msra.mxu0 0
        %1669 = vmatprep.subr.bf16.mxu0 0
        %1670 = vmatpush2.bf16.msra.mxu0 0
        %1671 = vmatprep.subr.bf16.mxu0 0
        %1672 = vmatpush2.bf16.msra.mxu0 0
        %1673 = vmatprep.subr.bf16.mxu0 0
        %1674 = vmatpush2.bf16.msra.mxu0 0
        %1675 = vmatprep.subr.bf16.mxu0 0
        %1676 = vmatpush2.bf16.msra.mxu0 0
        %1677 = vmatprep.subr.bf16.mxu0 0
        %1678 = vmatpush2.bf16.msra.mxu0 0
        %1679 = vmatprep.mubr.bf16.mxu0 0
        %1680 = vmatmul.mubr.bf16.gmra.mxu0 %v1639
        %v1681 = vpop.f32.mrf.mxu0
        %v1682 = vadd.f32 0.0, %v1681
        %v1683 = vpop.f32.mrf.mxu0
        %v1684 = vpop.f32.mrf.mxu0
        %v1685 = vadd.f32 0.0, %v1684
        %v1686 = vpop.f32.mrf.mxu0
        %1687 = vmatprep.mubr.bf16.mxu0 0
        %1688 = vmatmul.mubr.bf16.gmra.mxu0 %v1642
        %v1689 = vpop.f32.mrf.mxu0
        %v1690 = vadd.f32 0.0, %v1689
        %v1691 = vpop.f32.mrf.mxu0
        %v1692 = vpop.f32.mrf.mxu0
        %v1693 = vadd.f32 0.0, %v1692
        %v1694 = vpop.f32.mrf.mxu0
        %1695 = vmatprep.mubr.bf16.mxu0 0
        %1696 = vmatmul.mubr.bf16.gmra.mxu0 %v1645
        %v1697 = vpop.f32.mrf.mxu0
        %v1698 = vadd.f32 0.0, %v1697
        %v1699 = vpop.f32.mrf.mxu0
        %v1700 = vpop.f32.mrf.mxu0
        %v1701 = vadd.f32 0.0, %v1700
        %v1702 = vpop.f32.mrf.mxu0
        %1703 = vdwg.mxu0
        %v1704 = vadd.f32 %v1606, %v1682
        %v1705 = vadd.f32 %v1607, %v1685
        %v1706 = vadd.f32 %v1608, %v1690
        %v1707 = vadd.f32 %v1609, %v1693
        %v1708 = vadd.f32 %v1610, %v1698
        %v1709 = vadd.f32 %v1611, %v1701
        %v1710 = vld [vmem:[#allocation2 + $0x8] sm:$0xff]
        %v1711 = vld [vmem:[#allocation2 + $0x10] sm:$0xff]
        %v1712 = vld [vmem:[#allocation2 + $0x18] sm:$0xff]
        %v1713 = vld [vmem:[#allocation2 + $0x20] sm:$0xff]
        %v1714 = vld [vmem:[#allocation2 + $0x28] sm:$0xff]
        %v1715 = vld [vmem:[#allocation2 + $0x30] sm:$0xff]
        %v1716 = vpack.c.bf16 %v1711, %v1710
        %v1717 = vpack.c.bf16 %v1713, %v1712
        %v1718 = vpack.c.bf16 %v1715, %v1714
        %s1719 = scalar_lea.vmem %s3, 128
        %v1720 = vld [vmem:[%s1719] sm:$0xf]
        %v1721 = vld [vmem:[%s1719 + $0x4] sm:$0xf]
        %v1722 = vld [vmem:[%s1719 + $0x8] sm:$0xf]
        %v1723 = vld [vmem:[%s1719 + $0xc] sm:$0xf]
        %v1728 = vunpack.c.l.b16 %v1720
        %v1729 = vunpack.c.l.b16 %v1721
        %v1730 = vunpack.c.l.b16 %v1722
        %v1731 = vunpack.c.l.b16 %v1723
        %v1732 = vpack.c.b16 %v1729, %v1728
        %v1733 = vpack.c.b16 %v1731, %v1730
        %v1737 = vsel %vm977, %v1716, 0
        %v1740 = vsel %vm977, %v1717, 0
        %v1743 = vsel %vm977, %v1718, 0
        %1745 = vmatprep.subr.bf16.mxu0 0
        %1746 = vmatpush1.bf16.msra.mxu0 0
        %1747 = vmatprep.subr.bf16.mxu0 0
        %1748 = vmatpush1.bf16.msra.mxu0 0
        %1749 = vmatprep.subr.bf16.mxu0 0
        %1750 = vmatpush1.bf16.msra.mxu0 0
        %1751 = vmatprep.subr.bf16.mxu0 0
        %1752 = vmatpush1.bf16.msra.mxu0 0
        %1753 = vmatprep.subr.bf16.mxu0 0
        %1754 = vmatpush1.bf16.msra.mxu0 0
        %1755 = vmatprep.subr.bf16.mxu0 0
        %1756 = vmatpush1.bf16.msra.mxu0 0
        %1757 = vmatprep.subr.bf16.mxu0 0
        %1758 = vmatpush1.bf16.msra.mxu0 %v1733
        %1759 = vmatprep.subr.bf16.mxu0 0
        %1760 = vmatpush1.bf16.msra.mxu0 %v1732
        %1761 = vmatprep.subr.bf16.mxu0 0
        %1762 = vmatpush2.bf16.msra.mxu0 0
        %1763 = vmatprep.subr.bf16.mxu0 0
        %1764 = vmatpush2.bf16.msra.mxu0 0
        %1765 = vmatprep.subr.bf16.mxu0 0
        %1766 = vmatpush2.bf16.msra.mxu0 0
        %1767 = vmatprep.subr.bf16.mxu0 0
        %1768 = vmatpush2.bf16.msra.mxu0 0
        %1769 = vmatprep.subr.bf16.mxu0 0
        %1770 = vmatpush2.bf16.msra.mxu0 0
        %1771 = vmatprep.subr.bf16.mxu0 0
        %1772 = vmatpush2.bf16.msra.mxu0 0
        %1773 = vmatprep.subr.bf16.mxu0 0
        %1774 = vmatpush2.bf16.msra.mxu0 0
        %1775 = vmatprep.subr.bf16.mxu0 0
        %1776 = vmatpush2.bf16.msra.mxu0 0
        %1777 = vmatprep.mubr.bf16.mxu0 0
        %1778 = vmatmul.mubr.bf16.gmra.mxu0 %v1737
        %v1779 = vpop.f32.mrf.mxu0
        %v1780 = vadd.f32 0.0, %v1779
        %v1781 = vpop.f32.mrf.mxu0
        %v1782 = vpop.f32.mrf.mxu0
        %v1783 = vadd.f32 0.0, %v1782
        %v1784 = vpop.f32.mrf.mxu0
        %1785 = vmatprep.mubr.bf16.mxu0 0
        %1786 = vmatmul.mubr.bf16.gmra.mxu0 %v1740
        %v1787 = vpop.f32.mrf.mxu0
        %v1788 = vadd.f32 0.0, %v1787
        %v1789 = vpop.f32.mrf.mxu0
        %v1790 = vpop.f32.mrf.mxu0
        %v1791 = vadd.f32 0.0, %v1790
        %v1792 = vpop.f32.mrf.mxu0
        %1793 = vmatprep.mubr.bf16.mxu0 0
        %1794 = vmatmul.mubr.bf16.gmra.mxu0 %v1743
        %v1795 = vpop.f32.mrf.mxu0
        %v1796 = vadd.f32 0.0, %v1795
        %v1797 = vpop.f32.mrf.mxu0
        %v1798 = vpop.f32.mrf.mxu0
        %v1799 = vadd.f32 0.0, %v1798
        %v1800 = vpop.f32.mrf.mxu0
        %1801 = vdwg.mxu0
        %v1802 = vadd.f32 %v1704, %v1780
        %v1803 = vadd.f32 %v1705, %v1783
        %v1804 = vadd.f32 %v1706, %v1788
        %v1805 = vadd.f32 %v1707, %v1791
        %v1806 = vadd.f32 %v1708, %v1796
        %v1807 = vadd.f32 %v1709, %v1799
        %v1808 = vld [vmem:[#allocation2 + $0x48] sm:$0xff]
        %v1809 = vld [vmem:[#allocation2 + $0x50] sm:$0xff]
        %v1810 = vld [vmem:[#allocation2 + $0x58] sm:$0xff]
        %v1811 = vld [vmem:[#allocation2 + $0x60] sm:$0xff]
        %v1812 = vld [vmem:[#allocation2 + $0x68] sm:$0xff]
        %v1813 = vld [vmem:[#allocation2 + $0x70] sm:$0xff]
        %v1814 = vpack.c.bf16 %v1809, %v1808
        %v1815 = vpack.c.bf16 %v1811, %v1810
        %v1816 = vpack.c.bf16 %v1813, %v1812
        %s1817 = scalar_lea.vmem %s3, 144
        %v1818 = vld [vmem:[%s1817] sm:$0xf]
        %v1819 = vld [vmem:[%s1817 + $0x4] sm:$0xf]
        %v1820 = vld [vmem:[%s1817 + $0x8] sm:$0xf]
        %v1821 = vld [vmem:[%s1817 + $0xc] sm:$0xf]
        %v1826 = vunpack.c.l.b16 %v1818
        %v1827 = vunpack.c.l.b16 %v1819
        %v1828 = vunpack.c.l.b16 %v1820
        %v1829 = vunpack.c.l.b16 %v1821
        %v1830 = vpack.c.b16 %v1827, %v1826
        %v1831 = vpack.c.b16 %v1829, %v1828
        %v1835 = vsel %vm977, %v1814, 0
        %v1838 = vsel %vm977, %v1815, 0
        %v1841 = vsel %vm977, %v1816, 0
        %1843 = vmatprep.subr.bf16.mxu0 0
        %1844 = vmatpush1.bf16.msra.mxu0 0
        %1845 = vmatprep.subr.bf16.mxu0 0
        %1846 = vmatpush1.bf16.msra.mxu0 0
        %1847 = vmatprep.subr.bf16.mxu0 0
        %1848 = vmatpush1.bf16.msra.mxu0 0
        %1849 = vmatprep.subr.bf16.mxu0 0
        %1850 = vmatpush1.bf16.msra.mxu0 0
        %1851 = vmatprep.subr.bf16.mxu0 0
        %1852 = vmatpush1.bf16.msra.mxu0 0
        %1853 = vmatprep.subr.bf16.mxu0 0
        %1854 = vmatpush1.bf16.msra.mxu0 0
        %1855 = vmatprep.subr.bf16.mxu0 0
        %1856 = vmatpush1.bf16.msra.mxu0 %v1831
        %1857 = vmatprep.subr.bf16.mxu0 0
        %1858 = vmatpush1.bf16.msra.mxu0 %v1830
        %1859 = vmatprep.subr.bf16.mxu0 0
        %1860 = vmatpush2.bf16.msra.mxu0 0
        %1861 = vmatprep.subr.bf16.mxu0 0
        %1862 = vmatpush2.bf16.msra.mxu0 0
        %1863 = vmatprep.subr.bf16.mxu0 0
        %1864 = vmatpush2.bf16.msra.mxu0 0
        %1865 = vmatprep.subr.bf16.mxu0 0
        %1866 = vmatpush2.bf16.msra.mxu0 0
        %1867 = vmatprep.subr.bf16.mxu0 0
        %1868 = vmatpush2.bf16.msra.mxu0 0
        %1869 = vmatprep.subr.bf16.mxu0 0
        %1870 = vmatpush2.bf16.msra.mxu0 0
        %1871 = vmatprep.subr.bf16.mxu0 0
        %1872 = vmatpush2.bf16.msra.mxu0 0
        %1873 = vmatprep.subr.bf16.mxu0 0
        %1874 = vmatpush2.bf16.msra.mxu0 0
        %1875 = vmatprep.mubr.bf16.mxu0 0
        %1876 = vmatmul.mubr.bf16.gmra.mxu0 %v1835
        %v1877 = vpop.f32.mrf.mxu0
        %v1878 = vadd.f32 0.0, %v1877
        %v1879 = vpop.f32.mrf.mxu0
        %v1880 = vpop.f32.mrf.mxu0
        %v1881 = vadd.f32 0.0, %v1880
        %v1882 = vpop.f32.mrf.mxu0
        %1883 = vmatprep.mubr.bf16.mxu0 0
        %1884 = vmatmul.mubr.bf16.gmra.mxu0 %v1838
        %v1885 = vpop.f32.mrf.mxu0
        %v1886 = vadd.f32 0.0, %v1885
        %v1887 = vpop.f32.mrf.mxu0
        %v1888 = vpop.f32.mrf.mxu0
        %v1889 = vadd.f32 0.0, %v1888
        %v1890 = vpop.f32.mrf.mxu0
        %1891 = vmatprep.mubr.bf16.mxu0 0
        %1892 = vmatmul.mubr.bf16.gmra.mxu0 %v1841
        %v1893 = vpop.f32.mrf.mxu0
        %v1894 = vadd.f32 0.0, %v1893
        %v1895 = vpop.f32.mrf.mxu0
        %v1896 = vpop.f32.mrf.mxu0
        %v1897 = vadd.f32 0.0, %v1896
        %v1898 = vpop.f32.mrf.mxu0
        %1899 = vdwg.mxu0
        %v1900 = vadd.f32 %v1802, %v1878
        %v1901 = vadd.f32 %v1803, %v1881
        %v1902 = vadd.f32 %v1804, %v1886
        %v1903 = vadd.f32 %v1805, %v1889
        %v1904 = vadd.f32 %v1806, %v1894
        %v1905 = vadd.f32 %v1807, %v1897
        %v1906 = vld [vmem:[#allocation2 + $0x9] sm:$0xff]
        %v1907 = vld [vmem:[#allocation2 + $0x11] sm:$0xff]
        %v1908 = vld [vmem:[#allocation2 + $0x19] sm:$0xff]
        %v1909 = vld [vmem:[#allocation2 + $0x21] sm:$0xff]
        %v1910 = vld [vmem:[#allocation2 + $0x29] sm:$0xff]
        %v1911 = vld [vmem:[#allocation2 + $0x31] sm:$0xff]
        %v1912 = vpack.c.bf16 %v1907, %v1906
        %v1913 = vpack.c.bf16 %v1909, %v1908
        %v1914 = vpack.c.bf16 %v1911, %v1910
        %s1915 = scalar_lea.vmem %s3, 160
        %v1916 = vld [vmem:[%s1915] sm:$0xf]
        %v1917 = vld [vmem:[%s1915 + $0x4] sm:$0xf]
        %v1918 = vld [vmem:[%s1915 + $0x8] sm:$0xf]
        %v1919 = vld [vmem:[%s1915 + $0xc] sm:$0xf]
        %v1924 = vunpack.c.l.b16 %v1916
        %v1925 = vunpack.c.l.b16 %v1917
        %v1926 = vunpack.c.l.b16 %v1918
        %v1927 = vunpack.c.l.b16 %v1919
        %v1928 = vpack.c.b16 %v1925, %v1924
        %v1929 = vpack.c.b16 %v1927, %v1926
        %v1933 = vsel %vm977, %v1912, 0
        %v1936 = vsel %vm977, %v1913, 0
        %v1939 = vsel %vm977, %v1914, 0
        %1941 = vmatprep.subr.bf16.mxu0 0
        %1942 = vmatpush1.bf16.msra.mxu0 0
        %1943 = vmatprep.subr.bf16.mxu0 0
        %1944 = vmatpush1.bf16.msra.mxu0 0
        %1945 = vmatprep.subr.bf16.mxu0 0
        %1946 = vmatpush1.bf16.msra.mxu0 0
        %1947 = vmatprep.subr.bf16.mxu0 0
        %1948 = vmatpush1.bf16.msra.mxu0 0
        %1949 = vmatprep.subr.bf16.mxu0 0
        %1950 = vmatpush1.bf16.msra.mxu0 0
        %1951 = vmatprep.subr.bf16.mxu0 0
        %1952 = vmatpush1.bf16.msra.mxu0 0
        %1953 = vmatprep.subr.bf16.mxu0 0
        %1954 = vmatpush1.bf16.msra.mxu0 %v1929
        %1955 = vmatprep.subr.bf16.mxu0 0
        %1956 = vmatpush1.bf16.msra.mxu0 %v1928
        %1957 = vmatprep.subr.bf16.mxu0 0
        %1958 = vmatpush2.bf16.msra.mxu0 0
        %1959 = vmatprep.subr.bf16.mxu0 0
        %1960 = vmatpush2.bf16.msra.mxu0 0
        %1961 = vmatprep.subr.bf16.mxu0 0
        %1962 = vmatpush2.bf16.msra.mxu0 0
        %1963 = vmatprep.subr.bf16.mxu0 0
        %1964 = vmatpush2.bf16.msra.mxu0 0
        %1965 = vmatprep.subr.bf16.mxu0 0
        %1966 = vmatpush2.bf16.msra.mxu0 0
        %1967 = vmatprep.subr.bf16.mxu0 0
        %1968 = vmatpush2.bf16.msra.mxu0 0
        %1969 = vmatprep.subr.bf16.mxu0 0
        %1970 = vmatpush2.bf16.msra.mxu0 0
        %1971 = vmatprep.subr.bf16.mxu0 0
        %1972 = vmatpush2.bf16.msra.mxu0 0
        %1973 = vmatprep.mubr.bf16.mxu0 0
        %1974 = vmatmul.mubr.bf16.gmra.mxu0 %v1933
        %v1975 = vpop.f32.mrf.mxu0
        %v1976 = vadd.f32 0.0, %v1975
        %v1977 = vpop.f32.mrf.mxu0
        %v1978 = vpop.f32.mrf.mxu0
        %v1979 = vadd.f32 0.0, %v1978
        %v1980 = vpop.f32.mrf.mxu0
        %1981 = vmatprep.mubr.bf16.mxu0 0
        %1982 = vmatmul.mubr.bf16.gmra.mxu0 %v1936
        %v1983 = vpop.f32.mrf.mxu0
        %v1984 = vadd.f32 0.0, %v1983
        %v1985 = vpop.f32.mrf.mxu0
        %v1986 = vpop.f32.mrf.mxu0
        %v1987 = vadd.f32 0.0, %v1986
        %v1988 = vpop.f32.mrf.mxu0
        %1989 = vmatprep.mubr.bf16.mxu0 0
        %1990 = vmatmul.mubr.bf16.gmra.mxu0 %v1939
        %v1991 = vpop.f32.mrf.mxu0
        %v1992 = vadd.f32 0.0, %v1991
        %v1993 = vpop.f32.mrf.mxu0
        %v1994 = vpop.f32.mrf.mxu0
        %v1995 = vadd.f32 0.0, %v1994
        %v1996 = vpop.f32.mrf.mxu0
        %1997 = vdwg.mxu0
        %v1998 = vadd.f32 %v1900, %v1976
        %v1999 = vadd.f32 %v1901, %v1979
        %v2000 = vadd.f32 %v1902, %v1984
        %v2001 = vadd.f32 %v1903, %v1987
        %v2002 = vadd.f32 %v1904, %v1992
        %v2003 = vadd.f32 %v1905, %v1995
        %v2004 = vld [vmem:[#allocation2 + $0x49] sm:$0xff]
        %v2005 = vld [vmem:[#allocation2 + $0x51] sm:$0xff]
        %v2006 = vld [vmem:[#allocation2 + $0x59] sm:$0xff]
        %v2007 = vld [vmem:[#allocation2 + $0x61] sm:$0xff]
        %v2008 = vld [vmem:[#allocation2 + $0x69] sm:$0xff]
        %v2009 = vld [vmem:[#allocation2 + $0x71] sm:$0xff]
        %v2010 = vpack.c.bf16 %v2005, %v2004
        %v2011 = vpack.c.bf16 %v2007, %v2006
        %v2012 = vpack.c.bf16 %v2009, %v2008
        %s2013 = scalar_lea.vmem %s3, 176
        %v2014 = vld [vmem:[%s2013] sm:$0xf]
        %v2015 = vld [vmem:[%s2013 + $0x4] sm:$0xf]
        %v2016 = vld [vmem:[%s2013 + $0x8] sm:$0xf]
        %v2017 = vld [vmem:[%s2013 + $0xc] sm:$0xf]
        %v2022 = vunpack.c.l.b16 %v2014
        %v2023 = vunpack.c.l.b16 %v2015
        %v2024 = vunpack.c.l.b16 %v2016
        %v2025 = vunpack.c.l.b16 %v2017
        %v2026 = vpack.c.b16 %v2023, %v2022
        %v2027 = vpack.c.b16 %v2025, %v2024
        %v2031 = vsel %vm977, %v2010, 0
        %v2034 = vsel %vm977, %v2011, 0
        %v2037 = vsel %vm977, %v2012, 0
        %2039 = vmatprep.subr.bf16.mxu0 0
        %2040 = vmatpush1.bf16.msra.mxu0 0
        %2041 = vmatprep.subr.bf16.mxu0 0
        %2042 = vmatpush1.bf16.msra.mxu0 0
        %2043 = vmatprep.subr.bf16.mxu0 0
        %2044 = vmatpush1.bf16.msra.mxu0 0
        %2045 = vmatprep.subr.bf16.mxu0 0
        %2046 = vmatpush1.bf16.msra.mxu0 0
        %2047 = vmatprep.subr.bf16.mxu0 0
        %2048 = vmatpush1.bf16.msra.mxu0 0
        %2049 = vmatprep.subr.bf16.mxu0 0
        %2050 = vmatpush1.bf16.msra.mxu0 0
        %2051 = vmatprep.subr.bf16.mxu0 0
        %2052 = vmatpush1.bf16.msra.mxu0 %v2027
        %2053 = vmatprep.subr.bf16.mxu0 0
        %2054 = vmatpush1.bf16.msra.mxu0 %v2026
        %2055 = vmatprep.subr.bf16.mxu0 0
        %2056 = vmatpush2.bf16.msra.mxu0 0
        %2057 = vmatprep.subr.bf16.mxu0 0
        %2058 = vmatpush2.bf16.msra.mxu0 0
        %2059 = vmatprep.subr.bf16.mxu0 0
        %2060 = vmatpush2.bf16.msra.mxu0 0
        %2061 = vmatprep.subr.bf16.mxu0 0
        %2062 = vmatpush2.bf16.msra.mxu0 0
        %2063 = vmatprep.subr.bf16.mxu0 0
        %2064 = vmatpush2.bf16.msra.mxu0 0
        %2065 = vmatprep.subr.bf16.mxu0 0
        %2066 = vmatpush2.bf16.msra.mxu0 0
        %2067 = vmatprep.subr.bf16.mxu0 0
        %2068 = vmatpush2.bf16.msra.mxu0 0
        %2069 = vmatprep.subr.bf16.mxu0 0
        %2070 = vmatpush2.bf16.msra.mxu0 0
        %2071 = vmatprep.mubr.bf16.mxu0 0
        %2072 = vmatmul.mubr.bf16.gmra.mxu0 %v2031
        %v2073 = vpop.f32.mrf.mxu0
        %v2074 = vadd.f32 0.0, %v2073
        %v2075 = vpop.f32.mrf.mxu0
        %v2076 = vpop.f32.mrf.mxu0
        %v2077 = vadd.f32 0.0, %v2076
        %v2078 = vpop.f32.mrf.mxu0
        %2079 = vmatprep.mubr.bf16.mxu0 0
        %2080 = vmatmul.mubr.bf16.gmra.mxu0 %v2034
        %v2081 = vpop.f32.mrf.mxu0
        %v2082 = vadd.f32 0.0, %v2081
        %v2083 = vpop.f32.mrf.mxu0
        %v2084 = vpop.f32.mrf.mxu0
        %v2085 = vadd.f32 0.0, %v2084
        %v2086 = vpop.f32.mrf.mxu0
        %2087 = vmatprep.mubr.bf16.mxu0 0
        %2088 = vmatmul.mubr.bf16.gmra.mxu0 %v2037
        %v2089 = vpop.f32.mrf.mxu0
        %v2090 = vadd.f32 0.0, %v2089
        %v2091 = vpop.f32.mrf.mxu0
        %v2092 = vpop.f32.mrf.mxu0
        %v2093 = vadd.f32 0.0, %v2092
        %v2094 = vpop.f32.mrf.mxu0
        %2095 = vdwg.mxu0
        %v2096 = vadd.f32 %v1998, %v2074
        %v2097 = vadd.f32 %v1999, %v2077
        %v2098 = vadd.f32 %v2000, %v2082
        %v2099 = vadd.f32 %v2001, %v2085
        %v2100 = vadd.f32 %v2002, %v2090
        %v2101 = vadd.f32 %v2003, %v2093
        %v2102 = vld [vmem:[#allocation2 + $0x88] sm:$0xff]
        %v2103 = vld [vmem:[#allocation2 + $0x90] sm:$0xff]
        %v2104 = vld [vmem:[#allocation2 + $0x98] sm:$0xff]
        %v2105 = vld [vmem:[#allocation2 + $0xa0] sm:$0xff]
        %v2106 = vld [vmem:[#allocation2 + $0xa8] sm:$0xff]
        %v2107 = vld [vmem:[#allocation2 + $0xb0] sm:$0xff]
        %v2108 = vpack.c.bf16 %v2103, %v2102
        %v2109 = vpack.c.bf16 %v2105, %v2104
        %v2110 = vpack.c.bf16 %v2107, %v2106
        %s2111 = scalar_lea.vmem %s3, 192
        %v2112 = vld [vmem:[%s2111] sm:$0xf]
        %v2113 = vld [vmem:[%s2111 + $0x4] sm:$0xf]
        %v2114 = vld [vmem:[%s2111 + $0x8] sm:$0xf]
        %v2115 = vld [vmem:[%s2111 + $0xc] sm:$0xf]
        %v2120 = vunpack.c.l.b16 %v2112
        %v2121 = vunpack.c.l.b16 %v2113
        %v2122 = vunpack.c.l.b16 %v2114
        %v2123 = vunpack.c.l.b16 %v2115
        %v2124 = vpack.c.b16 %v2121, %v2120
        %v2125 = vpack.c.b16 %v2123, %v2122
        %v2129 = vsel %vm977, %v2108, 0
        %v2132 = vsel %vm977, %v2109, 0
        %v2135 = vsel %vm977, %v2110, 0
        %2137 = vmatprep.subr.bf16.mxu0 0
        %2138 = vmatpush1.bf16.msra.mxu0 0
        %2139 = vmatprep.subr.bf16.mxu0 0
        %2140 = vmatpush1.bf16.msra.mxu0 0
        %2141 = vmatprep.subr.bf16.mxu0 0
        %2142 = vmatpush1.bf16.msra.mxu0 0
        %2143 = vmatprep.subr.bf16.mxu0 0
        %2144 = vmatpush1.bf16.msra.mxu0 0
        %2145 = vmatprep.subr.bf16.mxu0 0
        %2146 = vmatpush1.bf16.msra.mxu0 0
        %2147 = vmatprep.subr.bf16.mxu0 0
        %2148 = vmatpush1.bf16.msra.mxu0 0
        %2149 = vmatprep.subr.bf16.mxu0 0
        %2150 = vmatpush1.bf16.msra.mxu0 %v2125
        %2151 = vmatprep.subr.bf16.mxu0 0
        %2152 = vmatpush1.bf16.msra.mxu0 %v2124
        %2153 = vmatprep.subr.bf16.mxu0 0
        %2154 = vmatpush2.bf16.msra.mxu0 0
        %2155 = vmatprep.subr.bf16.mxu0 0
        %2156 = vmatpush2.bf16.msra.mxu0 0
        %2157 = vmatprep.subr.bf16.mxu0 0
        %2158 = vmatpush2.bf16.msra.mxu0 0
        %2159 = vmatprep.subr.bf16.mxu0 0
        %2160 = vmatpush2.bf16.msra.mxu0 0
        %2161 = vmatprep.subr.bf16.mxu0 0
        %2162 = vmatpush2.bf16.msra.mxu0 0
        %2163 = vmatprep.subr.bf16.mxu0 0
        %2164 = vmatpush2.bf16.msra.mxu0 0
        %2165 = vmatprep.subr.bf16.mxu0 0
        %2166 = vmatpush2.bf16.msra.mxu0 0
        %2167 = vmatprep.subr.bf16.mxu0 0
        %2168 = vmatpush2.bf16.msra.mxu0 0
        %2169 = vmatprep.mubr.bf16.mxu0 0
        %2170 = vmatmul.mubr.bf16.gmra.mxu0 %v2129
        %v2171 = vpop.f32.mrf.mxu0
        %v2172 = vadd.f32 0.0, %v2171
        %v2173 = vpop.f32.mrf.mxu0
        %v2174 = vpop.f32.mrf.mxu0
        %v2175 = vadd.f32 0.0, %v2174
        %v2176 = vpop.f32.mrf.mxu0
        %2177 = vmatprep.mubr.bf16.mxu0 0
        %2178 = vmatmul.mubr.bf16.gmra.mxu0 %v2132
        %v2179 = vpop.f32.mrf.mxu0
        %v2180 = vadd.f32 0.0, %v2179
        %v2181 = vpop.f32.mrf.mxu0
        %v2182 = vpop.f32.mrf.mxu0
        %v2183 = vadd.f32 0.0, %v2182
        %v2184 = vpop.f32.mrf.mxu0
        %2185 = vmatprep.mubr.bf16.mxu0 0
        %2186 = vmatmul.mubr.bf16.gmra.mxu0 %v2135
        %v2187 = vpop.f32.mrf.mxu0
        %v2188 = vadd.f32 0.0, %v2187
        %v2189 = vpop.f32.mrf.mxu0
        %v2190 = vpop.f32.mrf.mxu0
        %v2191 = vadd.f32 0.0, %v2190
        %v2192 = vpop.f32.mrf.mxu0
        %2193 = vdwg.mxu0
        %v2194 = vadd.f32 %v2096, %v2172
        %v2195 = vadd.f32 %v2097, %v2175
        %v2196 = vadd.f32 %v2098, %v2180
        %v2197 = vadd.f32 %v2099, %v2183
        %v2198 = vadd.f32 %v2100, %v2188
        %v2199 = vadd.f32 %v2101, %v2191
        %v2200 = vld [vmem:[#allocation2 + $0xc8] sm:$0xff]
        %v2201 = vld [vmem:[#allocation2 + $0xd0] sm:$0xff]
        %v2202 = vld [vmem:[#allocation2 + $0xd8] sm:$0xff]
        %v2203 = vld [vmem:[#allocation2 + $0xe0] sm:$0xff]
        %v2204 = vld [vmem:[#allocation2 + $0xe8] sm:$0xff]
        %v2205 = vld [vmem:[#allocation2 + $0xf0] sm:$0xff]
        %v2206 = vpack.c.bf16 %v2201, %v2200
        %v2207 = vpack.c.bf16 %v2203, %v2202
        %v2208 = vpack.c.bf16 %v2205, %v2204
        %s2209 = scalar_lea.vmem %s3, 208
        %v2210 = vld [vmem:[%s2209] sm:$0xf]
        %v2211 = vld [vmem:[%s2209 + $0x4] sm:$0xf]
        %v2212 = vld [vmem:[%s2209 + $0x8] sm:$0xf]
        %v2213 = vld [vmem:[%s2209 + $0xc] sm:$0xf]
        %v2218 = vunpack.c.l.b16 %v2210
        %v2219 = vunpack.c.l.b16 %v2211
        %v2220 = vunpack.c.l.b16 %v2212
        %v2221 = vunpack.c.l.b16 %v2213
        %v2222 = vpack.c.b16 %v2219, %v2218
        %v2223 = vpack.c.b16 %v2221, %v2220
        %v2227 = vsel %vm977, %v2206, 0
        %v2230 = vsel %vm977, %v2207, 0
        %v2233 = vsel %vm977, %v2208, 0
        %2235 = vmatprep.subr.bf16.mxu0 0
        %2236 = vmatpush1.bf16.msra.mxu0 0
        %2237 = vmatprep.subr.bf16.mxu0 0
        %2238 = vmatpush1.bf16.msra.mxu0 0
        %2239 = vmatprep.subr.bf16.mxu0 0
        %2240 = vmatpush1.bf16.msra.mxu0 0
        %2241 = vmatprep.subr.bf16.mxu0 0
        %2242 = vmatpush1.bf16.msra.mxu0 0
        %2243 = vmatprep.subr.bf16.mxu0 0
        %2244 = vmatpush1.bf16.msra.mxu0 0
        %2245 = vmatprep.subr.bf16.mxu0 0
        %2246 = vmatpush1.bf16.msra.mxu0 0
        %2247 = vmatprep.subr.bf16.mxu0 0
        %2248 = vmatpush1.bf16.msra.mxu0 %v2223
        %2249 = vmatprep.subr.bf16.mxu0 0
        %2250 = vmatpush1.bf16.msra.mxu0 %v2222
        %2251 = vmatprep.subr.bf16.mxu0 0
        %2252 = vmatpush2.bf16.msra.mxu0 0
        %2253 = vmatprep.subr.bf16.mxu0 0
        %2254 = vmatpush2.bf16.msra.mxu0 0
        %2255 = vmatprep.subr.bf16.mxu0 0
        %2256 = vmatpush2.bf16.msra.mxu0 0
        %2257 = vmatprep.subr.bf16.mxu0 0
        %2258 = vmatpush2.bf16.msra.mxu0 0
        %2259 = vmatprep.subr.bf16.mxu0 0
        %2260 = vmatpush2.bf16.msra.mxu0 0
        %2261 = vmatprep.subr.bf16.mxu0 0
        %2262 = vmatpush2.bf16.msra.mxu0 0
        %2263 = vmatprep.subr.bf16.mxu0 0
        %2264 = vmatpush2.bf16.msra.mxu0 0
        %2265 = vmatprep.subr.bf16.mxu0 0
        %2266 = vmatpush2.bf16.msra.mxu0 0
        %2267 = vmatprep.mubr.bf16.mxu0 0
        %2268 = vmatmul.mubr.bf16.gmra.mxu0 %v2227
        %v2269 = vpop.f32.mrf.mxu0
        %v2270 = vadd.f32 0.0, %v2269
        %v2271 = vpop.f32.mrf.mxu0
        %v2272 = vpop.f32.mrf.mxu0
        %v2273 = vadd.f32 0.0, %v2272
        %v2274 = vpop.f32.mrf.mxu0
        %2275 = vmatprep.mubr.bf16.mxu0 0
        %2276 = vmatmul.mubr.bf16.gmra.mxu0 %v2230
        %v2277 = vpop.f32.mrf.mxu0
        %v2278 = vadd.f32 0.0, %v2277
        %v2279 = vpop.f32.mrf.mxu0
        %v2280 = vpop.f32.mrf.mxu0
        %v2281 = vadd.f32 0.0, %v2280
        %v2282 = vpop.f32.mrf.mxu0
        %2283 = vmatprep.mubr.bf16.mxu0 0
        %2284 = vmatmul.mubr.bf16.gmra.mxu0 %v2233
        %v2285 = vpop.f32.mrf.mxu0
        %v2286 = vadd.f32 0.0, %v2285
        %v2287 = vpop.f32.mrf.mxu0
        %v2288 = vpop.f32.mrf.mxu0
        %v2289 = vadd.f32 0.0, %v2288
        %v2290 = vpop.f32.mrf.mxu0
        %2291 = vdwg.mxu0
        %v2292 = vadd.f32 %v2194, %v2270
        %v2293 = vadd.f32 %v2195, %v2273
        %v2294 = vadd.f32 %v2196, %v2278
        %v2295 = vadd.f32 %v2197, %v2281
        %v2296 = vadd.f32 %v2198, %v2286
        %v2297 = vadd.f32 %v2199, %v2289
        %v2298 = vld [vmem:[#allocation2 + $0x89] sm:$0xff]
        %v2299 = vld [vmem:[#allocation2 + $0x91] sm:$0xff]
        %v2300 = vld [vmem:[#allocation2 + $0x99] sm:$0xff]
        %v2301 = vld [vmem:[#allocation2 + $0xa1] sm:$0xff]
        %v2302 = vld [vmem:[#allocation2 + $0xa9] sm:$0xff]
        %v2303 = vld [vmem:[#allocation2 + $0xb1] sm:$0xff]
        %v2304 = vpack.c.bf16 %v2299, %v2298
        %v2305 = vpack.c.bf16 %v2301, %v2300
        %v2306 = vpack.c.bf16 %v2303, %v2302
        %s2307 = scalar_lea.vmem %s3, 224
        %v2308 = vld [vmem:[%s2307] sm:$0xf]
        %v2309 = vld [vmem:[%s2307 + $0x4] sm:$0xf]
        %v2310 = vld [vmem:[%s2307 + $0x8] sm:$0xf]
        %v2311 = vld [vmem:[%s2307 + $0xc] sm:$0xf]
        %v2316 = vunpack.c.l.b16 %v2308
        %v2317 = vunpack.c.l.b16 %v2309
        %v2318 = vunpack.c.l.b16 %v2310
        %v2319 = vunpack.c.l.b16 %v2311
        %v2320 = vpack.c.b16 %v2317, %v2316
        %v2321 = vpack.c.b16 %v2319, %v2318
        %v2325 = vsel %vm977, %v2304, 0
        %v2328 = vsel %vm977, %v2305, 0
        %v2331 = vsel %vm977, %v2306, 0
        %2333 = vmatprep.subr.bf16.mxu0 0
        %2334 = vmatpush1.bf16.msra.mxu0 0
        %2335 = vmatprep.subr.bf16.mxu0 0
        %2336 = vmatpush1.bf16.msra.mxu0 0
        %2337 = vmatprep.subr.bf16.mxu0 0
        %2338 = vmatpush1.bf16.msra.mxu0 0
        %2339 = vmatprep.subr.bf16.mxu0 0
        %2340 = vmatpush1.bf16.msra.mxu0 0
        %2341 = vmatprep.subr.bf16.mxu0 0
        %2342 = vmatpush1.bf16.msra.mxu0 0
        %2343 = vmatprep.subr.bf16.mxu0 0
        %2344 = vmatpush1.bf16.msra.mxu0 0
        %2345 = vmatprep.subr.bf16.mxu0 0
        %2346 = vmatpush1.bf16.msra.mxu0 %v2321
        %2347 = vmatprep.subr.bf16.mxu0 0
        %2348 = vmatpush1.bf16.msra.mxu0 %v2320
        %2349 = vmatprep.subr.bf16.mxu0 0
        %2350 = vmatpush2.bf16.msra.mxu0 0
        %2351 = vmatprep.subr.bf16.mxu0 0
        %2352 = vmatpush2.bf16.msra.mxu0 0
        %2353 = vmatprep.subr.bf16.mxu0 0
        %2354 = vmatpush2.bf16.msra.mxu0 0
        %2355 = vmatprep.subr.bf16.mxu0 0
        %2356 = vmatpush2.bf16.msra.mxu0 0
        %2357 = vmatprep.subr.bf16.mxu0 0
        %2358 = vmatpush2.bf16.msra.mxu0 0
        %2359 = vmatprep.subr.bf16.mxu0 0
        %2360 = vmatpush2.bf16.msra.mxu0 0
        %2361 = vmatprep.subr.bf16.mxu0 0
        %2362 = vmatpush2.bf16.msra.mxu0 0
        %2363 = vmatprep.subr.bf16.mxu0 0
        %2364 = vmatpush2.bf16.msra.mxu0 0
        %2365 = vmatprep.mubr.bf16.mxu0 0
        %2366 = vmatmul.mubr.bf16.gmra.mxu0 %v2325
        %v2367 = vpop.f32.mrf.mxu0
        %v2368 = vadd.f32 0.0, %v2367
        %v2369 = vpop.f32.mrf.mxu0
        %v2370 = vpop.f32.mrf.mxu0
        %v2371 = vadd.f32 0.0, %v2370
        %v2372 = vpop.f32.mrf.mxu0
        %2373 = vmatprep.mubr.bf16.mxu0 0
        %2374 = vmatmul.mubr.bf16.gmra.mxu0 %v2328
        %v2375 = vpop.f32.mrf.mxu0
        %v2376 = vadd.f32 0.0, %v2375
        %v2377 = vpop.f32.mrf.mxu0
        %v2378 = vpop.f32.mrf.mxu0
        %v2379 = vadd.f32 0.0, %v2378
        %v2380 = vpop.f32.mrf.mxu0
        %2381 = vmatprep.mubr.bf16.mxu0 0
        %2382 = vmatmul.mubr.bf16.gmra.mxu0 %v2331
        %v2383 = vpop.f32.mrf.mxu0
        %v2384 = vadd.f32 0.0, %v2383
        %v2385 = vpop.f32.mrf.mxu0
        %v2386 = vpop.f32.mrf.mxu0
        %v2387 = vadd.f32 0.0, %v2386
        %v2388 = vpop.f32.mrf.mxu0
        %2389 = vdwg.mxu0
        %v2390 = vadd.f32 %v2292, %v2368
        %v2391 = vadd.f32 %v2293, %v2371
        %v2392 = vadd.f32 %v2294, %v2376
        %v2393 = vadd.f32 %v2295, %v2379
        %v2394 = vadd.f32 %v2296, %v2384
        %v2395 = vadd.f32 %v2297, %v2387
        %v2396 = vld [vmem:[#allocation2 + $0xc9] sm:$0xff]
        %v2397 = vld [vmem:[#allocation2 + $0xd1] sm:$0xff]
        %v2398 = vld [vmem:[#allocation2 + $0xd9] sm:$0xff]
        %v2399 = vld [vmem:[#allocation2 + $0xe1] sm:$0xff]
        %v2400 = vld [vmem:[#allocation2 + $0xe9] sm:$0xff]
        %v2401 = vld [vmem:[#allocation2 + $0xf1] sm:$0xff]
        %v2402 = vpack.c.bf16 %v2397, %v2396
        %v2403 = vpack.c.bf16 %v2399, %v2398
        %v2404 = vpack.c.bf16 %v2401, %v2400
        %s2405 = scalar_lea.vmem %s3, 240
        %v2406 = vld [vmem:[%s2405] sm:$0xf]
        %v2407 = vld [vmem:[%s2405 + $0x4] sm:$0xf]
        %v2408 = vld [vmem:[%s2405 + $0x8] sm:$0xf]
        %v2409 = vld [vmem:[%s2405 + $0xc] sm:$0xf]
        %v2414 = vunpack.c.l.b16 %v2406
        %v2415 = vunpack.c.l.b16 %v2407
        %v2416 = vunpack.c.l.b16 %v2408
        %v2417 = vunpack.c.l.b16 %v2409
        %v2418 = vpack.c.b16 %v2415, %v2414
        %v2419 = vpack.c.b16 %v2417, %v2416
        %v2423 = vsel %vm977, %v2402, 0
        %v2426 = vsel %vm977, %v2403, 0
        %v2429 = vsel %vm977, %v2404, 0
        %2431 = vmatprep.subr.bf16.mxu0 0
        %2432 = vmatpush1.bf16.msra.mxu0 0
        %2433 = vmatprep.subr.bf16.mxu0 0
        %2434 = vmatpush1.bf16.msra.mxu0 0
        %2435 = vmatprep.subr.bf16.mxu0 0
        %2436 = vmatpush1.bf16.msra.mxu0 0
        %2437 = vmatprep.subr.bf16.mxu0 0
        %2438 = vmatpush1.bf16.msra.mxu0 0
        %2439 = vmatprep.subr.bf16.mxu0 0
        %2440 = vmatpush1.bf16.msra.mxu0 0
        %2441 = vmatprep.subr.bf16.mxu0 0
        %2442 = vmatpush1.bf16.msra.mxu0 0
        %2443 = vmatprep.subr.bf16.mxu0 0
        %2444 = vmatpush1.bf16.msra.mxu0 %v2419
        %2445 = vmatprep.subr.bf16.mxu0 0
        %2446 = vmatpush1.bf16.msra.mxu0 %v2418
        %2447 = vmatprep.subr.bf16.mxu0 0
        %2448 = vmatpush2.bf16.msra.mxu0 0
        %2449 = vmatprep.subr.bf16.mxu0 0
        %2450 = vmatpush2.bf16.msra.mxu0 0
        %2451 = vmatprep.subr.bf16.mxu0 0
        %2452 = vmatpush2.bf16.msra.mxu0 0
        %2453 = vmatprep.subr.bf16.mxu0 0
        %2454 = vmatpush2.bf16.msra.mxu0 0
        %2455 = vmatprep.subr.bf16.mxu0 0
        %2456 = vmatpush2.bf16.msra.mxu0 0
        %2457 = vmatprep.subr.bf16.mxu0 0
        %2458 = vmatpush2.bf16.msra.mxu0 0
        %2459 = vmatprep.subr.bf16.mxu0 0
        %2460 = vmatpush2.bf16.msra.mxu0 0
        %2461 = vmatprep.subr.bf16.mxu0 0
        %2462 = vmatpush2.bf16.msra.mxu0 0
        %2463 = vmatprep.mubr.bf16.mxu0 0
        %2464 = vmatmul.mubr.bf16.gmra.mxu0 %v2423
        %v2465 = vpop.f32.mrf.mxu0
        %v2466 = vadd.f32 0.0, %v2465
        %v2467 = vpop.f32.mrf.mxu0
        %v2468 = vpop.f32.mrf.mxu0
        %v2469 = vadd.f32 0.0, %v2468
        %v2470 = vpop.f32.mrf.mxu0
        %2471 = vmatprep.mubr.bf16.mxu0 0
        %2472 = vmatmul.mubr.bf16.gmra.mxu0 %v2426
        %v2473 = vpop.f32.mrf.mxu0
        %v2474 = vadd.f32 0.0, %v2473
        %v2475 = vpop.f32.mrf.mxu0
        %v2476 = vpop.f32.mrf.mxu0
        %v2477 = vadd.f32 0.0, %v2476
        %v2478 = vpop.f32.mrf.mxu0
        %2479 = vmatprep.mubr.bf16.mxu0 0
        %2480 = vmatmul.mubr.bf16.gmra.mxu0 %v2429
        %v2481 = vpop.f32.mrf.mxu0
        %v2482 = vadd.f32 0.0, %v2481
        %v2483 = vpop.f32.mrf.mxu0
        %v2484 = vpop.f32.mrf.mxu0
        %v2485 = vadd.f32 0.0, %v2484
        %v2486 = vpop.f32.mrf.mxu0
        %2487 = vdwg.mxu0
        %v2488 = vadd.f32 %v2390, %v2466
        %v2489 = vadd.f32 %v2391, %v2469
        %v2490 = vadd.f32 %v2392, %v2474
        %v2491 = vadd.f32 %v2393, %v2477
        %v2492 = vadd.f32 %v2394, %v2482
        %v2493 = vadd.f32 %v2395, %v2485
        %v2494 = vld [vmem:[%s4] sm:$0x1]
        %v2496 = vlaneseq
        %v2497 = vshrl.u32 %v2496, 7
        %v2498 = vsub.s32 0, %v2497
        %v2499 = vrot.slane %v2494, %v2498
        %v2501 = vadd.f32 %v2488, %v2499
        %v2502 = vadd.f32 %v2489, %v2499
        %v2503 = vadd.f32 %v2490, %v2499
        %v2504 = vadd.f32 %v2491, %v2499
        %v2505 = vadd.f32 %v2492, %v2499
        %v2506 = vadd.f32 %v2493, %v2499
        %v2507 = vmax.f32 %v2501, 0.0
        %v2508 = vmax.f32 %v2502, 0.0
        %v2509 = vmax.f32 %v2503, 0.0
        %v2510 = vmax.f32 %v2504, 0.0
        %v2511 = vmax.f32 %v2505, 0.0
        %v2512 = vmax.f32 %v2506, 0.0
        %v2513 = vpack.c.bf16 %v2508, %v2507
        %v2514 = vpack.c.bf16 %v2510, %v2509
        %v2515 = vld [vmem:[%s5] sm:$0xf]
        %v2516 = vld [vmem:[%s5 + $0x4] sm:$0xf]
        %v2517 = vld [vmem:[%s5 + $0x8] sm:$0xf]
        %v2518 = vld [vmem:[%s5 + $0xc] sm:$0xf]
        %v2519 = vld [vmem:[%s5 + $0x10] sm:$0xf]
        %v2520 = vld [vmem:[%s5 + $0x14] sm:$0xf]
        %v2521 = vld [vmem:[%s5 + $0x18] sm:$0xf]
        %v2522 = vld [vmem:[%s5 + $0x1c] sm:$0xf]
        %s2523 = scalar_lea.vmem %s5, 32
        %v2524 = vld [vmem:[%s2523] sm:$0xf]
        %v2525 = vld [vmem:[%s2523 + $0x4] sm:$0xf]
        %v2526 = vld [vmem:[%s2523 + $0x8] sm:$0xf]
        %v2527 = vld [vmem:[%s2523 + $0xc] sm:$0xf]
        %v2528 = vld [vmem:[%s2523 + $0x10] sm:$0xf]
        %v2529 = vld [vmem:[%s2523 + $0x14] sm:$0xf]
        %v2530 = vld [vmem:[%s2523 + $0x18] sm:$0xf]
        %v2531 = vld [vmem:[%s2523 + $0x1c] sm:$0xf]
        %vm2532 = vsmask.f32 7424
        %v2534 = vshrl.u32 %v2513, 16
        %v2536 = vshll.u32 %v2513, 16
        %v2538 = vrot.slane %v2536, 1
        %v2539 = vor.u32 %v2534, %v2538
        %v2541 = vshll.u32 %v2514, 16
        %v2543 = vrot.slane %v2541, 1
        %v2544 = vsel %vm2532, %v2539, %v2543
        %v2545 = vshrl.u32 %v2514, 16
        %v2547 = vor.u32 %v2545, %v2543
        %v2556 = vunpack.c.l.b16 %v2524
        %v2557 = vunpack.c.l.b16 %v2525
        %v2558 = vunpack.c.l.b16 %v2526
        %v2559 = vunpack.c.l.b16 %v2527
        %v2560 = vunpack.c.l.b16 %v2528
        %v2561 = vunpack.c.l.b16 %v2529
        %v2562 = vunpack.c.l.b16 %v2530
        %v2563 = vunpack.c.l.b16 %v2531
        %v2564 = vpack.c.b16 %v2557, %v2556
        %v2565 = vpack.c.b16 %v2559, %v2558
        %v2566 = vpack.c.b16 %v2561, %v2560
        %v2567 = vpack.c.b16 %v2563, %v2562
        %v2573 = vsel %vm664, %v2544, 0
        %v2576 = vsel %vm664, %v2547, 0
        %2578 = vmatprep.subr.bf16.mxu0 0
        %2579 = vmatpush1.bf16.msra.mxu0 0
        %2580 = vmatprep.subr.bf16.mxu0 0
        %2581 = vmatpush1.bf16.msra.mxu0 0
        %2582 = vmatprep.subr.bf16.mxu0 0
        %2583 = vmatpush1.bf16.msra.mxu0 0
        %2584 = vmatprep.subr.bf16.mxu0 0
        %2585 = vmatpush1.bf16.msra.mxu0 0
        %2586 = vmatprep.subr.bf16.mxu0 0
        %2587 = vmatpush1.bf16.msra.mxu0 %v2567
        %2588 = vmatprep.subr.bf16.mxu0 0
        %2589 = vmatpush1.bf16.msra.mxu0 %v2566
        %2590 = vmatprep.subr.bf16.mxu0 0
        %2591 = vmatpush1.bf16.msra.mxu0 %v2565
        %2592 = vmatprep.subr.bf16.mxu0 0
        %2593 = vmatpush1.bf16.msra.mxu0 %v2564
        %2594 = vmatprep.subr.bf16.mxu0 0
        %2595 = vmatpush2.bf16.msra.mxu0 0
        %2596 = vmatprep.subr.bf16.mxu0 0
        %2597 = vmatpush2.bf16.msra.mxu0 0
        %2598 = vmatprep.subr.bf16.mxu0 0
        %2599 = vmatpush2.bf16.msra.mxu0 0
        %2600 = vmatprep.subr.bf16.mxu0 0
        %2601 = vmatpush2.bf16.msra.mxu0 0
        %2602 = vmatprep.subr.bf16.mxu0 0
        %2603 = vmatpush2.bf16.msra.mxu0 0
        %2604 = vmatprep.subr.bf16.mxu0 0
        %2605 = vmatpush2.bf16.msra.mxu0 0
        %2606 = vmatprep.subr.bf16.mxu0 0
        %2607 = vmatpush2.bf16.msra.mxu0 0
        %2608 = vmatprep.subr.bf16.mxu0 0
        %2609 = vmatpush2.bf16.msra.mxu0 0
        %2610 = vmatprep.mubr.bf16.mxu0 0
        %2611 = vmatmul.mubr.bf16.gmra.mxu0 %v2573
        %v2612 = vpop.f32.mrf.mxu0
        %v2613 = vadd.f32 0.0, %v2612
        %v2614 = vpop.f32.mrf.mxu0
        %v2615 = vpop.f32.mrf.mxu0
        %v2616 = vadd.f32 0.0, %v2615
        %v2617 = vpop.f32.mrf.mxu0
        %2618 = vmatprep.mubr.bf16.mxu0 0
        %2619 = vmatmul.mubr.bf16.gmra.mxu0 %v2576
        %v2620 = vpop.f32.mrf.mxu0
        %v2621 = vadd.f32 0.0, %v2620
        %v2622 = vpop.f32.mrf.mxu0
        %v2623 = vpop.f32.mrf.mxu0
        %v2624 = vadd.f32 0.0, %v2623
        %v2625 = vpop.f32.mrf.mxu0
        %2626 = vdwg.mxu0
        %v2635 = vunpack.c.l.b16 %v2515
        %v2636 = vunpack.c.l.b16 %v2516
        %v2637 = vunpack.c.l.b16 %v2517
        %v2638 = vunpack.c.l.b16 %v2518
        %v2639 = vunpack.c.l.b16 %v2519
        %v2640 = vunpack.c.l.b16 %v2520
        %v2641 = vunpack.c.l.b16 %v2521
        %v2642 = vunpack.c.l.b16 %v2522
        %v2643 = vpack.c.b16 %v2636, %v2635
        %v2644 = vpack.c.b16 %v2638, %v2637
        %v2645 = vpack.c.b16 %v2640, %v2639
        %v2646 = vpack.c.b16 %v2642, %v2641
        %v2651 = vsel %vm664, %v2513, 0
        %v2653 = vsel %vm664, %v2514, 0
        %2655 = vmatprep.subr.bf16.mxu0 0
        %2656 = vmatpush1.bf16.msra.mxu0 0
        %2657 = vmatprep.subr.bf16.mxu0 0
        %2658 = vmatpush1.bf16.msra.mxu0 0
        %2659 = vmatprep.subr.bf16.mxu0 0
        %2660 = vmatpush1.bf16.msra.mxu0 0
        %2661 = vmatprep.subr.bf16.mxu0 0
        %2662 = vmatpush1.bf16.msra.mxu0 0
        %2663 = vmatprep.subr.bf16.mxu0 0
        %2664 = vmatpush1.bf16.msra.mxu0 %v2646
        %2665 = vmatprep.subr.bf16.mxu0 0
        %2666 = vmatpush1.bf16.msra.mxu0 %v2645
        %2667 = vmatprep.subr.bf16.mxu0 0
        %2668 = vmatpush1.bf16.msra.mxu0 %v2644
        %2669 = vmatprep.subr.bf16.mxu0 0
        %2670 = vmatpush1.bf16.msra.mxu0 %v2643
        %2671 = vmatprep.subr.bf16.mxu0 0
        %2672 = vmatpush2.bf16.msra.mxu0 0
        %2673 = vmatprep.subr.bf16.mxu0 0
        %2674 = vmatpush2.bf16.msra.mxu0 0
        %2675 = vmatprep.subr.bf16.mxu0 0
        %2676 = vmatpush2.bf16.msra.mxu0 0
        %2677 = vmatprep.subr.bf16.mxu0 0
        %2678 = vmatpush2.bf16.msra.mxu0 0
        %2679 = vmatprep.subr.bf16.mxu0 0
        %2680 = vmatpush2.bf16.msra.mxu0 0
        %2681 = vmatprep.subr.bf16.mxu0 0
        %2682 = vmatpush2.bf16.msra.mxu0 0
        %2683 = vmatprep.subr.bf16.mxu0 0
        %2684 = vmatpush2.bf16.msra.mxu0 0
        %2685 = vmatprep.subr.bf16.mxu0 0
        %2686 = vmatpush2.bf16.msra.mxu0 0
        %2687 = vmatprep.mubr.bf16.mxu0 0
        %2688 = vmatmul.mubr.bf16.gmra.mxu0 %v2651
        %v2689 = vpop.f32.mrf.mxu0
        %v2690 = vadd.f32 %v2613, %v2689
        %v2691 = vpop.f32.mrf.mxu0
        %v2692 = vpop.f32.mrf.mxu0
        %v2693 = vadd.f32 %v2616, %v2692
        %v2694 = vpop.f32.mrf.mxu0
        %2695 = vmatprep.mubr.bf16.mxu0 0
        %2696 = vmatmul.mubr.bf16.gmra.mxu0 %v2653
        %v2697 = vpop.f32.mrf.mxu0
        %v2698 = vadd.f32 %v2621, %v2697
        %v2699 = vpop.f32.mrf.mxu0
        %v2700 = vpop.f32.mrf.mxu0
        %v2701 = vadd.f32 %v2624, %v2700
        %v2702 = vpop.f32.mrf.mxu0
        %2703 = vdwg.mxu0
        %s2704 = scalar_lea.vmem %s5, 64
        %v2705 = vld [vmem:[%s2704] sm:$0xf]
        %v2706 = vld [vmem:[%s2704 + $0x4] sm:$0xf]
        %v2707 = vld [vmem:[%s2704 + $0x8] sm:$0xf]
        %v2708 = vld [vmem:[%s2704 + $0xc] sm:$0xf]
        %v2709 = vld [vmem:[%s2704 + $0x10] sm:$0xf]
        %v2710 = vld [vmem:[%s2704 + $0x14] sm:$0xf]
        %v2711 = vld [vmem:[%s2704 + $0x18] sm:$0xf]
        %v2712 = vld [vmem:[%s2704 + $0x1c] sm:$0xf]
        %vm2715 = vcmask 1046528
        %v2716 = vrot.slane %v2513, 1
        %v2717 = vrot.slane %v2514, 1
        %v2718 = vsel %vm2715, %v2716, %v2717
        %v2727 = vunpack.c.l.b16 %v2705
        %v2728 = vunpack.c.l.b16 %v2706
        %v2729 = vunpack.c.l.b16 %v2707
        %v2730 = vunpack.c.l.b16 %v2708
        %v2731 = vunpack.c.l.b16 %v2709
        %v2732 = vunpack.c.l.b16 %v2710
        %v2733 = vunpack.c.l.b16 %v2711
        %v2734 = vunpack.c.l.b16 %v2712
        %v2735 = vpack.c.b16 %v2728, %v2727
        %v2736 = vpack.c.b16 %v2730, %v2729
        %v2737 = vpack.c.b16 %v2732, %v2731
        %v2738 = vpack.c.b16 %v2734, %v2733
        %v2744 = vsel %vm664, %v2718, 0
        %v2747 = vsel %vm664, %v2717, 0
        %2749 = vmatprep.subr.bf16.mxu0 0
        %2750 = vmatpush1.bf16.msra.mxu0 0
        %2751 = vmatprep.subr.bf16.mxu0 0
        %2752 = vmatpush1.bf16.msra.mxu0 0
        %2753 = vmatprep.subr.bf16.mxu0 0
        %2754 = vmatpush1.bf16.msra.mxu0 0
        %2755 = vmatprep.subr.bf16.mxu0 0
        %2756 = vmatpush1.bf16.msra.mxu0 0
        %2757 = vmatprep.subr.bf16.mxu0 0
        %2758 = vmatpush1.bf16.msra.mxu0 %v2738
        %2759 = vmatprep.subr.bf16.mxu0 0
        %2760 = vmatpush1.bf16.msra.mxu0 %v2737
        %2761 = vmatprep.subr.bf16.mxu0 0
        %2762 = vmatpush1.bf16.msra.mxu0 %v2736
        %2763 = vmatprep.subr.bf16.mxu0 0
        %2764 = vmatpush1.bf16.msra.mxu0 %v2735
        %2765 = vmatprep.subr.bf16.mxu0 0
        %2766 = vmatpush2.bf16.msra.mxu0 0
        %2767 = vmatprep.subr.bf16.mxu0 0
        %2768 = vmatpush2.bf16.msra.mxu0 0
        %2769 = vmatprep.subr.bf16.mxu0 0
        %2770 = vmatpush2.bf16.msra.mxu0 0
        %2771 = vmatprep.subr.bf16.mxu0 0
        %2772 = vmatpush2.bf16.msra.mxu0 0
        %2773 = vmatprep.subr.bf16.mxu0 0
        %2774 = vmatpush2.bf16.msra.mxu0 0
        %2775 = vmatprep.subr.bf16.mxu0 0
        %2776 = vmatpush2.bf16.msra.mxu0 0
        %2777 = vmatprep.subr.bf16.mxu0 0
        %2778 = vmatpush2.bf16.msra.mxu0 0
        %2779 = vmatprep.subr.bf16.mxu0 0
        %2780 = vmatpush2.bf16.msra.mxu0 0
        %2781 = vmatprep.mubr.bf16.mxu0 0
        %2782 = vmatmul.mubr.bf16.gmra.mxu0 %v2744
        %v2783 = vpop.f32.mrf.mxu0
        %v2784 = vadd.f32 0.0, %v2783
        %v2785 = vpop.f32.mrf.mxu0
        %v2786 = vpop.f32.mrf.mxu0
        %v2787 = vadd.f32 0.0, %v2786
        %v2788 = vpop.f32.mrf.mxu0
        %2789 = vmatprep.mubr.bf16.mxu0 0
        %2790 = vmatmul.mubr.bf16.gmra.mxu0 %v2747
        %v2791 = vpop.f32.mrf.mxu0
        %v2792 = vadd.f32 0.0, %v2791
        %v2793 = vpop.f32.mrf.mxu0
        %v2794 = vpop.f32.mrf.mxu0
        %v2795 = vadd.f32 0.0, %v2794
        %v2796 = vpop.f32.mrf.mxu0
        %2797 = vdwg.mxu0
        %v2798 = vadd.f32 %v2690, %v2784
        %v2799 = vadd.f32 %v2693, %v2787
        %v2800 = vadd.f32 %v2698, %v2792
        %v2801 = vadd.f32 %v2701, %v2795
        %v2802 = vpack.c.bf16 %v2509, %v2508
        %v2803 = vpack.c.bf16 %v2511, %v2510
        %s2804 = scalar_lea.vmem %s5, 96
        %v2805 = vld [vmem:[%s2804] sm:$0xf]
        %v2806 = vld [vmem:[%s2804 + $0x4] sm:$0xf]
        %v2807 = vld [vmem:[%s2804 + $0x8] sm:$0xf]
        %v2808 = vld [vmem:[%s2804 + $0xc] sm:$0xf]
        %v2809 = vld [vmem:[%s2804 + $0x10] sm:$0xf]
        %v2810 = vld [vmem:[%s2804 + $0x14] sm:$0xf]
        %v2811 = vld [vmem:[%s2804 + $0x18] sm:$0xf]
        %v2812 = vld [vmem:[%s2804 + $0x1c] sm:$0xf]
        %v2821 = vunpack.c.l.b16 %v2805
        %v2822 = vunpack.c.l.b16 %v2806
        %v2823 = vunpack.c.l.b16 %v2807
        %v2824 = vunpack.c.l.b16 %v2808
        %v2825 = vunpack.c.l.b16 %v2809
        %v2826 = vunpack.c.l.b16 %v2810
        %v2827 = vunpack.c.l.b16 %v2811
        %v2828 = vunpack.c.l.b16 %v2812
        %v2829 = vpack.c.b16 %v2822, %v2821
        %v2830 = vpack.c.b16 %v2824, %v2823
        %v2831 = vpack.c.b16 %v2826, %v2825
        %v2832 = vpack.c.b16 %v2828, %v2827
        %v2838 = vsel %vm664, %v2802, 0
        %v2841 = vsel %vm664, %v2803, 0
        %2843 = vmatprep.subr.bf16.mxu0 0
        %2844 = vmatpush1.bf16.msra.mxu0 0
        %2845 = vmatprep.subr.bf16.mxu0 0
        %2846 = vmatpush1.bf16.msra.mxu0 0
        %2847 = vmatprep.subr.bf16.mxu0 0
        %2848 = vmatpush1.bf16.msra.mxu0 0
        %2849 = vmatprep.subr.bf16.mxu0 0
        %2850 = vmatpush1.bf16.msra.mxu0 0
        %2851 = vmatprep.subr.bf16.mxu0 0
        %2852 = vmatpush1.bf16.msra.mxu0 %v2832
        %2853 = vmatprep.subr.bf16.mxu0 0
        %2854 = vmatpush1.bf16.msra.mxu0 %v2831
        %2855 = vmatprep.subr.bf16.mxu0 0
        %2856 = vmatpush1.bf16.msra.mxu0 %v2830
        %2857 = vmatprep.subr.bf16.mxu0 0
        %2858 = vmatpush1.bf16.msra.mxu0 %v2829
        %2859 = vmatprep.subr.bf16.mxu0 0
        %2860 = vmatpush2.bf16.msra.mxu0 0
        %2861 = vmatprep.subr.bf16.mxu0 0
        %2862 = vmatpush2.bf16.msra.mxu0 0
        %2863 = vmatprep.subr.bf16.mxu0 0
        %2864 = vmatpush2.bf16.msra.mxu0 0
        %2865 = vmatprep.subr.bf16.mxu0 0
        %2866 = vmatpush2.bf16.msra.mxu0 0
        %2867 = vmatprep.subr.bf16.mxu0 0
        %2868 = vmatpush2.bf16.msra.mxu0 0
        %2869 = vmatprep.subr.bf16.mxu0 0
        %2870 = vmatpush2.bf16.msra.mxu0 0
        %2871 = vmatprep.subr.bf16.mxu0 0
        %2872 = vmatpush2.bf16.msra.mxu0 0
        %2873 = vmatprep.subr.bf16.mxu0 0
        %2874 = vmatpush2.bf16.msra.mxu0 0
        %2875 = vmatprep.mubr.bf16.mxu0 0
        %2876 = vmatmul.mubr.bf16.gmra.mxu0 %v2838
        %v2877 = vpop.f32.mrf.mxu0
        %v2878 = vadd.f32 0.0, %v2877
        %v2879 = vpop.f32.mrf.mxu0
        %v2880 = vpop.f32.mrf.mxu0
        %v2881 = vadd.f32 0.0, %v2880
        %v2882 = vpop.f32.mrf.mxu0
        %2883 = vmatprep.mubr.bf16.mxu0 0
        %2884 = vmatmul.mubr.bf16.gmra.mxu0 %v2841
        %v2885 = vpop.f32.mrf.mxu0
        %v2886 = vadd.f32 0.0, %v2885
        %v2887 = vpop.f32.mrf.mxu0
        %v2888 = vpop.f32.mrf.mxu0
        %v2889 = vadd.f32 0.0, %v2888
        %v2890 = vpop.f32.mrf.mxu0
        %2891 = vdwg.mxu0
        %v2892 = vadd.f32 %v2798, %v2878
        %v2893 = vadd.f32 %v2799, %v2881
        %v2894 = vadd.f32 %v2800, %v2886
        %v2895 = vadd.f32 %v2801, %v2889
        %s2896 = scalar_lea.vmem %s5, 128
        %v2897 = vld [vmem:[%s2896] sm:$0xf]
        %v2898 = vld [vmem:[%s2896 + $0x4] sm:$0xf]
        %v2899 = vld [vmem:[%s2896 + $0x8] sm:$0xf]
        %v2900 = vld [vmem:[%s2896 + $0xc] sm:$0xf]
        %v2901 = vld [vmem:[%s2896 + $0x10] sm:$0xf]
        %v2902 = vld [vmem:[%s2896 + $0x14] sm:$0xf]
        %v2903 = vld [vmem:[%s2896 + $0x18] sm:$0xf]
        %v2904 = vld [vmem:[%s2896 + $0x1c] sm:$0xf]
        %v2905 = vshrl.u32 %v2802, 16
        %v2907 = vshll.u32 %v2802, 16
        %v2909 = vrot.slane %v2907, 1
        %v2910 = vor.u32 %v2905, %v2909
        %v2911 = vshll.u32 %v2803, 16
        %v2913 = vrot.slane %v2911, 1
        %v2914 = vsel %vm2532, %v2910, %v2913
        %v2915 = vshrl.u32 %v2803, 16
        %v2917 = vor.u32 %v2915, %v2913
        %v2926 = vunpack.c.l.b16 %v2897
        %v2927 = vunpack.c.l.b16 %v2898
        %v2928 = vunpack.c.l.b16 %v2899
        %v2929 = vunpack.c.l.b16 %v2900
        %v2930 = vunpack.c.l.b16 %v2901
        %v2931 = vunpack.c.l.b16 %v2902
        %v2932 = vunpack.c.l.b16 %v2903
        %v2933 = vunpack.c.l.b16 %v2904
        %v2934 = vpack.c.b16 %v2927, %v2926
        %v2935 = vpack.c.b16 %v2929, %v2928
        %v2936 = vpack.c.b16 %v2931, %v2930
        %v2937 = vpack.c.b16 %v2933, %v2932
        %v2943 = vsel %vm664, %v2914, 0
        %v2946 = vsel %vm664, %v2917, 0
        %2948 = vmatprep.subr.bf16.mxu0 0
        %2949 = vmatpush1.bf16.msra.mxu0 0
        %2950 = vmatprep.subr.bf16.mxu0 0
        %2951 = vmatpush1.bf16.msra.mxu0 0
        %2952 = vmatprep.subr.bf16.mxu0 0
        %2953 = vmatpush1.bf16.msra.mxu0 0
        %2954 = vmatprep.subr.bf16.mxu0 0
        %2955 = vmatpush1.bf16.msra.mxu0 0
        %2956 = vmatprep.subr.bf16.mxu0 0
        %2957 = vmatpush1.bf16.msra.mxu0 %v2937
        %2958 = vmatprep.subr.bf16.mxu0 0
        %2959 = vmatpush1.bf16.msra.mxu0 %v2936
        %2960 = vmatprep.subr.bf16.mxu0 0
        %2961 = vmatpush1.bf16.msra.mxu0 %v2935
        %2962 = vmatprep.subr.bf16.mxu0 0
        %2963 = vmatpush1.bf16.msra.mxu0 %v2934
        %2964 = vmatprep.subr.bf16.mxu0 0
        %2965 = vmatpush2.bf16.msra.mxu0 0
        %2966 = vmatprep.subr.bf16.mxu0 0
        %2967 = vmatpush2.bf16.msra.mxu0 0
        %2968 = vmatprep.subr.bf16.mxu0 0
        %2969 = vmatpush2.bf16.msra.mxu0 0
        %2970 = vmatprep.subr.bf16.mxu0 0
        %2971 = vmatpush2.bf16.msra.mxu0 0
        %2972 = vmatprep.subr.bf16.mxu0 0
        %2973 = vmatpush2.bf16.msra.mxu0 0
        %2974 = vmatprep.subr.bf16.mxu0 0
        %2975 = vmatpush2.bf16.msra.mxu0 0
        %2976 = vmatprep.subr.bf16.mxu0 0
        %2977 = vmatpush2.bf16.msra.mxu0 0
        %2978 = vmatprep.subr.bf16.mxu0 0
        %2979 = vmatpush2.bf16.msra.mxu0 0
        %2980 = vmatprep.mubr.bf16.mxu0 0
        %2981 = vmatmul.mubr.bf16.gmra.mxu0 %v2943
        %v2982 = vpop.f32.mrf.mxu0
        %v2983 = vadd.f32 0.0, %v2982
        %v2984 = vpop.f32.mrf.mxu0
        %v2985 = vpop.f32.mrf.mxu0
        %v2986 = vadd.f32 0.0, %v2985
        %v2987 = vpop.f32.mrf.mxu0
        %2988 = vmatprep.mubr.bf16.mxu0 0
        %2989 = vmatmul.mubr.bf16.gmra.mxu0 %v2946
        %v2990 = vpop.f32.mrf.mxu0
        %v2991 = vadd.f32 0.0, %v2990
        %v2992 = vpop.f32.mrf.mxu0
        %v2993 = vpop.f32.mrf.mxu0
        %v2994 = vadd.f32 0.0, %v2993
        %v2995 = vpop.f32.mrf.mxu0
        %2996 = vdwg.mxu0
        %v2997 = vadd.f32 %v2892, %v2983
        %v2998 = vadd.f32 %v2893, %v2986
        %v2999 = vadd.f32 %v2894, %v2991
        %v3000 = vadd.f32 %v2895, %v2994
        %s3001 = scalar_lea.vmem %s5, 160
        %v3002 = vld [vmem:[%s3001] sm:$0xf]
        %v3003 = vld [vmem:[%s3001 + $0x4] sm:$0xf]
        %v3004 = vld [vmem:[%s3001 + $0x8] sm:$0xf]
        %v3005 = vld [vmem:[%s3001 + $0xc] sm:$0xf]
        %v3006 = vld [vmem:[%s3001 + $0x10] sm:$0xf]
        %v3007 = vld [vmem:[%s3001 + $0x14] sm:$0xf]
        %v3008 = vld [vmem:[%s3001 + $0x18] sm:$0xf]
        %v3009 = vld [vmem:[%s3001 + $0x1c] sm:$0xf]
        %v3012 = vrot.slane %v2802, 1
        %v3013 = vrot.slane %v2803, 1
        %v3014 = vsel %vm2715, %v3012, %v3013
        %v3023 = vunpack.c.l.b16 %v3002
        %v3024 = vunpack.c.l.b16 %v3003
        %v3025 = vunpack.c.l.b16 %v3004
        %v3026 = vunpack.c.l.b16 %v3005
        %v3027 = vunpack.c.l.b16 %v3006
        %v3028 = vunpack.c.l.b16 %v3007
        %v3029 = vunpack.c.l.b16 %v3008
        %v3030 = vunpack.c.l.b16 %v3009
        %v3031 = vpack.c.b16 %v3024, %v3023
        %v3032 = vpack.c.b16 %v3026, %v3025
        %v3033 = vpack.c.b16 %v3028, %v3027
        %v3034 = vpack.c.b16 %v3030, %v3029
        %v3040 = vsel %vm664, %v3014, 0
        %v3043 = vsel %vm664, %v3013, 0
        %3045 = vmatprep.subr.bf16.mxu0 0
        %3046 = vmatpush1.bf16.msra.mxu0 0
        %3047 = vmatprep.subr.bf16.mxu0 0
        %3048 = vmatpush1.bf16.msra.mxu0 0
        %3049 = vmatprep.subr.bf16.mxu0 0
        %3050 = vmatpush1.bf16.msra.mxu0 0
        %3051 = vmatprep.subr.bf16.mxu0 0
        %3052 = vmatpush1.bf16.msra.mxu0 0
        %3053 = vmatprep.subr.bf16.mxu0 0
        %3054 = vmatpush1.bf16.msra.mxu0 %v3034
        %3055 = vmatprep.subr.bf16.mxu0 0
        %3056 = vmatpush1.bf16.msra.mxu0 %v3033
        %3057 = vmatprep.subr.bf16.mxu0 0
        %3058 = vmatpush1.bf16.msra.mxu0 %v3032
        %3059 = vmatprep.subr.bf16.mxu0 0
        %3060 = vmatpush1.bf16.msra.mxu0 %v3031
        %3061 = vmatprep.subr.bf16.mxu0 0
        %3062 = vmatpush2.bf16.msra.mxu0 0
        %3063 = vmatprep.subr.bf16.mxu0 0
        %3064 = vmatpush2.bf16.msra.mxu0 0
        %3065 = vmatprep.subr.bf16.mxu0 0
        %3066 = vmatpush2.bf16.msra.mxu0 0
        %3067 = vmatprep.subr.bf16.mxu0 0
        %3068 = vmatpush2.bf16.msra.mxu0 0
        %3069 = vmatprep.subr.bf16.mxu0 0
        %3070 = vmatpush2.bf16.msra.mxu0 0
        %3071 = vmatprep.subr.bf16.mxu0 0
        %3072 = vmatpush2.bf16.msra.mxu0 0
        %3073 = vmatprep.subr.bf16.mxu0 0
        %3074 = vmatpush2.bf16.msra.mxu0 0
        %3075 = vmatprep.subr.bf16.mxu0 0
        %3076 = vmatpush2.bf16.msra.mxu0 0
        %3077 = vmatprep.mubr.bf16.mxu0 0
        %3078 = vmatmul.mubr.bf16.gmra.mxu0 %v3040
        %v3079 = vpop.f32.mrf.mxu0
        %v3080 = vadd.f32 0.0, %v3079
        %v3081 = vpop.f32.mrf.mxu0
        %v3082 = vpop.f32.mrf.mxu0
        %v3083 = vadd.f32 0.0, %v3082
        %v3084 = vpop.f32.mrf.mxu0
        %3085 = vmatprep.mubr.bf16.mxu0 0
        %3086 = vmatmul.mubr.bf16.gmra.mxu0 %v3043
        %v3087 = vpop.f32.mrf.mxu0
        %v3088 = vadd.f32 0.0, %v3087
        %v3089 = vpop.f32.mrf.mxu0
        %v3090 = vpop.f32.mrf.mxu0
        %v3091 = vadd.f32 0.0, %v3090
        %v3092 = vpop.f32.mrf.mxu0
        %3093 = vdwg.mxu0
        %v3094 = vadd.f32 %v2997, %v3080
        %v3095 = vadd.f32 %v2998, %v3083
        %v3096 = vadd.f32 %v2999, %v3088
        %v3097 = vadd.f32 %v3000, %v3091
        %v3098 = vpack.c.bf16 %v2512, %v2511
        %s3099 = scalar_lea.vmem %s5, 192
        %v3100 = vld [vmem:[%s3099] sm:$0xf]
        %v3101 = vld [vmem:[%s3099 + $0x4] sm:$0xf]
        %v3102 = vld [vmem:[%s3099 + $0x8] sm:$0xf]
        %v3103 = vld [vmem:[%s3099 + $0xc] sm:$0xf]
        %v3104 = vld [vmem:[%s3099 + $0x10] sm:$0xf]
        %v3105 = vld [vmem:[%s3099 + $0x14] sm:$0xf]
        %v3106 = vld [vmem:[%s3099 + $0x18] sm:$0xf]
        %v3107 = vld [vmem:[%s3099 + $0x1c] sm:$0xf]
        %v3116 = vunpack.c.l.b16 %v3100
        %v3117 = vunpack.c.l.b16 %v3101
        %v3118 = vunpack.c.l.b16 %v3102
        %v3119 = vunpack.c.l.b16 %v3103
        %v3120 = vunpack.c.l.b16 %v3104
        %v3121 = vunpack.c.l.b16 %v3105
        %v3122 = vunpack.c.l.b16 %v3106
        %v3123 = vunpack.c.l.b16 %v3107
        %v3124 = vpack.c.b16 %v3117, %v3116
        %v3125 = vpack.c.b16 %v3119, %v3118
        %v3126 = vpack.c.b16 %v3121, %v3120
        %v3127 = vpack.c.b16 %v3123, %v3122
        %v3133 = vsel %vm664, %v3098, 0
        %3135 = vmatprep.subr.bf16.mxu0 0
        %3136 = vmatpush1.bf16.msra.mxu0 0
        %3137 = vmatprep.subr.bf16.mxu0 0
        %3138 = vmatpush1.bf16.msra.mxu0 0
        %3139 = vmatprep.subr.bf16.mxu0 0
        %3140 = vmatpush1.bf16.msra.mxu0 0
        %3141 = vmatprep.subr.bf16.mxu0 0
        %3142 = vmatpush1.bf16.msra.mxu0 0
        %3143 = vmatprep.subr.bf16.mxu0 0
        %3144 = vmatpush1.bf16.msra.mxu0 %v3127
        %3145 = vmatprep.subr.bf16.mxu0 0
        %3146 = vmatpush1.bf16.msra.mxu0 %v3126
        %3147 = vmatprep.subr.bf16.mxu0 0
        %3148 = vmatpush1.bf16.msra.mxu0 %v3125
        %3149 = vmatprep.subr.bf16.mxu0 0
        %3150 = vmatpush1.bf16.msra.mxu0 %v3124
        %3151 = vmatprep.subr.bf16.mxu0 0
        %3152 = vmatpush2.bf16.msra.mxu0 0
        %3153 = vmatprep.subr.bf16.mxu0 0
        %3154 = vmatpush2.bf16.msra.mxu0 0
        %3155 = vmatprep.subr.bf16.mxu0 0
        %3156 = vmatpush2.bf16.msra.mxu0 0
        %3157 = vmatprep.subr.bf16.mxu0 0
        %3158 = vmatpush2.bf16.msra.mxu0 0
        %3159 = vmatprep.subr.bf16.mxu0 0
        %3160 = vmatpush2.bf16.msra.mxu0 0
        %3161 = vmatprep.subr.bf16.mxu0 0
        %3162 = vmatpush2.bf16.msra.mxu0 0
        %3163 = vmatprep.subr.bf16.mxu0 0
        %3164 = vmatpush2.bf16.msra.mxu0 0
        %3165 = vmatprep.subr.bf16.mxu0 0
        %3166 = vmatpush2.bf16.msra.mxu0 0
        %3167 = vmatprep.mubr.bf16.mxu0 0
        %3168 = vmatmul.mubr.bf16.gmra.mxu0 %v2653
        %v3169 = vpop.f32.mrf.mxu0
        %v3170 = vadd.f32 0.0, %v3169
        %v3171 = vpop.f32.mrf.mxu0
        %v3172 = vpop.f32.mrf.mxu0
        %v3173 = vadd.f32 0.0, %v3172
        %v3174 = vpop.f32.mrf.mxu0
        %3175 = vmatprep.mubr.bf16.mxu0 0
        %3176 = vmatmul.mubr.bf16.gmra.mxu0 %v3133
        %v3177 = vpop.f32.mrf.mxu0
        %v3178 = vadd.f32 0.0, %v3177
        %v3179 = vpop.f32.mrf.mxu0
        %v3180 = vpop.f32.mrf.mxu0
        %v3181 = vadd.f32 0.0, %v3180
        %v3182 = vpop.f32.mrf.mxu0
        %3183 = vdwg.mxu0
        %v3184 = vadd.f32 %v3094, %v3170
        %v3185 = vadd.f32 %v3095, %v3173
        %v3186 = vadd.f32 %v3096, %v3178
        %v3187 = vadd.f32 %v3097, %v3181
        %s3188 = scalar_lea.vmem %s5, 224
        %v3189 = vld [vmem:[%s3188] sm:$0xf]
        %v3190 = vld [vmem:[%s3188 + $0x4] sm:$0xf]
        %v3191 = vld [vmem:[%s3188 + $0x8] sm:$0xf]
        %v3192 = vld [vmem:[%s3188 + $0xc] sm:$0xf]
        %v3193 = vld [vmem:[%s3188 + $0x10] sm:$0xf]
        %v3194 = vld [vmem:[%s3188 + $0x14] sm:$0xf]
        %v3195 = vld [vmem:[%s3188 + $0x18] sm:$0xf]
        %v3196 = vld [vmem:[%s3188 + $0x1c] sm:$0xf]
        %v3197 = vshll.u32 %v3098, 16
        %v3199 = vrot.slane %v3197, 1
        %v3200 = vsel %vm2532, %v2547, %v3199
        %v3201 = vshrl.u32 %v3098, 16
        %v3203 = vor.u32 %v3201, %v3199
        %v3212 = vunpack.c.l.b16 %v3189
        %v3213 = vunpack.c.l.b16 %v3190
        %v3214 = vunpack.c.l.b16 %v3191
        %v3215 = vunpack.c.l.b16 %v3192
        %v3216 = vunpack.c.l.b16 %v3193
        %v3217 = vunpack.c.l.b16 %v3194
        %v3218 = vunpack.c.l.b16 %v3195
        %v3219 = vunpack.c.l.b16 %v3196
        %v3220 = vpack.c.b16 %v3213, %v3212
        %v3221 = vpack.c.b16 %v3215, %v3214
        %v3222 = vpack.c.b16 %v3217, %v3216
        %v3223 = vpack.c.b16 %v3219, %v3218
        %v3229 = vsel %vm664, %v3200, 0
        %v3232 = vsel %vm664, %v3203, 0
        %3234 = vmatprep.subr.bf16.mxu0 0
        %3235 = vmatpush1.bf16.msra.mxu0 0
        %3236 = vmatprep.subr.bf16.mxu0 0
        %3237 = vmatpush1.bf16.msra.mxu0 0
        %3238 = vmatprep.subr.bf16.mxu0 0
        %3239 = vmatpush1.bf16.msra.mxu0 0
        %3240 = vmatprep.subr.bf16.mxu0 0
        %3241 = vmatpush1.bf16.msra.mxu0 0
        %3242 = vmatprep.subr.bf16.mxu0 0
        %3243 = vmatpush1.bf16.msra.mxu0 %v3223
        %3244 = vmatprep.subr.bf16.mxu0 0
        %3245 = vmatpush1.bf16.msra.mxu0 %v3222
        %3246 = vmatprep.subr.bf16.mxu0 0
        %3247 = vmatpush1.bf16.msra.mxu0 %v3221
        %3248 = vmatprep.subr.bf16.mxu0 0
        %3249 = vmatpush1.bf16.msra.mxu0 %v3220
        %3250 = vmatprep.subr.bf16.mxu0 0
        %3251 = vmatpush2.bf16.msra.mxu0 0
        %3252 = vmatprep.subr.bf16.mxu0 0
        %3253 = vmatpush2.bf16.msra.mxu0 0
        %3254 = vmatprep.subr.bf16.mxu0 0
        %3255 = vmatpush2.bf16.msra.mxu0 0
        %3256 = vmatprep.subr.bf16.mxu0 0
        %3257 = vmatpush2.bf16.msra.mxu0 0
        %3258 = vmatprep.subr.bf16.mxu0 0
        %3259 = vmatpush2.bf16.msra.mxu0 0
        %3260 = vmatprep.subr.bf16.mxu0 0
        %3261 = vmatpush2.bf16.msra.mxu0 0
        %3262 = vmatprep.subr.bf16.mxu0 0
        %3263 = vmatpush2.bf16.msra.mxu0 0
        %3264 = vmatprep.subr.bf16.mxu0 0
        %3265 = vmatpush2.bf16.msra.mxu0 0
        %3266 = vmatprep.mubr.bf16.mxu0 0
        %3267 = vmatmul.mubr.bf16.gmra.mxu0 %v3229
        %v3268 = vpop.f32.mrf.mxu0
        %v3269 = vadd.f32 0.0, %v3268
        %v3270 = vpop.f32.mrf.mxu0
        %v3271 = vpop.f32.mrf.mxu0
        %v3272 = vadd.f32 0.0, %v3271
        %v3273 = vpop.f32.mrf.mxu0
        %3274 = vmatprep.mubr.bf16.mxu0 0
        %3275 = vmatmul.mubr.bf16.gmra.mxu0 %v3232
        %v3276 = vpop.f32.mrf.mxu0
        %v3277 = vadd.f32 0.0, %v3276
        %v3278 = vpop.f32.mrf.mxu0
        %v3279 = vpop.f32.mrf.mxu0
        %v3280 = vadd.f32 0.0, %v3279
        %v3281 = vpop.f32.mrf.mxu0
        %3282 = vdwg.mxu0
        %v3283 = vadd.f32 %v3184, %v3269
        %v3284 = vadd.f32 %v3185, %v3272
        %v3285 = vadd.f32 %v3186, %v3277
        %v3286 = vadd.f32 %v3187, %v3280
        %s3287 = scalar_lea.vmem %s5, 256
        %v3288 = vld [vmem:[%s3287] sm:$0xf]
        %v3289 = vld [vmem:[%s3287 + $0x4] sm:$0xf]
        %v3290 = vld [vmem:[%s3287 + $0x8] sm:$0xf]
        %v3291 = vld [vmem:[%s3287 + $0xc] sm:$0xf]
        %v3292 = vld [vmem:[%s3287 + $0x10] sm:$0xf]
        %v3293 = vld [vmem:[%s3287 + $0x14] sm:$0xf]
        %v3294 = vld [vmem:[%s3287 + $0x18] sm:$0xf]
        %v3295 = vld [vmem:[%s3287 + $0x1c] sm:$0xf]
        %v3297 = vrot.slane %v3098, 1
        %v3298 = vsel %vm2715, %v2717, %v3297
        %v3307 = vunpack.c.l.b16 %v3288
        %v3308 = vunpack.c.l.b16 %v3289
        %v3309 = vunpack.c.l.b16 %v3290
        %v3310 = vunpack.c.l.b16 %v3291
        %v3311 = vunpack.c.l.b16 %v3292
        %v3312 = vunpack.c.l.b16 %v3293
        %v3313 = vunpack.c.l.b16 %v3294
        %v3314 = vunpack.c.l.b16 %v3295
        %v3315 = vpack.c.b16 %v3308, %v3307
        %v3316 = vpack.c.b16 %v3310, %v3309
        %v3317 = vpack.c.b16 %v3312, %v3311
        %v3318 = vpack.c.b16 %v3314, %v3313
        %v3324 = vsel %vm664, %v3298, 0
        %v3327 = vsel %vm664, %v3297, 0
        %3329 = vmatprep.subr.bf16.mxu0 0
        %3330 = vmatpush1.bf16.msra.mxu0 0
        %3331 = vmatprep.subr.bf16.mxu0 0
        %3332 = vmatpush1.bf16.msra.mxu0 0
        %3333 = vmatprep.subr.bf16.mxu0 0
        %3334 = vmatpush1.bf16.msra.mxu0 0
        %3335 = vmatprep.subr.bf16.mxu0 0
        %3336 = vmatpush1.bf16.msra.mxu0 0
        %3337 = vmatprep.subr.bf16.mxu0 0
        %3338 = vmatpush1.bf16.msra.mxu0 %v3318
        %3339 = vmatprep.subr.bf16.mxu0 0
        %3340 = vmatpush1.bf16.msra.mxu0 %v3317
        %3341 = vmatprep.subr.bf16.mxu0 0
        %3342 = vmatpush1.bf16.msra.mxu0 %v3316
        %3343 = vmatprep.subr.bf16.mxu0 0
        %3344 = vmatpush1.bf16.msra.mxu0 %v3315
        %3345 = vmatprep.subr.bf16.mxu0 0
        %3346 = vmatpush2.bf16.msra.mxu0 0
        %3347 = vmatprep.subr.bf16.mxu0 0
        %3348 = vmatpush2.bf16.msra.mxu0 0
        %3349 = vmatprep.subr.bf16.mxu0 0
        %3350 = vmatpush2.bf16.msra.mxu0 0
        %3351 = vmatprep.subr.bf16.mxu0 0
        %3352 = vmatpush2.bf16.msra.mxu0 0
        %3353 = vmatprep.subr.bf16.mxu0 0
        %3354 = vmatpush2.bf16.msra.mxu0 0
        %3355 = vmatprep.subr.bf16.mxu0 0
        %3356 = vmatpush2.bf16.msra.mxu0 0
        %3357 = vmatprep.subr.bf16.mxu0 0
        %3358 = vmatpush2.bf16.msra.mxu0 0
        %3359 = vmatprep.subr.bf16.mxu0 0
        %3360 = vmatpush2.bf16.msra.mxu0 0
        %3361 = vmatprep.mubr.bf16.mxu0 0
        %3362 = vmatmul.mubr.bf16.gmra.mxu0 %v3324
        %v3363 = vpop.f32.mrf.mxu0
        %v3364 = vadd.f32 0.0, %v3363
        %v3365 = vpop.f32.mrf.mxu0
        %v3366 = vpop.f32.mrf.mxu0
        %v3367 = vadd.f32 0.0, %v3366
        %v3368 = vpop.f32.mrf.mxu0
        %3369 = vmatprep.mubr.bf16.mxu0 0
        %3370 = vmatmul.mubr.bf16.gmra.mxu0 %v3327
        %v3371 = vpop.f32.mrf.mxu0
        %v3372 = vadd.f32 0.0, %v3371
        %v3373 = vpop.f32.mrf.mxu0
        %v3374 = vpop.f32.mrf.mxu0
        %v3375 = vadd.f32 0.0, %v3374
        %v3376 = vpop.f32.mrf.mxu0
        %3377 = vdwg.mxu0
        %v3378 = vadd.f32 %v3283, %v3364
        %v3379 = vadd.f32 %v3284, %v3367
        %v3380 = vadd.f32 %v3285, %v3372
        %v3381 = vadd.f32 %v3286, %v3375
        %v3382 = vld [vmem:[%s6] sm:$0x1]
        %v3384 = vlaneseq
        %v3385 = vshrl.u32 %v3384, 7
        %v3386 = vsub.s32 0, %v3385
        %v3387 = vrot.slane %v3382, %v3386
        %v3389 = vadd.f32 %v3378, %v3387
        %v3390 = vadd.f32 %v3379, %v3387
        %v3391 = vadd.f32 %v3380, %v3387
        %v3392 = vadd.f32 %v3381, %v3387
        %v3393 = vmax.f32 %v3389, 0.0
        %v3394 = vmax.f32 %v3390, 0.0
        %v3395 = vmax.f32 %v3391, 0.0
        %v3396 = vmax.f32 %v3392, 0.0
        %v3397 = vpack.c.bf16 %v3393, %v3393
        %v3398 = vld [vmem:[%s7] sm:$0xf]
        %v3399 = vld [vmem:[%s7 + $0x4] sm:$0xf]
        %v3400 = vld [vmem:[%s7 + $0x8] sm:$0xf]
        %v3401 = vld [vmem:[%s7 + $0xc] sm:$0xf]
        %v3402 = vld [vmem:[%s7 + $0x10] sm:$0xf]
        %v3403 = vld [vmem:[%s7 + $0x14] sm:$0xf]
        %v3404 = vld [vmem:[%s7 + $0x18] sm:$0xf]
        %v3405 = vld [vmem:[%s7 + $0x1c] sm:$0xf]
        %s3406 = scalar_lea.vmem %s7, 32
        %v3407 = vld [vmem:[%s3406] sm:$0xf]
        %v3408 = vld [vmem:[%s3406 + $0x4] sm:$0xf]
        %v3409 = vld [vmem:[%s3406 + $0x8] sm:$0xf]
        %v3410 = vld [vmem:[%s3406 + $0xc] sm:$0xf]
        %v3411 = vld [vmem:[%s3406 + $0x10] sm:$0xf]
        %v3412 = vld [vmem:[%s3406 + $0x14] sm:$0xf]
        %v3413 = vld [vmem:[%s3406 + $0x18] sm:$0xf]
        %v3414 = vld [vmem:[%s3406 + $0x1c] sm:$0xf]
        %v3416 = vshrl.u32 %v3397, 16
        %v3426 = vunpack.c.l.b16 %v3407
        %v3427 = vunpack.c.l.b16 %v3408
        %v3428 = vunpack.c.l.b16 %v3409
        %v3429 = vunpack.c.l.b16 %v3410
        %v3430 = vunpack.c.l.b16 %v3411
        %v3431 = vunpack.c.l.b16 %v3412
        %v3432 = vunpack.c.l.b16 %v3413
        %v3433 = vunpack.c.l.b16 %v3414
        %v3434 = vpack.c.b16 %v3427, %v3426
        %v3435 = vpack.c.b16 %v3429, %v3428
        %v3436 = vpack.c.b16 %v3431, %v3430
        %v3437 = vpack.c.b16 %v3433, %v3432
        %v3443 = vsel %vm664, %v3416, 0
        %3445 = vmatprep.subr.bf16.mxu0 0
        %3446 = vmatpush1.bf16.msra.mxu0 0
        %3447 = vmatprep.subr.bf16.mxu0 0
        %3448 = vmatpush1.bf16.msra.mxu0 0
        %3449 = vmatprep.subr.bf16.mxu0 0
        %3450 = vmatpush1.bf16.msra.mxu0 0
        %3451 = vmatprep.subr.bf16.mxu0 0
        %3452 = vmatpush1.bf16.msra.mxu0 0
        %3453 = vmatprep.subr.bf16.mxu0 0
        %3454 = vmatpush1.bf16.msra.mxu0 %v3437
        %3455 = vmatprep.subr.bf16.mxu0 0
        %3456 = vmatpush1.bf16.msra.mxu0 %v3436
        %3457 = vmatprep.subr.bf16.mxu0 0
        %3458 = vmatpush1.bf16.msra.mxu0 %v3435
        %3459 = vmatprep.subr.bf16.mxu0 0
        %3460 = vmatpush1.bf16.msra.mxu0 %v3434
        %3461 = vmatprep.subr.bf16.mxu0 0
        %3462 = vmatpush2.bf16.msra.mxu0 0
        %3463 = vmatprep.subr.bf16.mxu0 0
        %3464 = vmatpush2.bf16.msra.mxu0 0
        %3465 = vmatprep.subr.bf16.mxu0 0
        %3466 = vmatpush2.bf16.msra.mxu0 0
        %3467 = vmatprep.subr.bf16.mxu0 0
        %3468 = vmatpush2.bf16.msra.mxu0 0
        %3469 = vmatprep.subr.bf16.mxu0 0
        %3470 = vmatpush2.bf16.msra.mxu0 0
        %3471 = vmatprep.subr.bf16.mxu0 0
        %3472 = vmatpush2.bf16.msra.mxu0 0
        %3473 = vmatprep.subr.bf16.mxu0 0
        %3474 = vmatpush2.bf16.msra.mxu0 0
        %3475 = vmatprep.subr.bf16.mxu0 0
        %3476 = vmatpush2.bf16.msra.mxu0 0
        %3477 = vmatprep.mubr.bf16.mxu0 0
        %3478 = vmatmul.mubr.bf16.gmra.mxu0 %v3443
        %v3479 = vpop.f32.mrf.mxu0
        %v3480 = vadd.f32 0.0, %v3479
        %v3481 = vpop.f32.mrf.mxu0
        %v3482 = vpop.f32.mrf.mxu0
        %v3483 = vpop.f32.mrf.mxu0
        %3484 = vdwg.mxu0
        %v3493 = vunpack.c.l.b16 %v3398
        %v3494 = vunpack.c.l.b16 %v3399
        %v3495 = vunpack.c.l.b16 %v3400
        %v3496 = vunpack.c.l.b16 %v3401
        %v3497 = vunpack.c.l.b16 %v3402
        %v3498 = vunpack.c.l.b16 %v3403
        %v3499 = vunpack.c.l.b16 %v3404
        %v3500 = vunpack.c.l.b16 %v3405
        %v3501 = vpack.c.b16 %v3494, %v3493
        %v3502 = vpack.c.b16 %v3496, %v3495
        %v3503 = vpack.c.b16 %v3498, %v3497
        %v3504 = vpack.c.b16 %v3500, %v3499
        %v3509 = vsel %vm664, %v3397, 0
        %3511 = vmatprep.subr.bf16.mxu0 0
        %3512 = vmatpush1.bf16.msra.mxu0 0
        %3513 = vmatprep.subr.bf16.mxu0 0
        %3514 = vmatpush1.bf16.msra.mxu0 0
        %3515 = vmatprep.subr.bf16.mxu0 0
        %3516 = vmatpush1.bf16.msra.mxu0 0
        %3517 = vmatprep.subr.bf16.mxu0 0
        %3518 = vmatpush1.bf16.msra.mxu0 0
        %3519 = vmatprep.subr.bf16.mxu0 0
        %3520 = vmatpush1.bf16.msra.mxu0 %v3504
        %3521 = vmatprep.subr.bf16.mxu0 0
        %3522 = vmatpush1.bf16.msra.mxu0 %v3503
        %3523 = vmatprep.subr.bf16.mxu0 0
        %3524 = vmatpush1.bf16.msra.mxu0 %v3502
        %3525 = vmatprep.subr.bf16.mxu0 0
        %3526 = vmatpush1.bf16.msra.mxu0 %v3501
        %3527 = vmatprep.subr.bf16.mxu0 0
        %3528 = vmatpush2.bf16.msra.mxu0 0
        %3529 = vmatprep.subr.bf16.mxu0 0
        %3530 = vmatpush2.bf16.msra.mxu0 0
        %3531 = vmatprep.subr.bf16.mxu0 0
        %3532 = vmatpush2.bf16.msra.mxu0 0
        %3533 = vmatprep.subr.bf16.mxu0 0
        %3534 = vmatpush2.bf16.msra.mxu0 0
        %3535 = vmatprep.subr.bf16.mxu0 0
        %3536 = vmatpush2.bf16.msra.mxu0 0
        %3537 = vmatprep.subr.bf16.mxu0 0
        %3538 = vmatpush2.bf16.msra.mxu0 0
        %3539 = vmatprep.subr.bf16.mxu0 0
        %3540 = vmatpush2.bf16.msra.mxu0 0
        %3541 = vmatprep.subr.bf16.mxu0 0
        %3542 = vmatpush2.bf16.msra.mxu0 0
        %3543 = vmatprep.mubr.bf16.mxu0 0
        %3544 = vmatmul.mubr.bf16.gmra.mxu0 %v3509
        %v3545 = vpop.f32.mrf.mxu0
        %v3546 = vadd.f32 %v3480, %v3545
        %v3547 = vpop.f32.mrf.mxu0
        %v3548 = vpop.f32.mrf.mxu0
        %v3549 = vpop.f32.mrf.mxu0
        %3550 = vdwg.mxu0
        %s3551 = scalar_lea.vmem %s7, 64
        %v3552 = vld [vmem:[%s3551] sm:$0xf]
        %v3553 = vld [vmem:[%s3551 + $0x4] sm:$0xf]
        %v3554 = vld [vmem:[%s3551 + $0x8] sm:$0xf]
        %v3555 = vld [vmem:[%s3551 + $0xc] sm:$0xf]
        %v3556 = vld [vmem:[%s3551 + $0x10] sm:$0xf]
        %v3557 = vld [vmem:[%s3551 + $0x14] sm:$0xf]
        %v3558 = vld [vmem:[%s3551 + $0x18] sm:$0xf]
        %v3559 = vld [vmem:[%s3551 + $0x1c] sm:$0xf]
        %v3561 = vrot.slane %v3397, 1
        %v3570 = vunpack.c.l.b16 %v3552
        %v3571 = vunpack.c.l.b16 %v3553
        %v3572 = vunpack.c.l.b16 %v3554
        %v3573 = vunpack.c.l.b16 %v3555
        %v3574 = vunpack.c.l.b16 %v3556
        %v3575 = vunpack.c.l.b16 %v3557
        %v3576 = vunpack.c.l.b16 %v3558
        %v3577 = vunpack.c.l.b16 %v3559
        %v3578 = vpack.c.b16 %v3571, %v3570
        %v3579 = vpack.c.b16 %v3573, %v3572
        %v3580 = vpack.c.b16 %v3575, %v3574
        %v3581 = vpack.c.b16 %v3577, %v3576
        %v3587 = vsel %vm664, %v3561, 0
        %3589 = vmatprep.subr.bf16.mxu0 0
        %3590 = vmatpush1.bf16.msra.mxu0 0
        %3591 = vmatprep.subr.bf16.mxu0 0
        %3592 = vmatpush1.bf16.msra.mxu0 0
        %3593 = vmatprep.subr.bf16.mxu0 0
        %3594 = vmatpush1.bf16.msra.mxu0 0
        %3595 = vmatprep.subr.bf16.mxu0 0
        %3596 = vmatpush1.bf16.msra.mxu0 0
        %3597 = vmatprep.subr.bf16.mxu0 0
        %3598 = vmatpush1.bf16.msra.mxu0 %v3581
        %3599 = vmatprep.subr.bf16.mxu0 0
        %3600 = vmatpush1.bf16.msra.mxu0 %v3580
        %3601 = vmatprep.subr.bf16.mxu0 0
        %3602 = vmatpush1.bf16.msra.mxu0 %v3579
        %3603 = vmatprep.subr.bf16.mxu0 0
        %3604 = vmatpush1.bf16.msra.mxu0 %v3578
        %3605 = vmatprep.subr.bf16.mxu0 0
        %3606 = vmatpush2.bf16.msra.mxu0 0
        %3607 = vmatprep.subr.bf16.mxu0 0
        %3608 = vmatpush2.bf16.msra.mxu0 0
        %3609 = vmatprep.subr.bf16.mxu0 0
        %3610 = vmatpush2.bf16.msra.mxu0 0
        %3611 = vmatprep.subr.bf16.mxu0 0
        %3612 = vmatpush2.bf16.msra.mxu0 0
        %3613 = vmatprep.subr.bf16.mxu0 0
        %3614 = vmatpush2.bf16.msra.mxu0 0
        %3615 = vmatprep.subr.bf16.mxu0 0
        %3616 = vmatpush2.bf16.msra.mxu0 0
        %3617 = vmatprep.subr.bf16.mxu0 0
        %3618 = vmatpush2.bf16.msra.mxu0 0
        %3619 = vmatprep.subr.bf16.mxu0 0
        %3620 = vmatpush2.bf16.msra.mxu0 0
        %3621 = vmatprep.mubr.bf16.mxu0 0
        %3622 = vmatmul.mubr.bf16.gmra.mxu0 %v3587
        %v3623 = vpop.f32.mrf.mxu0
        %v3624 = vadd.f32 0.0, %v3623
        %v3625 = vpop.f32.mrf.mxu0
        %v3626 = vpop.f32.mrf.mxu0
        %v3627 = vpop.f32.mrf.mxu0
        %3628 = vdwg.mxu0
        %v3629 = vadd.f32 %v3546, %v3624
        %s3630 = scalar_lea.vmem %s7, 96
        %v3631 = vld [vmem:[%s3630] sm:$0xf]
        %v3632 = vld [vmem:[%s3630 + $0x4] sm:$0xf]
        %v3633 = vld [vmem:[%s3630 + $0x8] sm:$0xf]
        %v3634 = vld [vmem:[%s3630 + $0xc] sm:$0xf]
        %v3635 = vld [vmem:[%s3630 + $0x10] sm:$0xf]
        %v3636 = vld [vmem:[%s3630 + $0x14] sm:$0xf]
        %v3637 = vld [vmem:[%s3630 + $0x18] sm:$0xf]
        %v3638 = vld [vmem:[%s3630 + $0x1c] sm:$0xf]
        %v3639 = vrot.slane %v3416, 1
        %v3648 = vunpack.c.l.b16 %v3631
        %v3649 = vunpack.c.l.b16 %v3632
        %v3650 = vunpack.c.l.b16 %v3633
        %v3651 = vunpack.c.l.b16 %v3634
        %v3652 = vunpack.c.l.b16 %v3635
        %v3653 = vunpack.c.l.b16 %v3636
        %v3654 = vunpack.c.l.b16 %v3637
        %v3655 = vunpack.c.l.b16 %v3638
        %v3656 = vpack.c.b16 %v3649, %v3648
        %v3657 = vpack.c.b16 %v3651, %v3650
        %v3658 = vpack.c.b16 %v3653, %v3652
        %v3659 = vpack.c.b16 %v3655, %v3654
        %v3665 = vsel %vm664, %v3639, 0
        %3667 = vmatprep.subr.bf16.mxu0 0
        %3668 = vmatpush1.bf16.msra.mxu0 0
        %3669 = vmatprep.subr.bf16.mxu0 0
        %3670 = vmatpush1.bf16.msra.mxu0 0
        %3671 = vmatprep.subr.bf16.mxu0 0
        %3672 = vmatpush1.bf16.msra.mxu0 0
        %3673 = vmatprep.subr.bf16.mxu0 0
        %3674 = vmatpush1.bf16.msra.mxu0 0
        %3675 = vmatprep.subr.bf16.mxu0 0
        %3676 = vmatpush1.bf16.msra.mxu0 %v3659
        %3677 = vmatprep.subr.bf16.mxu0 0
        %3678 = vmatpush1.bf16.msra.mxu0 %v3658
        %3679 = vmatprep.subr.bf16.mxu0 0
        %3680 = vmatpush1.bf16.msra.mxu0 %v3657
        %3681 = vmatprep.subr.bf16.mxu0 0
        %3682 = vmatpush1.bf16.msra.mxu0 %v3656
        %3683 = vmatprep.subr.bf16.mxu0 0
        %3684 = vmatpush2.bf16.msra.mxu0 0
        %3685 = vmatprep.subr.bf16.mxu0 0
        %3686 = vmatpush2.bf16.msra.mxu0 0
        %3687 = vmatprep.subr.bf16.mxu0 0
        %3688 = vmatpush2.bf16.msra.mxu0 0
        %3689 = vmatprep.subr.bf16.mxu0 0
        %3690 = vmatpush2.bf16.msra.mxu0 0
        %3691 = vmatprep.subr.bf16.mxu0 0
        %3692 = vmatpush2.bf16.msra.mxu0 0
        %3693 = vmatprep.subr.bf16.mxu0 0
        %3694 = vmatpush2.bf16.msra.mxu0 0
        %3695 = vmatprep.subr.bf16.mxu0 0
        %3696 = vmatpush2.bf16.msra.mxu0 0
        %3697 = vmatprep.subr.bf16.mxu0 0
        %3698 = vmatpush2.bf16.msra.mxu0 0
        %3699 = vmatprep.mubr.bf16.mxu0 0
        %3700 = vmatmul.mubr.bf16.gmra.mxu0 %v3665
        %v3701 = vpop.f32.mrf.mxu0
        %v3702 = vadd.f32 0.0, %v3701
        %v3703 = vpop.f32.mrf.mxu0
        %v3704 = vpop.f32.mrf.mxu0
        %v3705 = vpop.f32.mrf.mxu0
        %3706 = vdwg.mxu0
        %v3707 = vadd.f32 %v3629, %v3702
        %v3708 = vpack.c.bf16 %v3394, %v3394
        %s3709 = scalar_lea.vmem %s7, 128
        %v3710 = vld [vmem:[%s3709] sm:$0xf]
        %v3711 = vld [vmem:[%s3709 + $0x4] sm:$0xf]
        %v3712 = vld [vmem:[%s3709 + $0x8] sm:$0xf]
        %v3713 = vld [vmem:[%s3709 + $0xc] sm:$0xf]
        %v3714 = vld [vmem:[%s3709 + $0x10] sm:$0xf]
        %v3715 = vld [vmem:[%s3709 + $0x14] sm:$0xf]
        %v3716 = vld [vmem:[%s3709 + $0x18] sm:$0xf]
        %v3717 = vld [vmem:[%s3709 + $0x1c] sm:$0xf]
        %v3726 = vunpack.c.l.b16 %v3710
        %v3727 = vunpack.c.l.b16 %v3711
        %v3728 = vunpack.c.l.b16 %v3712
        %v3729 = vunpack.c.l.b16 %v3713
        %v3730 = vunpack.c.l.b16 %v3714
        %v3731 = vunpack.c.l.b16 %v3715
        %v3732 = vunpack.c.l.b16 %v3716
        %v3733 = vunpack.c.l.b16 %v3717
        %v3734 = vpack.c.b16 %v3727, %v3726
        %v3735 = vpack.c.b16 %v3729, %v3728
        %v3736 = vpack.c.b16 %v3731, %v3730
        %v3737 = vpack.c.b16 %v3733, %v3732
        %v3743 = vsel %vm664, %v3708, 0
        %3745 = vmatprep.subr.bf16.mxu0 0
        %3746 = vmatpush1.bf16.msra.mxu0 0
        %3747 = vmatprep.subr.bf16.mxu0 0
        %3748 = vmatpush1.bf16.msra.mxu0 0
        %3749 = vmatprep.subr.bf16.mxu0 0
        %3750 = vmatpush1.bf16.msra.mxu0 0
        %3751 = vmatprep.subr.bf16.mxu0 0
        %3752 = vmatpush1.bf16.msra.mxu0 0
        %3753 = vmatprep.subr.bf16.mxu0 0
        %3754 = vmatpush1.bf16.msra.mxu0 %v3737
        %3755 = vmatprep.subr.bf16.mxu0 0
        %3756 = vmatpush1.bf16.msra.mxu0 %v3736
        %3757 = vmatprep.subr.bf16.mxu0 0
        %3758 = vmatpush1.bf16.msra.mxu0 %v3735
        %3759 = vmatprep.subr.bf16.mxu0 0
        %3760 = vmatpush1.bf16.msra.mxu0 %v3734
        %3761 = vmatprep.subr.bf16.mxu0 0
        %3762 = vmatpush2.bf16.msra.mxu0 0
        %3763 = vmatprep.subr.bf16.mxu0 0
        %3764 = vmatpush2.bf16.msra.mxu0 0
        %3765 = vmatprep.subr.bf16.mxu0 0
        %3766 = vmatpush2.bf16.msra.mxu0 0
        %3767 = vmatprep.subr.bf16.mxu0 0
        %3768 = vmatpush2.bf16.msra.mxu0 0
        %3769 = vmatprep.subr.bf16.mxu0 0
        %3770 = vmatpush2.bf16.msra.mxu0 0
        %3771 = vmatprep.subr.bf16.mxu0 0
        %3772 = vmatpush2.bf16.msra.mxu0 0
        %3773 = vmatprep.subr.bf16.mxu0 0
        %3774 = vmatpush2.bf16.msra.mxu0 0
        %3775 = vmatprep.subr.bf16.mxu0 0
        %3776 = vmatpush2.bf16.msra.mxu0 0
        %3777 = vmatprep.mubr.bf16.mxu0 0
        %3778 = vmatmul.mubr.bf16.gmra.mxu0 %v3743
        %v3779 = vpop.f32.mrf.mxu0
        %v3780 = vadd.f32 0.0, %v3779
        %v3781 = vpop.f32.mrf.mxu0
        %v3782 = vpop.f32.mrf.mxu0
        %v3783 = vpop.f32.mrf.mxu0
        %3784 = vdwg.mxu0
        %v3785 = vadd.f32 %v3707, %v3780
        %s3786 = scalar_lea.vmem %s7, 160
        %v3787 = vld [vmem:[%s3786] sm:$0xf]
        %v3788 = vld [vmem:[%s3786 + $0x4] sm:$0xf]
        %v3789 = vld [vmem:[%s3786 + $0x8] sm:$0xf]
        %v3790 = vld [vmem:[%s3786 + $0xc] sm:$0xf]
        %v3791 = vld [vmem:[%s3786 + $0x10] sm:$0xf]
        %v3792 = vld [vmem:[%s3786 + $0x14] sm:$0xf]
        %v3793 = vld [vmem:[%s3786 + $0x18] sm:$0xf]
        %v3794 = vld [vmem:[%s3786 + $0x1c] sm:$0xf]
        %v3795 = vshrl.u32 %v3708, 16
        %v3805 = vunpack.c.l.b16 %v3787
        %v3806 = vunpack.c.l.b16 %v3788
        %v3807 = vunpack.c.l.b16 %v3789
        %v3808 = vunpack.c.l.b16 %v3790
        %v3809 = vunpack.c.l.b16 %v3791
        %v3810 = vunpack.c.l.b16 %v3792
        %v3811 = vunpack.c.l.b16 %v3793
        %v3812 = vunpack.c.l.b16 %v3794
        %v3813 = vpack.c.b16 %v3806, %v3805
        %v3814 = vpack.c.b16 %v3808, %v3807
        %v3815 = vpack.c.b16 %v3810, %v3809
        %v3816 = vpack.c.b16 %v3812, %v3811
        %v3822 = vsel %vm664, %v3795, 0
        %3824 = vmatprep.subr.bf16.mxu0 0
        %3825 = vmatpush1.bf16.msra.mxu0 0
        %3826 = vmatprep.subr.bf16.mxu0 0
        %3827 = vmatpush1.bf16.msra.mxu0 0
        %3828 = vmatprep.subr.bf16.mxu0 0
        %3829 = vmatpush1.bf16.msra.mxu0 0
        %3830 = vmatprep.subr.bf16.mxu0 0
        %3831 = vmatpush1.bf16.msra.mxu0 0
        %3832 = vmatprep.subr.bf16.mxu0 0
        %3833 = vmatpush1.bf16.msra.mxu0 %v3816
        %3834 = vmatprep.subr.bf16.mxu0 0
        %3835 = vmatpush1.bf16.msra.mxu0 %v3815
        %3836 = vmatprep.subr.bf16.mxu0 0
        %3837 = vmatpush1.bf16.msra.mxu0 %v3814
        %3838 = vmatprep.subr.bf16.mxu0 0
        %3839 = vmatpush1.bf16.msra.mxu0 %v3813
        %3840 = vmatprep.subr.bf16.mxu0 0
        %3841 = vmatpush2.bf16.msra.mxu0 0
        %3842 = vmatprep.subr.bf16.mxu0 0
        %3843 = vmatpush2.bf16.msra.mxu0 0
        %3844 = vmatprep.subr.bf16.mxu0 0
        %3845 = vmatpush2.bf16.msra.mxu0 0
        %3846 = vmatprep.subr.bf16.mxu0 0
        %3847 = vmatpush2.bf16.msra.mxu0 0
        %3848 = vmatprep.subr.bf16.mxu0 0
        %3849 = vmatpush2.bf16.msra.mxu0 0
        %3850 = vmatprep.subr.bf16.mxu0 0
        %3851 = vmatpush2.bf16.msra.mxu0 0
        %3852 = vmatprep.subr.bf16.mxu0 0
        %3853 = vmatpush2.bf16.msra.mxu0 0
        %3854 = vmatprep.subr.bf16.mxu0 0
        %3855 = vmatpush2.bf16.msra.mxu0 0
        %3856 = vmatprep.mubr.bf16.mxu0 0
        %3857 = vmatmul.mubr.bf16.gmra.mxu0 %v3822
        %v3858 = vpop.f32.mrf.mxu0
        %v3859 = vadd.f32 0.0, %v3858
        %v3860 = vpop.f32.mrf.mxu0
        %v3861 = vpop.f32.mrf.mxu0
        %v3862 = vpop.f32.mrf.mxu0
        %3863 = vdwg.mxu0
        %v3864 = vadd.f32 %v3785, %v3859
        %s3865 = scalar_lea.vmem %s7, 192
        %v3866 = vld [vmem:[%s3865] sm:$0xf]
        %v3867 = vld [vmem:[%s3865 + $0x4] sm:$0xf]
        %v3868 = vld [vmem:[%s3865 + $0x8] sm:$0xf]
        %v3869 = vld [vmem:[%s3865 + $0xc] sm:$0xf]
        %v3870 = vld [vmem:[%s3865 + $0x10] sm:$0xf]
        %v3871 = vld [vmem:[%s3865 + $0x14] sm:$0xf]
        %v3872 = vld [vmem:[%s3865 + $0x18] sm:$0xf]
        %v3873 = vld [vmem:[%s3865 + $0x1c] sm:$0xf]
        %v3875 = vrot.slane %v3708, 1
        %v3884 = vunpack.c.l.b16 %v3866
        %v3885 = vunpack.c.l.b16 %v3867
        %v3886 = vunpack.c.l.b16 %v3868
        %v3887 = vunpack.c.l.b16 %v3869
        %v3888 = vunpack.c.l.b16 %v3870
        %v3889 = vunpack.c.l.b16 %v3871
        %v3890 = vunpack.c.l.b16 %v3872
        %v3891 = vunpack.c.l.b16 %v3873
        %v3892 = vpack.c.b16 %v3885, %v3884
        %v3893 = vpack.c.b16 %v3887, %v3886
        %v3894 = vpack.c.b16 %v3889, %v3888
        %v3895 = vpack.c.b16 %v3891, %v3890
        %v3901 = vsel %vm664, %v3875, 0
        %3903 = vmatprep.subr.bf16.mxu0 0
        %3904 = vmatpush1.bf16.msra.mxu0 0
        %3905 = vmatprep.subr.bf16.mxu0 0
        %3906 = vmatpush1.bf16.msra.mxu0 0
        %3907 = vmatprep.subr.bf16.mxu0 0
        %3908 = vmatpush1.bf16.msra.mxu0 0
        %3909 = vmatprep.subr.bf16.mxu0 0
        %3910 = vmatpush1.bf16.msra.mxu0 0
        %3911 = vmatprep.subr.bf16.mxu0 0
        %3912 = vmatpush1.bf16.msra.mxu0 %v3895
        %3913 = vmatprep.subr.bf16.mxu0 0
        %3914 = vmatpush1.bf16.msra.mxu0 %v3894
        %3915 = vmatprep.subr.bf16.mxu0 0
        %3916 = vmatpush1.bf16.msra.mxu0 %v3893
        %3917 = vmatprep.subr.bf16.mxu0 0
        %3918 = vmatpush1.bf16.msra.mxu0 %v3892
        %3919 = vmatprep.subr.bf16.mxu0 0
        %3920 = vmatpush2.bf16.msra.mxu0 0
        %3921 = vmatprep.subr.bf16.mxu0 0
        %3922 = vmatpush2.bf16.msra.mxu0 0
        %3923 = vmatprep.subr.bf16.mxu0 0
        %3924 = vmatpush2.bf16.msra.mxu0 0
        %3925 = vmatprep.subr.bf16.mxu0 0
        %3926 = vmatpush2.bf16.msra.mxu0 0
        %3927 = vmatprep.subr.bf16.mxu0 0
        %3928 = vmatpush2.bf16.msra.mxu0 0
        %3929 = vmatprep.subr.bf16.mxu0 0
        %3930 = vmatpush2.bf16.msra.mxu0 0
        %3931 = vmatprep.subr.bf16.mxu0 0
        %3932 = vmatpush2.bf16.msra.mxu0 0
        %3933 = vmatprep.subr.bf16.mxu0 0
        %3934 = vmatpush2.bf16.msra.mxu0 0
        %3935 = vmatprep.mubr.bf16.mxu0 0
        %3936 = vmatmul.mubr.bf16.gmra.mxu0 %v3901
        %v3937 = vpop.f32.mrf.mxu0
        %v3938 = vadd.f32 0.0, %v3937
        %v3939 = vpop.f32.mrf.mxu0
        %v3940 = vpop.f32.mrf.mxu0
        %v3941 = vpop.f32.mrf.mxu0
        %3942 = vdwg.mxu0
        %v3943 = vadd.f32 %v3864, %v3938
        %s3944 = scalar_lea.vmem %s7, 224
        %v3945 = vld [vmem:[%s3944] sm:$0xf]
        %v3946 = vld [vmem:[%s3944 + $0x4] sm:$0xf]
        %v3947 = vld [vmem:[%s3944 + $0x8] sm:$0xf]
        %v3948 = vld [vmem:[%s3944 + $0xc] sm:$0xf]
        %v3949 = vld [vmem:[%s3944 + $0x10] sm:$0xf]
        %v3950 = vld [vmem:[%s3944 + $0x14] sm:$0xf]
        %v3951 = vld [vmem:[%s3944 + $0x18] sm:$0xf]
        %v3952 = vld [vmem:[%s3944 + $0x1c] sm:$0xf]
        %v3953 = vrot.slane %v3795, 1
        %v3962 = vunpack.c.l.b16 %v3945
        %v3963 = vunpack.c.l.b16 %v3946
        %v3964 = vunpack.c.l.b16 %v3947
        %v3965 = vunpack.c.l.b16 %v3948
        %v3966 = vunpack.c.l.b16 %v3949
        %v3967 = vunpack.c.l.b16 %v3950
        %v3968 = vunpack.c.l.b16 %v3951
        %v3969 = vunpack.c.l.b16 %v3952
        %v3970 = vpack.c.b16 %v3963, %v3962
        %v3971 = vpack.c.b16 %v3965, %v3964
        %v3972 = vpack.c.b16 %v3967, %v3966
        %v3973 = vpack.c.b16 %v3969, %v3968
        %v3979 = vsel %vm664, %v3953, 0
        %3981 = vmatprep.subr.bf16.mxu0 0
        %3982 = vmatpush1.bf16.msra.mxu0 0
        %3983 = vmatprep.subr.bf16.mxu0 0
        %3984 = vmatpush1.bf16.msra.mxu0 0
        %3985 = vmatprep.subr.bf16.mxu0 0
        %3986 = vmatpush1.bf16.msra.mxu0 0
        %3987 = vmatprep.subr.bf16.mxu0 0
        %3988 = vmatpush1.bf16.msra.mxu0 0
        %3989 = vmatprep.subr.bf16.mxu0 0
        %3990 = vmatpush1.bf16.msra.mxu0 %v3973
        %3991 = vmatprep.subr.bf16.mxu0 0
        %3992 = vmatpush1.bf16.msra.mxu0 %v3972
        %3993 = vmatprep.subr.bf16.mxu0 0
        %3994 = vmatpush1.bf16.msra.mxu0 %v3971
        %3995 = vmatprep.subr.bf16.mxu0 0
        %3996 = vmatpush1.bf16.msra.mxu0 %v3970
        %3997 = vmatprep.subr.bf16.mxu0 0
        %3998 = vmatpush2.bf16.msra.mxu0 0
        %3999 = vmatprep.subr.bf16.mxu0 0
        %4000 = vmatpush2.bf16.msra.mxu0 0
        %4001 = vmatprep.subr.bf16.mxu0 0
        %4002 = vmatpush2.bf16.msra.mxu0 0
        %4003 = vmatprep.subr.bf16.mxu0 0
        %4004 = vmatpush2.bf16.msra.mxu0 0
        %4005 = vmatprep.subr.bf16.mxu0 0
        %4006 = vmatpush2.bf16.msra.mxu0 0
        %4007 = vmatprep.subr.bf16.mxu0 0
        %4008 = vmatpush2.bf16.msra.mxu0 0
        %4009 = vmatprep.subr.bf16.mxu0 0
        %4010 = vmatpush2.bf16.msra.mxu0 0
        %4011 = vmatprep.subr.bf16.mxu0 0
        %4012 = vmatpush2.bf16.msra.mxu0 0
        %4013 = vmatprep.mubr.bf16.mxu0 0
        %4014 = vmatmul.mubr.bf16.gmra.mxu0 %v3979
        %v4015 = vpop.f32.mrf.mxu0
        %v4016 = vadd.f32 0.0, %v4015
        %v4017 = vpop.f32.mrf.mxu0
        %v4018 = vpop.f32.mrf.mxu0
        %v4019 = vpop.f32.mrf.mxu0
        %4020 = vdwg.mxu0
        %v4021 = vadd.f32 %v3943, %v4016
        %v4022 = vpack.c.bf16 %v3395, %v3395
        %s4023 = scalar_lea.vmem %s7, 256
        %v4024 = vld [vmem:[%s4023] sm:$0xf]
        %v4025 = vld [vmem:[%s4023 + $0x4] sm:$0xf]
        %v4026 = vld [vmem:[%s4023 + $0x8] sm:$0xf]
        %v4027 = vld [vmem:[%s4023 + $0xc] sm:$0xf]
        %v4028 = vld [vmem:[%s4023 + $0x10] sm:$0xf]
        %v4029 = vld [vmem:[%s4023 + $0x14] sm:$0xf]
        %v4030 = vld [vmem:[%s4023 + $0x18] sm:$0xf]
        %v4031 = vld [vmem:[%s4023 + $0x1c] sm:$0xf]
        %v4040 = vunpack.c.l.b16 %v4024
        %v4041 = vunpack.c.l.b16 %v4025
        %v4042 = vunpack.c.l.b16 %v4026
        %v4043 = vunpack.c.l.b16 %v4027
        %v4044 = vunpack.c.l.b16 %v4028
        %v4045 = vunpack.c.l.b16 %v4029
        %v4046 = vunpack.c.l.b16 %v4030
        %v4047 = vunpack.c.l.b16 %v4031
        %v4048 = vpack.c.b16 %v4041, %v4040
        %v4049 = vpack.c.b16 %v4043, %v4042
        %v4050 = vpack.c.b16 %v4045, %v4044
        %v4051 = vpack.c.b16 %v4047, %v4046
        %v4057 = vsel %vm664, %v4022, 0
        %4059 = vmatprep.subr.bf16.mxu0 0
        %4060 = vmatpush1.bf16.msra.mxu0 0
        %4061 = vmatprep.subr.bf16.mxu0 0
        %4062 = vmatpush1.bf16.msra.mxu0 0
        %4063 = vmatprep.subr.bf16.mxu0 0
        %4064 = vmatpush1.bf16.msra.mxu0 0
        %4065 = vmatprep.subr.bf16.mxu0 0
        %4066 = vmatpush1.bf16.msra.mxu0 0
        %4067 = vmatprep.subr.bf16.mxu0 0
        %4068 = vmatpush1.bf16.msra.mxu0 %v4051
        %4069 = vmatprep.subr.bf16.mxu0 0
        %4070 = vmatpush1.bf16.msra.mxu0 %v4050
        %4071 = vmatprep.subr.bf16.mxu0 0
        %4072 = vmatpush1.bf16.msra.mxu0 %v4049
        %4073 = vmatprep.subr.bf16.mxu0 0
        %4074 = vmatpush1.bf16.msra.mxu0 %v4048
        %4075 = vmatprep.subr.bf16.mxu0 0
        %4076 = vmatpush2.bf16.msra.mxu0 0
        %4077 = vmatprep.subr.bf16.mxu0 0
        %4078 = vmatpush2.bf16.msra.mxu0 0
        %4079 = vmatprep.subr.bf16.mxu0 0
        %4080 = vmatpush2.bf16.msra.mxu0 0
        %4081 = vmatprep.subr.bf16.mxu0 0
        %4082 = vmatpush2.bf16.msra.mxu0 0
        %4083 = vmatprep.subr.bf16.mxu0 0
        %4084 = vmatpush2.bf16.msra.mxu0 0
        %4085 = vmatprep.subr.bf16.mxu0 0
        %4086 = vmatpush2.bf16.msra.mxu0 0
        %4087 = vmatprep.subr.bf16.mxu0 0
        %4088 = vmatpush2.bf16.msra.mxu0 0
        %4089 = vmatprep.subr.bf16.mxu0 0
        %4090 = vmatpush2.bf16.msra.mxu0 0
        %4091 = vmatprep.mubr.bf16.mxu0 0
        %4092 = vmatmul.mubr.bf16.gmra.mxu0 %v4057
        %v4093 = vpop.f32.mrf.mxu0
        %v4094 = vadd.f32 0.0, %v4093
        %v4095 = vpop.f32.mrf.mxu0
        %v4096 = vpop.f32.mrf.mxu0
        %v4097 = vpop.f32.mrf.mxu0
        %4098 = vdwg.mxu0
        %v4099 = vadd.f32 %v4021, %v4094
        %s4100 = scalar_lea.vmem %s7, 288
        %v4101 = vld [vmem:[%s4100] sm:$0xf]
        %v4102 = vld [vmem:[%s4100 + $0x4] sm:$0xf]
        %v4103 = vld [vmem:[%s4100 + $0x8] sm:$0xf]
        %v4104 = vld [vmem:[%s4100 + $0xc] sm:$0xf]
        %v4105 = vld [vmem:[%s4100 + $0x10] sm:$0xf]
        %v4106 = vld [vmem:[%s4100 + $0x14] sm:$0xf]
        %v4107 = vld [vmem:[%s4100 + $0x18] sm:$0xf]
        %v4108 = vld [vmem:[%s4100 + $0x1c] sm:$0xf]
        %v4109 = vshrl.u32 %v4022, 16
        %v4119 = vunpack.c.l.b16 %v4101
        %v4120 = vunpack.c.l.b16 %v4102
        %v4121 = vunpack.c.l.b16 %v4103
        %v4122 = vunpack.c.l.b16 %v4104
        %v4123 = vunpack.c.l.b16 %v4105
        %v4124 = vunpack.c.l.b16 %v4106
        %v4125 = vunpack.c.l.b16 %v4107
        %v4126 = vunpack.c.l.b16 %v4108
        %v4127 = vpack.c.b16 %v4120, %v4119
        %v4128 = vpack.c.b16 %v4122, %v4121
        %v4129 = vpack.c.b16 %v4124, %v4123
        %v4130 = vpack.c.b16 %v4126, %v4125
        %v4136 = vsel %vm664, %v4109, 0
        %4138 = vmatprep.subr.bf16.mxu0 0
        %4139 = vmatpush1.bf16.msra.mxu0 0
        %4140 = vmatprep.subr.bf16.mxu0 0
        %4141 = vmatpush1.bf16.msra.mxu0 0
        %4142 = vmatprep.subr.bf16.mxu0 0
        %4143 = vmatpush1.bf16.msra.mxu0 0
        %4144 = vmatprep.subr.bf16.mxu0 0
        %4145 = vmatpush1.bf16.msra.mxu0 0
        %4146 = vmatprep.subr.bf16.mxu0 0
        %4147 = vmatpush1.bf16.msra.mxu0 %v4130
        %4148 = vmatprep.subr.bf16.mxu0 0
        %4149 = vmatpush1.bf16.msra.mxu0 %v4129
        %4150 = vmatprep.subr.bf16.mxu0 0
        %4151 = vmatpush1.bf16.msra.mxu0 %v4128
        %4152 = vmatprep.subr.bf16.mxu0 0
        %4153 = vmatpush1.bf16.msra.mxu0 %v4127
        %4154 = vmatprep.subr.bf16.mxu0 0
        %4155 = vmatpush2.bf16.msra.mxu0 0
        %4156 = vmatprep.subr.bf16.mxu0 0
        %4157 = vmatpush2.bf16.msra.mxu0 0
        %4158 = vmatprep.subr.bf16.mxu0 0
        %4159 = vmatpush2.bf16.msra.mxu0 0
        %4160 = vmatprep.subr.bf16.mxu0 0
        %4161 = vmatpush2.bf16.msra.mxu0 0
        %4162 = vmatprep.subr.bf16.mxu0 0
        %4163 = vmatpush2.bf16.msra.mxu0 0
        %4164 = vmatprep.subr.bf16.mxu0 0
        %4165 = vmatpush2.bf16.msra.mxu0 0
        %4166 = vmatprep.subr.bf16.mxu0 0
        %4167 = vmatpush2.bf16.msra.mxu0 0
        %4168 = vmatprep.subr.bf16.mxu0 0
        %4169 = vmatpush2.bf16.msra.mxu0 0
        %4170 = vmatprep.mubr.bf16.mxu0 0
        %4171 = vmatmul.mubr.bf16.gmra.mxu0 %v4136
        %v4172 = vpop.f32.mrf.mxu0
        %v4173 = vadd.f32 0.0, %v4172
        %v4174 = vpop.f32.mrf.mxu0
        %v4175 = vpop.f32.mrf.mxu0
        %v4176 = vpop.f32.mrf.mxu0
        %4177 = vdwg.mxu0
        %v4178 = vadd.f32 %v4099, %v4173
        %s4179 = scalar_lea.vmem %s7, 320
        %v4180 = vld [vmem:[%s4179] sm:$0xf]
        %v4181 = vld [vmem:[%s4179 + $0x4] sm:$0xf]
        %v4182 = vld [vmem:[%s4179 + $0x8] sm:$0xf]
        %v4183 = vld [vmem:[%s4179 + $0xc] sm:$0xf]
        %v4184 = vld [vmem:[%s4179 + $0x10] sm:$0xf]
        %v4185 = vld [vmem:[%s4179 + $0x14] sm:$0xf]
        %v4186 = vld [vmem:[%s4179 + $0x18] sm:$0xf]
        %v4187 = vld [vmem:[%s4179 + $0x1c] sm:$0xf]
        %v4189 = vrot.slane %v4022, 1
        %v4198 = vunpack.c.l.b16 %v4180
        %v4199 = vunpack.c.l.b16 %v4181
        %v4200 = vunpack.c.l.b16 %v4182
        %v4201 = vunpack.c.l.b16 %v4183
        %v4202 = vunpack.c.l.b16 %v4184
        %v4203 = vunpack.c.l.b16 %v4185
        %v4204 = vunpack.c.l.b16 %v4186
        %v4205 = vunpack.c.l.b16 %v4187
        %v4206 = vpack.c.b16 %v4199, %v4198
        %v4207 = vpack.c.b16 %v4201, %v4200
        %v4208 = vpack.c.b16 %v4203, %v4202
        %v4209 = vpack.c.b16 %v4205, %v4204
        %v4215 = vsel %vm664, %v4189, 0
        %4217 = vmatprep.subr.bf16.mxu0 0
        %4218 = vmatpush1.bf16.msra.mxu0 0
        %4219 = vmatprep.subr.bf16.mxu0 0
        %4220 = vmatpush1.bf16.msra.mxu0 0
        %4221 = vmatprep.subr.bf16.mxu0 0
        %4222 = vmatpush1.bf16.msra.mxu0 0
        %4223 = vmatprep.subr.bf16.mxu0 0
        %4224 = vmatpush1.bf16.msra.mxu0 0
        %4225 = vmatprep.subr.bf16.mxu0 0
        %4226 = vmatpush1.bf16.msra.mxu0 %v4209
        %4227 = vmatprep.subr.bf16.mxu0 0
        %4228 = vmatpush1.bf16.msra.mxu0 %v4208
        %4229 = vmatprep.subr.bf16.mxu0 0
        %4230 = vmatpush1.bf16.msra.mxu0 %v4207
        %4231 = vmatprep.subr.bf16.mxu0 0
        %4232 = vmatpush1.bf16.msra.mxu0 %v4206
        %4233 = vmatprep.subr.bf16.mxu0 0
        %4234 = vmatpush2.bf16.msra.mxu0 0
        %4235 = vmatprep.subr.bf16.mxu0 0
        %4236 = vmatpush2.bf16.msra.mxu0 0
        %4237 = vmatprep.subr.bf16.mxu0 0
        %4238 = vmatpush2.bf16.msra.mxu0 0
        %4239 = vmatprep.subr.bf16.mxu0 0
        %4240 = vmatpush2.bf16.msra.mxu0 0
        %4241 = vmatprep.subr.bf16.mxu0 0
        %4242 = vmatpush2.bf16.msra.mxu0 0
        %4243 = vmatprep.subr.bf16.mxu0 0
        %4244 = vmatpush2.bf16.msra.mxu0 0
        %4245 = vmatprep.subr.bf16.mxu0 0
        %4246 = vmatpush2.bf16.msra.mxu0 0
        %4247 = vmatprep.subr.bf16.mxu0 0
        %4248 = vmatpush2.bf16.msra.mxu0 0
        %4249 = vmatprep.mubr.bf16.mxu0 0
        %4250 = vmatmul.mubr.bf16.gmra.mxu0 %v4215
        %v4251 = vpop.f32.mrf.mxu0
        %v4252 = vadd.f32 0.0, %v4251
        %v4253 = vpop.f32.mrf.mxu0
        %v4254 = vpop.f32.mrf.mxu0
        %v4255 = vpop.f32.mrf.mxu0
        %4256 = vdwg.mxu0
        %v4257 = vadd.f32 %v4178, %v4252
        %s4258 = scalar_lea.vmem %s7, 352
        %v4259 = vld [vmem:[%s4258] sm:$0xf]
        %v4260 = vld [vmem:[%s4258 + $0x4] sm:$0xf]
        %v4261 = vld [vmem:[%s4258 + $0x8] sm:$0xf]
        %v4262 = vld [vmem:[%s4258 + $0xc] sm:$0xf]
        %v4263 = vld [vmem:[%s4258 + $0x10] sm:$0xf]
        %v4264 = vld [vmem:[%s4258 + $0x14] sm:$0xf]
        %v4265 = vld [vmem:[%s4258 + $0x18] sm:$0xf]
        %v4266 = vld [vmem:[%s4258 + $0x1c] sm:$0xf]
        %v4267 = vrot.slane %v4109, 1
        %v4276 = vunpack.c.l.b16 %v4259
        %v4277 = vunpack.c.l.b16 %v4260
        %v4278 = vunpack.c.l.b16 %v4261
        %v4279 = vunpack.c.l.b16 %v4262
        %v4280 = vunpack.c.l.b16 %v4263
        %v4281 = vunpack.c.l.b16 %v4264
        %v4282 = vunpack.c.l.b16 %v4265
        %v4283 = vunpack.c.l.b16 %v4266
        %v4284 = vpack.c.b16 %v4277, %v4276
        %v4285 = vpack.c.b16 %v4279, %v4278
        %v4286 = vpack.c.b16 %v4281, %v4280
        %v4287 = vpack.c.b16 %v4283, %v4282
        %v4293 = vsel %vm664, %v4267, 0
        %4295 = vmatprep.subr.bf16.mxu0 0
        %4296 = vmatpush1.bf16.msra.mxu0 0
        %4297 = vmatprep.subr.bf16.mxu0 0
        %4298 = vmatpush1.bf16.msra.mxu0 0
        %4299 = vmatprep.subr.bf16.mxu0 0
        %4300 = vmatpush1.bf16.msra.mxu0 0
        %4301 = vmatprep.subr.bf16.mxu0 0
        %4302 = vmatpush1.bf16.msra.mxu0 0
        %4303 = vmatprep.subr.bf16.mxu0 0
        %4304 = vmatpush1.bf16.msra.mxu0 %v4287
        %4305 = vmatprep.subr.bf16.mxu0 0
        %4306 = vmatpush1.bf16.msra.mxu0 %v4286
        %4307 = vmatprep.subr.bf16.mxu0 0
        %4308 = vmatpush1.bf16.msra.mxu0 %v4285
        %4309 = vmatprep.subr.bf16.mxu0 0
        %4310 = vmatpush1.bf16.msra.mxu0 %v4284
        %4311 = vmatprep.subr.bf16.mxu0 0
        %4312 = vmatpush2.bf16.msra.mxu0 0
        %4313 = vmatprep.subr.bf16.mxu0 0
        %4314 = vmatpush2.bf16.msra.mxu0 0
        %4315 = vmatprep.subr.bf16.mxu0 0
        %4316 = vmatpush2.bf16.msra.mxu0 0
        %4317 = vmatprep.subr.bf16.mxu0 0
        %4318 = vmatpush2.bf16.msra.mxu0 0
        %4319 = vmatprep.subr.bf16.mxu0 0
        %4320 = vmatpush2.bf16.msra.mxu0 0
        %4321 = vmatprep.subr.bf16.mxu0 0
        %4322 = vmatpush2.bf16.msra.mxu0 0
        %4323 = vmatprep.subr.bf16.mxu0 0
        %4324 = vmatpush2.bf16.msra.mxu0 0
        %4325 = vmatprep.subr.bf16.mxu0 0
        %4326 = vmatpush2.bf16.msra.mxu0 0
        %4327 = vmatprep.mubr.bf16.mxu0 0
        %4328 = vmatmul.mubr.bf16.gmra.mxu0 %v4293
        %v4329 = vpop.f32.mrf.mxu0
        %v4330 = vadd.f32 0.0, %v4329
        %v4331 = vpop.f32.mrf.mxu0
        %v4332 = vpop.f32.mrf.mxu0
        %v4333 = vpop.f32.mrf.mxu0
        %4334 = vdwg.mxu0
        %v4335 = vadd.f32 %v4257, %v4330
        %v4336 = vpack.c.bf16 %v3396, %v3396
        %s4337 = scalar_lea.vmem %s7, 384
        %v4338 = vld [vmem:[%s4337] sm:$0xf]
        %v4339 = vld [vmem:[%s4337 + $0x4] sm:$0xf]
        %v4340 = vld [vmem:[%s4337 + $0x8] sm:$0xf]
        %v4341 = vld [vmem:[%s4337 + $0xc] sm:$0xf]
        %v4342 = vld [vmem:[%s4337 + $0x10] sm:$0xf]
        %v4343 = vld [vmem:[%s4337 + $0x14] sm:$0xf]
        %v4344 = vld [vmem:[%s4337 + $0x18] sm:$0xf]
        %v4345 = vld [vmem:[%s4337 + $0x1c] sm:$0xf]
        %v4354 = vunpack.c.l.b16 %v4338
        %v4355 = vunpack.c.l.b16 %v4339
        %v4356 = vunpack.c.l.b16 %v4340
        %v4357 = vunpack.c.l.b16 %v4341
        %v4358 = vunpack.c.l.b16 %v4342
        %v4359 = vunpack.c.l.b16 %v4343
        %v4360 = vunpack.c.l.b16 %v4344
        %v4361 = vunpack.c.l.b16 %v4345
        %v4362 = vpack.c.b16 %v4355, %v4354
        %v4363 = vpack.c.b16 %v4357, %v4356
        %v4364 = vpack.c.b16 %v4359, %v4358
        %v4365 = vpack.c.b16 %v4361, %v4360
        %v4371 = vsel %vm664, %v4336, 0
        %4373 = vmatprep.subr.bf16.mxu0 0
        %4374 = vmatpush1.bf16.msra.mxu0 0
        %4375 = vmatprep.subr.bf16.mxu0 0
        %4376 = vmatpush1.bf16.msra.mxu0 0
        %4377 = vmatprep.subr.bf16.mxu0 0
        %4378 = vmatpush1.bf16.msra.mxu0 0
        %4379 = vmatprep.subr.bf16.mxu0 0
        %4380 = vmatpush1.bf16.msra.mxu0 0
        %4381 = vmatprep.subr.bf16.mxu0 0
        %4382 = vmatpush1.bf16.msra.mxu0 %v4365
        %4383 = vmatprep.subr.bf16.mxu0 0
        %4384 = vmatpush1.bf16.msra.mxu0 %v4364
        %4385 = vmatprep.subr.bf16.mxu0 0
        %4386 = vmatpush1.bf16.msra.mxu0 %v4363
        %4387 = vmatprep.subr.bf16.mxu0 0
        %4388 = vmatpush1.bf16.msra.mxu0 %v4362
        %4389 = vmatprep.subr.bf16.mxu0 0
        %4390 = vmatpush2.bf16.msra.mxu0 0
        %4391 = vmatprep.subr.bf16.mxu0 0
        %4392 = vmatpush2.bf16.msra.mxu0 0
        %4393 = vmatprep.subr.bf16.mxu0 0
        %4394 = vmatpush2.bf16.msra.mxu0 0
        %4395 = vmatprep.subr.bf16.mxu0 0
        %4396 = vmatpush2.bf16.msra.mxu0 0
        %4397 = vmatprep.subr.bf16.mxu0 0
        %4398 = vmatpush2.bf16.msra.mxu0 0
        %4399 = vmatprep.subr.bf16.mxu0 0
        %4400 = vmatpush2.bf16.msra.mxu0 0
        %4401 = vmatprep.subr.bf16.mxu0 0
        %4402 = vmatpush2.bf16.msra.mxu0 0
        %4403 = vmatprep.subr.bf16.mxu0 0
        %4404 = vmatpush2.bf16.msra.mxu0 0
        %4405 = vmatprep.mubr.bf16.mxu0 0
        %4406 = vmatmul.mubr.bf16.gmra.mxu0 %v4371
        %v4407 = vpop.f32.mrf.mxu0
        %v4408 = vadd.f32 0.0, %v4407
        %v4409 = vpop.f32.mrf.mxu0
        %v4410 = vpop.f32.mrf.mxu0
        %v4411 = vpop.f32.mrf.mxu0
        %4412 = vdwg.mxu0
        %v4413 = vadd.f32 %v4335, %v4408
        %s4414 = scalar_lea.vmem %s7, 416
        %v4415 = vld [vmem:[%s4414] sm:$0xf]
        %v4416 = vld [vmem:[%s4414 + $0x4] sm:$0xf]
        %v4417 = vld [vmem:[%s4414 + $0x8] sm:$0xf]
        %v4418 = vld [vmem:[%s4414 + $0xc] sm:$0xf]
        %v4419 = vld [vmem:[%s4414 + $0x10] sm:$0xf]
        %v4420 = vld [vmem:[%s4414 + $0x14] sm:$0xf]
        %v4421 = vld [vmem:[%s4414 + $0x18] sm:$0xf]
        %v4422 = vld [vmem:[%s4414 + $0x1c] sm:$0xf]
        %v4423 = vshrl.u32 %v4336, 16
        %v4433 = vunpack.c.l.b16 %v4415
        %v4434 = vunpack.c.l.b16 %v4416
        %v4435 = vunpack.c.l.b16 %v4417
        %v4436 = vunpack.c.l.b16 %v4418
        %v4437 = vunpack.c.l.b16 %v4419
        %v4438 = vunpack.c.l.b16 %v4420
        %v4439 = vunpack.c.l.b16 %v4421
        %v4440 = vunpack.c.l.b16 %v4422
        %v4441 = vpack.c.b16 %v4434, %v4433
        %v4442 = vpack.c.b16 %v4436, %v4435
        %v4443 = vpack.c.b16 %v4438, %v4437
        %v4444 = vpack.c.b16 %v4440, %v4439
        %v4450 = vsel %vm664, %v4423, 0
        %4452 = vmatprep.subr.bf16.mxu0 0
        %4453 = vmatpush1.bf16.msra.mxu0 0
        %4454 = vmatprep.subr.bf16.mxu0 0
        %4455 = vmatpush1.bf16.msra.mxu0 0
        %4456 = vmatprep.subr.bf16.mxu0 0
        %4457 = vmatpush1.bf16.msra.mxu0 0
        %4458 = vmatprep.subr.bf16.mxu0 0
        %4459 = vmatpush1.bf16.msra.mxu0 0
        %4460 = vmatprep.subr.bf16.mxu0 0
        %4461 = vmatpush1.bf16.msra.mxu0 %v4444
        %4462 = vmatprep.subr.bf16.mxu0 0
        %4463 = vmatpush1.bf16.msra.mxu0 %v4443
        %4464 = vmatprep.subr.bf16.mxu0 0
        %4465 = vmatpush1.bf16.msra.mxu0 %v4442
        %4466 = vmatprep.subr.bf16.mxu0 0
        %4467 = vmatpush1.bf16.msra.mxu0 %v4441
        %4468 = vmatprep.subr.bf16.mxu0 0
        %4469 = vmatpush2.bf16.msra.mxu0 0
        %4470 = vmatprep.subr.bf16.mxu0 0
        %4471 = vmatpush2.bf16.msra.mxu0 0
        %4472 = vmatprep.subr.bf16.mxu0 0
        %4473 = vmatpush2.bf16.msra.mxu0 0
        %4474 = vmatprep.subr.bf16.mxu0 0
        %4475 = vmatpush2.bf16.msra.mxu0 0
        %4476 = vmatprep.subr.bf16.mxu0 0
        %4477 = vmatpush2.bf16.msra.mxu0 0
        %4478 = vmatprep.subr.bf16.mxu0 0
        %4479 = vmatpush2.bf16.msra.mxu0 0
        %4480 = vmatprep.subr.bf16.mxu0 0
        %4481 = vmatpush2.bf16.msra.mxu0 0
        %4482 = vmatprep.subr.bf16.mxu0 0
        %4483 = vmatpush2.bf16.msra.mxu0 0
        %4484 = vmatprep.mubr.bf16.mxu0 0
        %4485 = vmatmul.mubr.bf16.gmra.mxu0 %v4450
        %v4486 = vpop.f32.mrf.mxu0
        %v4487 = vadd.f32 0.0, %v4486
        %v4488 = vpop.f32.mrf.mxu0
        %v4489 = vpop.f32.mrf.mxu0
        %v4490 = vpop.f32.mrf.mxu0
        %4491 = vdwg.mxu0
        %v4492 = vadd.f32 %v4413, %v4487
        %s4493 = scalar_lea.vmem %s7, 448
        %v4494 = vld [vmem:[%s4493] sm:$0xf]
        %v4495 = vld [vmem:[%s4493 + $0x4] sm:$0xf]
        %v4496 = vld [vmem:[%s4493 + $0x8] sm:$0xf]
        %v4497 = vld [vmem:[%s4493 + $0xc] sm:$0xf]
        %v4498 = vld [vmem:[%s4493 + $0x10] sm:$0xf]
        %v4499 = vld [vmem:[%s4493 + $0x14] sm:$0xf]
        %v4500 = vld [vmem:[%s4493 + $0x18] sm:$0xf]
        %v4501 = vld [vmem:[%s4493 + $0x1c] sm:$0xf]
        %v4503 = vrot.slane %v4336, 1
        %v4512 = vunpack.c.l.b16 %v4494
        %v4513 = vunpack.c.l.b16 %v4495
        %v4514 = vunpack.c.l.b16 %v4496
        %v4515 = vunpack.c.l.b16 %v4497
        %v4516 = vunpack.c.l.b16 %v4498
        %v4517 = vunpack.c.l.b16 %v4499
        %v4518 = vunpack.c.l.b16 %v4500
        %v4519 = vunpack.c.l.b16 %v4501
        %v4520 = vpack.c.b16 %v4513, %v4512
        %v4521 = vpack.c.b16 %v4515, %v4514
        %v4522 = vpack.c.b16 %v4517, %v4516
        %v4523 = vpack.c.b16 %v4519, %v4518
        %v4529 = vsel %vm664, %v4503, 0
        %4531 = vmatprep.subr.bf16.mxu0 0
        %4532 = vmatpush1.bf16.msra.mxu0 0
        %4533 = vmatprep.subr.bf16.mxu0 0
        %4534 = vmatpush1.bf16.msra.mxu0 0
        %4535 = vmatprep.subr.bf16.mxu0 0
        %4536 = vmatpush1.bf16.msra.mxu0 0
        %4537 = vmatprep.subr.bf16.mxu0 0
        %4538 = vmatpush1.bf16.msra.mxu0 0
        %4539 = vmatprep.subr.bf16.mxu0 0
        %4540 = vmatpush1.bf16.msra.mxu0 %v4523
        %4541 = vmatprep.subr.bf16.mxu0 0
        %4542 = vmatpush1.bf16.msra.mxu0 %v4522
        %4543 = vmatprep.subr.bf16.mxu0 0
        %4544 = vmatpush1.bf16.msra.mxu0 %v4521
        %4545 = vmatprep.subr.bf16.mxu0 0
        %4546 = vmatpush1.bf16.msra.mxu0 %v4520
        %4547 = vmatprep.subr.bf16.mxu0 0
        %4548 = vmatpush2.bf16.msra.mxu0 0
        %4549 = vmatprep.subr.bf16.mxu0 0
        %4550 = vmatpush2.bf16.msra.mxu0 0
        %4551 = vmatprep.subr.bf16.mxu0 0
        %4552 = vmatpush2.bf16.msra.mxu0 0
        %4553 = vmatprep.subr.bf16.mxu0 0
        %4554 = vmatpush2.bf16.msra.mxu0 0
        %4555 = vmatprep.subr.bf16.mxu0 0
        %4556 = vmatpush2.bf16.msra.mxu0 0
        %4557 = vmatprep.subr.bf16.mxu0 0
        %4558 = vmatpush2.bf16.msra.mxu0 0
        %4559 = vmatprep.subr.bf16.mxu0 0
        %4560 = vmatpush2.bf16.msra.mxu0 0
        %4561 = vmatprep.subr.bf16.mxu0 0
        %4562 = vmatpush2.bf16.msra.mxu0 0
        %4563 = vmatprep.mubr.bf16.mxu0 0
        %4564 = vmatmul.mubr.bf16.gmra.mxu0 %v4529
        %v4565 = vpop.f32.mrf.mxu0
        %v4566 = vadd.f32 0.0, %v4565
        %v4567 = vpop.f32.mrf.mxu0
        %v4568 = vpop.f32.mrf.mxu0
        %v4569 = vpop.f32.mrf.mxu0
        %4570 = vdwg.mxu0
        %v4571 = vadd.f32 %v4492, %v4566
        %s4572 = scalar_lea.vmem %s7, 480
        %v4573 = vld [vmem:[%s4572] sm:$0xf]
        %v4574 = vld [vmem:[%s4572 + $0x4] sm:$0xf]
        %v4575 = vld [vmem:[%s4572 + $0x8] sm:$0xf]
        %v4576 = vld [vmem:[%s4572 + $0xc] sm:$0xf]
        %v4577 = vld [vmem:[%s4572 + $0x10] sm:$0xf]
        %v4578 = vld [vmem:[%s4572 + $0x14] sm:$0xf]
        %v4579 = vld [vmem:[%s4572 + $0x18] sm:$0xf]
        %v4580 = vld [vmem:[%s4572 + $0x1c] sm:$0xf]
        %v4581 = vrot.slane %v4423, 1
        %v4590 = vunpack.c.l.b16 %v4573
        %v4591 = vunpack.c.l.b16 %v4574
        %v4592 = vunpack.c.l.b16 %v4575
        %v4593 = vunpack.c.l.b16 %v4576
        %v4594 = vunpack.c.l.b16 %v4577
        %v4595 = vunpack.c.l.b16 %v4578
        %v4596 = vunpack.c.l.b16 %v4579
        %v4597 = vunpack.c.l.b16 %v4580
        %v4598 = vpack.c.b16 %v4591, %v4590
        %v4599 = vpack.c.b16 %v4593, %v4592
        %v4600 = vpack.c.b16 %v4595, %v4594
        %v4601 = vpack.c.b16 %v4597, %v4596
        %v4607 = vsel %vm664, %v4581, 0
        %4609 = vmatprep.subr.bf16.mxu0 0
        %4610 = vmatpush1.bf16.msra.mxu0 0
        %4611 = vmatprep.subr.bf16.mxu0 0
        %4612 = vmatpush1.bf16.msra.mxu0 0
        %4613 = vmatprep.subr.bf16.mxu0 0
        %4614 = vmatpush1.bf16.msra.mxu0 0
        %4615 = vmatprep.subr.bf16.mxu0 0
        %4616 = vmatpush1.bf16.msra.mxu0 0
        %4617 = vmatprep.subr.bf16.mxu0 0
        %4618 = vmatpush1.bf16.msra.mxu0 %v4601
        %4619 = vmatprep.subr.bf16.mxu0 0
        %4620 = vmatpush1.bf16.msra.mxu0 %v4600
        %4621 = vmatprep.subr.bf16.mxu0 0
        %4622 = vmatpush1.bf16.msra.mxu0 %v4599
        %4623 = vmatprep.subr.bf16.mxu0 0
        %4624 = vmatpush1.bf16.msra.mxu0 %v4598
        %4625 = vmatprep.subr.bf16.mxu0 0
        %4626 = vmatpush2.bf16.msra.mxu0 0
        %4627 = vmatprep.subr.bf16.mxu0 0
        %4628 = vmatpush2.bf16.msra.mxu0 0
        %4629 = vmatprep.subr.bf16.mxu0 0
        %4630 = vmatpush2.bf16.msra.mxu0 0
        %4631 = vmatprep.subr.bf16.mxu0 0
        %4632 = vmatpush2.bf16.msra.mxu0 0
        %4633 = vmatprep.subr.bf16.mxu0 0
        %4634 = vmatpush2.bf16.msra.mxu0 0
        %4635 = vmatprep.subr.bf16.mxu0 0
        %4636 = vmatpush2.bf16.msra.mxu0 0
        %4637 = vmatprep.subr.bf16.mxu0 0
        %4638 = vmatpush2.bf16.msra.mxu0 0
        %4639 = vmatprep.subr.bf16.mxu0 0
        %4640 = vmatpush2.bf16.msra.mxu0 0
        %4641 = vmatprep.mubr.bf16.mxu0 0
        %4642 = vmatmul.mubr.bf16.gmra.mxu0 %v4607
        %v4643 = vpop.f32.mrf.mxu0
        %v4644 = vadd.f32 0.0, %v4643
        %v4645 = vpop.f32.mrf.mxu0
        %v4646 = vpop.f32.mrf.mxu0
        %v4647 = vpop.f32.mrf.mxu0
        %4648 = vdwg.mxu0
        %v4649 = vadd.f32 %v4571, %v4644
        %v4650 = vld [vmem:[%s8] sm:$0x1]
        %v4651 = vadd.f32 %v4649, %v4650
        %v4652 = vmax.f32 %v4651, 0.0
        %v4653 = vpack.c.bf16 %v4652, %v4652
        %v4654 = vld [vmem:[%s9] sm:$0xf]
        %v4655 = vld [vmem:[%s9 + $0x4] sm:$0xf]
        %v4656 = vld [vmem:[%s9 + $0x8] sm:$0xf]
        %v4657 = vld [vmem:[%s9 + $0xc] sm:$0xf]
        %v4658 = vld [vmem:[%s9 + $0x10] sm:$0xf]
        %v4659 = vld [vmem:[%s9 + $0x14] sm:$0xf]
        %v4660 = vld [vmem:[%s9 + $0x18] sm:$0xf]
        %v4661 = vld [vmem:[%s9 + $0x1c] sm:$0xf]
        %v4662 = vld [vmem:[%s9 + $0x20] sm:$0xf]
        %v4663 = vld [vmem:[%s9 + $0x24] sm:$0xf]
        %v4664 = vld [vmem:[%s9 + $0x28] sm:$0xf]
        %v4665 = vld [vmem:[%s9 + $0x2c] sm:$0xf]
        %v4666 = vld [vmem:[%s9 + $0x30] sm:$0xf]
        %v4667 = vld [vmem:[%s9 + $0x34] sm:$0xf]
        %v4668 = vld [vmem:[%s9 + $0x38] sm:$0xf]
        %v4669 = vld [vmem:[%s9 + $0x3c] sm:$0xf]
        %v4670 = vld [vmem:[%s10] sm:$0x1]
        %v4687 = vunpack.c.l.b16 %v4654
        %v4688 = vunpack.c.l.b16 %v4655
        %v4689 = vunpack.c.l.b16 %v4656
        %v4690 = vunpack.c.l.b16 %v4657
        %v4691 = vunpack.c.l.b16 %v4658
        %v4692 = vunpack.c.l.b16 %v4659
        %v4693 = vunpack.c.l.b16 %v4660
        %v4694 = vunpack.c.l.b16 %v4661
        %v4695 = vunpack.c.l.b16 %v4662
        %v4696 = vunpack.c.l.b16 %v4663
        %v4697 = vunpack.c.l.b16 %v4664
        %v4698 = vunpack.c.l.b16 %v4665
        %v4699 = vunpack.c.l.b16 %v4666
        %v4700 = vunpack.c.l.b16 %v4667
        %v4701 = vunpack.c.l.b16 %v4668
        %v4702 = vunpack.c.l.b16 %v4669
        %v4703 = vpack.c.b16 %v4688, %v4687
        %v4704 = vpack.c.b16 %v4690, %v4689
        %v4705 = vpack.c.b16 %v4692, %v4691
        %v4706 = vpack.c.b16 %v4694, %v4693
        %v4707 = vpack.c.b16 %v4696, %v4695
        %v4708 = vpack.c.b16 %v4698, %v4697
        %v4709 = vpack.c.b16 %v4700, %v4699
        %v4710 = vpack.c.b16 %v4702, %v4701
        %4719 = vmatprep.subr.bf16.mxu0 0
        %4720 = vmatpush1.bf16.msra.mxu0 %v4710
        %4721 = vmatprep.subr.bf16.mxu0 0
        %4722 = vmatpush1.bf16.msra.mxu0 %v4709
        %4723 = vmatprep.subr.bf16.mxu0 0
        %4724 = vmatpush1.bf16.msra.mxu0 %v4708
        %4725 = vmatprep.subr.bf16.mxu0 0
        %4726 = vmatpush1.bf16.msra.mxu0 %v4707
        %4727 = vmatprep.subr.bf16.mxu0 0
        %4728 = vmatpush1.bf16.msra.mxu0 %v4706
        %4729 = vmatprep.subr.bf16.mxu0 0
        %4730 = vmatpush1.bf16.msra.mxu0 %v4705
        %4731 = vmatprep.subr.bf16.mxu0 0
        %4732 = vmatpush1.bf16.msra.mxu0 %v4704
        %4733 = vmatprep.subr.bf16.mxu0 0
        %4734 = vmatpush1.bf16.msra.mxu0 %v4703
        %4735 = vmatprep.subr.bf16.mxu0 0
        %4736 = vmatpush2.bf16.msra.mxu0 0
        %4737 = vmatprep.subr.bf16.mxu0 0
        %4738 = vmatpush2.bf16.msra.mxu0 0
        %4739 = vmatprep.subr.bf16.mxu0 0
        %4740 = vmatpush2.bf16.msra.mxu0 0
        %4741 = vmatprep.subr.bf16.mxu0 0
        %4742 = vmatpush2.bf16.msra.mxu0 0
        %4743 = vmatprep.subr.bf16.mxu0 0
        %4744 = vmatpush2.bf16.msra.mxu0 0
        %4745 = vmatprep.subr.bf16.mxu0 0
        %4746 = vmatpush2.bf16.msra.mxu0 0
        %4747 = vmatprep.subr.bf16.mxu0 0
        %4748 = vmatpush2.bf16.msra.mxu0 0
        %4749 = vmatprep.subr.bf16.mxu0 0
        %4750 = vmatpush2.bf16.msra.mxu0 0
        %4751 = vmatprep.mubr.bf16.mxu0 0
        %4752 = vmatmul.mubr.bf16.gmra.mxu0 %v4653
        %v4753 = vpop.f32.mrf.mxu0
        %v4754 = vadd.f32 %v4670, %v4753
        %v4755 = vpop.f32.mrf.mxu0
        %v4756 = vpop.f32.mrf.mxu0
        %v4757 = vpop.f32.mrf.mxu0
        %4758 = vdwg.mxu0
        %vm4759 = vcmask 1040384
        %v4760 = vsel %vm4759, %v4754, -inf
        %4761 = vmax.xlane.f32.xlu0 %v4760
        %v4762 = vpop.xlane.xlu0 %4761
        %v4763 = vsub.f32 %v4754, %v4762
        %v4764 = vmul.f32 %v4763, 1.442695
        %v4765 = vpow.pop %v4764
        %v4766 = vsel %vm4759, %v4765, 0.0
        %4767 = vadd.xlane.f32.xlu0 %v4766
        %v4768 = vpop.xlane.xlu0 %4767
        %v4769 = vrcp.pop %v4768
        %v4770 = vmul.f32 %v4765, %v4769
        %4771 = vst [vmem:[%s378] sm:$0x1] %v4770
        %s4772 = sand.u32 %s269, 1
        %s4773 = scalar_lea.sflag [#allocation4], %s4772
        %s4774 = sand.u32 %s269, 1
        %s4775 = scalar_lea.vmem [#allocation3], %s4774
        // Predicated region
        $region65: #{actor_forward.1} parent=63 // pred_check
          %p4776 = pneg %p279
        $region66: #{actor_forward.1} parent=63 // pred_check_branch
          %4778 = sbr.rel (%p4776) target = $region68
        $region67: #{actor_forward.1} parent=63 // pred_region
          %s4780 = ssub.s32 16, 16
          %4781 = vsyncadd %s4773, %s4780
          %s4782 = smul.addr %s25, 16
          %s4783 = scalar_lea.hbm %s11, %s4782
          %s4785 = sshll.u32 %s4775, 4
          %s4786 = int_to_ptr.vmem [resolvable:$true] %s4785
          %4788 = dma.vmem_to_hbm [thread:$0]  %s4786, 16, %s4783, %s4773
        $region68: #{actor_forward.1} parent=63 // pred_fallthru
          _
      $region64: #{actor_forward.1} parent=5 // pred_fallthru
        _
      %p4789 = scmp.le.s32.totalorder 2, %s20
      // Predicated region
      $region69: #{actor_forward.1} parent=5 // pred_check
        %p4790 = pneg %p4789
      $region70: #{actor_forward.1} parent=5 // pred_check_branch
        %4792 = sbr.rel (%p4790) target = $region72
      $region71: #{actor_forward.1} parent=5 // pred_region
        %s4793 = ssub.s32 %s20, 2
        // Predicated region
        $region73: #{actor_forward.1} parent=71 // pred_check
          %p4794 = pneg %p285
        $region74: #{actor_forward.1} parent=71 // pred_check_branch
          %4796 = sbr.rel (%p4794) target = $region76
        $region75: #{actor_forward.1} parent=71 // pred_region
          %s4797 = sand.u32 %s270, 1
          %s4798 = scalar_lea.sflag [#allocation4], %s4797
          %s4799 = sand.u32 %s270, 1
          %s4800 = scalar_lea.vmem [#allocation3], %s4799
          %4801 = dma.done %s4798, 16
        $region76: #{actor_forward.1} parent=71 // pred_fallthru
          _
      $region72: #{actor_forward.1} parent=5 // pred_fallthru
        _
    $region6: #{actor_forward.1} parent=1 // loop_footer
      %s24 = sadd.s32 1, %s20
    $region7: #{actor_forward.1} parent=1 // loop_footer_branch
      %19 = sbr.rel target = $region3
    $region8: #{actor_forward.1} parent=1 // loop_exit
      _
    %4802 = vsyncpa [#allocation4], 1
    %s4803 = scalar_lea.sflag [#allocation4], 1
    %4804 = vsyncpa %s4803, 1

</llo_original>
